<compile_context>
chip_gen: v5e
topology: v5e:2x2
jax: 0.10.0
libtpu: 0.0.40
codegen_flags: <defaults>
</compile_context>

<pallas_src>
import functools

import jax
import jax.numpy as jnp
from jax.experimental import pallas as pl
from jax.experimental.pallas import tpu as pltpu


_VMEM_LIMIT = 40 * 1024 * 1024   # > v5e's 16 MiB default, < v7x's 64 MiB physical


def _round_up(x, m):
    return ((x + m - 1) // m) * m


# ------------------------------------------------------------------ fc6: big-tile reduce matmul
def _linear_reduce_kernel(x_ref, w_ref, b_ref, o_ref, acc_ref, *, activation):
    """One (tm, tn) output tile; grid axis 2 reduces over K with an f32 accumulator."""
    k = pl.program_id(2)

    @pl.when(k == 0)
    def _():
        acc_ref[...] = jnp.zeros_like(acc_ref)

    acc_ref[...] += jnp.dot(
        x_ref[...], w_ref[...], preferred_element_type=jnp.float32
    )

    @pl.when(k == pl.num_programs(2) - 1)
    def _():
        out = acc_ref[...] + b_ref[...].astype(jnp.float32)   # bias broadcast over rows
        if activation == "relu":
            out = jnp.maximum(out, 0.0)
        o_ref[...] = out.astype(o_ref.dtype)


def pallas_linear(x, w, b, activation=None, *, tm=128, tn=512, tk=1792,
                  out_dtype=None):
    """y = act(x @ w + b).  x:(M,K), w:(K,N), b:(N,).  M is padded internally."""
    M, K = x.shape
    Kw, N = w.shape
    assert K == Kw and N % tn == 0 and K % tk == 0
    out_dtype = out_dtype or x.dtype

    Mp = _round_up(M, tm)
    if Mp != M:
        x = jnp.pad(x, ((0, Mp - M), (0, 0)))

    kernel = functools.partial(_linear_reduce_kernel, activation=activation)
    out = pl.pallas_call(
        kernel,
        out_shape=jax.ShapeDtypeStruct((Mp, N), out_dtype),
        grid_spec=pltpu.PrefetchScalarGridSpec(
            num_scalar_prefetch=0,
            grid=(Mp // tm, N // tn, K // tk),
            in_specs=[
                pl.BlockSpec((tm, tk), lambda i, j, k: (i, k)),
                pl.BlockSpec((tk, tn), lambda i, j, k: (k, j)),
                pl.BlockSpec((1, tn), lambda i, j, k: (0, j)),
            ],
            out_specs=pl.BlockSpec((tm, tn), lambda i, j, k: (i, j)),
            scratch_shapes=[pltpu.VMEM((tm, tn), jnp.float32)],
        ),
        compiler_params=pltpu.CompilerParams(
            dimension_semantics=("parallel", "parallel", "arbitrary"),
            vmem_limit_bytes=_VMEM_LIMIT,
        ),
    )(x, w, b.reshape(1, -1))
    return out[:M] if Mp != M else out


# ---------------------------------------------- fused fc7 + predictor head (single VMEM tile)
def _mlp_head_kernel(h_ref, w7_ref, b7_ref, wh_ref, bh_ref, o_ref):
    """out = (relu(h @ w7 + b7)) @ wh + bh — no K grid, no accumulator scratch."""
    h2 = jnp.dot(h_ref[...], w7_ref[...], preferred_element_type=jnp.float32)
    h2 = jnp.maximum(h2 + b7_ref[...].astype(jnp.float32), 0.0)
    out = jnp.dot(h2.astype(wh_ref.dtype), wh_ref[...],
                  preferred_element_type=jnp.float32)
    o_ref[...] = (out + bh_ref[...].astype(jnp.float32)).astype(o_ref.dtype)


def pallas_mlp_head(h, w7, b7, wh, bh, *, tm=128):
    """h:(M,1024) -> relu(fc7) -> fused cls/bbox head, all inside one pallas_call."""
    M, K = h.shape
    K7, H = w7.shape
    Hh, Np = wh.shape
    assert K == K7 and H == Hh

    Mp = _round_up(M, tm)
    if Mp != M:
        h = jnp.pad(h, ((0, Mp - M), (0, 0)))

    out = pl.pallas_call(
        _mlp_head_kernel,
        out_shape=jax.ShapeDtypeStruct((Mp, Np), jnp.float32),
        grid_spec=pltpu.PrefetchScalarGridSpec(
            num_scalar_prefetch=0,
            grid=(Mp // tm,),
            in_specs=[
                pl.BlockSpec((tm, K), lambda i: (i, 0)),
                pl.BlockSpec((K, H), lambda i: (0, 0)),   # fc7 weight: loaded once
                pl.BlockSpec((1, H), lambda i: (0, 0)),
                pl.BlockSpec((H, Np), lambda i: (0, 0)),  # fused head weight: loaded once
                pl.BlockSpec((1, Np), lambda i: (0, 0)),
            ],
            out_specs=pl.BlockSpec((tm, Np), lambda i: (i, 0)),
        ),
        compiler_params=pltpu.CompilerParams(
            dimension_semantics=("parallel",),
            vmem_limit_bytes=_VMEM_LIMIT,
        ),
    )(h, w7, b7.reshape(1, -1), wh, bh.reshape(1, -1))
    return out[:M] if Mp != M else out


# ------------------------------------------------------------------------- detector box head
def detector_box_head(roi_feats, params, n_classes):
    """TwoMLPHead + FastRCNNPredictor, all matmuls in Pallas (bf16 in, f32 accumulate).

    roi_feats: (R, 256, 7, 7) pooled ROI features (NCHW pooling layout).
    Returns (cls_scores (R, n_classes), bbox_deltas (R, 4*n_classes)) in f32.
    """
    R = roi_feats.shape[0]
    flat = roi_feats.reshape(R, -1).astype(jnp.bfloat16)               # (R, 12544)

    # fc6: memory-bound 25 MB bf16 weight stream, big tiles.
    h = pallas_linear(flat, params["fc6_w"], params["fc6_b"], "relu",
                      tm=128, tn=512, tk=1792, out_dtype=jnp.bfloat16)  # (R, 1024)

    # fc7 + fused (cls, bbox) predictor head in a single kernel launch.
    out = pallas_mlp_head(h, params["fc7_w"], params["fc7_b"],
                          params["head_w_pad"], params["head_b_pad"])   # (R, n_pad)

    cls_scores = out[:, :n_classes]
    bbox_deltas = out[:, n_classes:5 * n_classes]
    return cls_scores, bbox_deltas


def init_params(key, n_classes, in_features=1024, pooled_dim=256 * 7 * 7):
    ks = jax.random.split(key, 8)
    s = 0.02
    fc6_w = s * jax.random.normal(ks[0], (pooled_dim, in_features), jnp.float32)
    fc6_b = s * jax.random.normal(ks[1], (in_features,), jnp.float32)
    fc7_w = s * jax.random.normal(ks[2], (in_features, in_features), jnp.float32)
    fc7_b = s * jax.random.normal(ks[3], (in_features,), jnp.float32)
    cls_w = s * jax.random.normal(ks[4], (in_features, n_classes), jnp.float32)
    cls_b = s * jax.random.normal(ks[5], (n_classes,), jnp.float32)
    bbox_w = s * jax.random.normal(ks[6], (in_features, 4 * n_classes), jnp.float32)
    bbox_b = s * jax.random.normal(ks[7], (4 * n_classes,), jnp.float32)

    # Fuse the two predictor heads; pad the output dim UP to a multiple of 128 (lane-dense,
    # works for any n_classes, not just n_classes <= 25).
    head_w = jnp.concatenate([cls_w, bbox_w], axis=1)                  # (1024, 5*n_classes)
    head_b = jnp.concatenate([cls_b, bbox_b], axis=0)
    n_out = head_w.shape[1]
    n_pad = max(128, _round_up(n_out, 128))
    head_w_pad = jnp.pad(head_w, ((0, 0), (0, n_pad - n_out)))
    head_b_pad = jnp.pad(head_b, (0, n_pad - n_out))

    return dict(
        # bf16 weights (halve fc6's HBM traffic; biases stay f32, add done in f32).
        fc6_w=fc6_w.astype(jnp.bfloat16), fc6_b=fc6_b,
        fc7_w=fc7_w.astype(jnp.bfloat16), fc7_b=fc7_b,
        head_w_pad=head_w_pad.astype(jnp.bfloat16), head_b_pad=head_b_pad,
    )


if __name__ == "__main__":
    key = jax.random.PRNGKey(0)
    n_classes = 2                 # as in Detector.__init__: FastRCNNPredictor(1024, n_classes)

    # Mirror of Detector.forward(x, t, is_train=False) inputs (shapes only; backbone not run).
    k_img, k_roi, k_par = jax.random.split(key, 3)
    x_images = jax.random.normal(k_img, (2, 3, 64, 64), jnp.float32)   # NCHW images (unused)
    # TODO(synk): backbone/FPN/RPN/RoIAlign skipped — synthetic ROI-pooled features instead.
    roi_feats = jax.random.normal(k_roi, (128, 256, 7, 7), jnp.float32)

    params = init_params(k_par, n_classes)

    cls_scores, bbox_deltas = detector_box_head(roi_feats, params, n_classes)
    jax.block_until_ready((cls_scores, bbox_deltas))

    # Reference check against plain JAX applying the same bf16 rounding at each step.
    R = roi_feats.shape[0]
    flat = roi_feats.reshape(R, -1).astype(jnp.bfloat16).astype(jnp.float32)
    w6 = params["fc6_w"].astype(jnp.float32)
    h1 = jnp.maximum(flat @ w6 + params["fc6_b"], 0.0)
    h1 = h1.astype(jnp.bfloat16).astype(jnp.float32)        # kernel stores h in bf16
    w7 = params["fc7_w"].astype(jnp.float32)
    h2 = jnp.maximum(h1 @ w7 + params["fc7_b"], 0.0)
    h2 = h2.astype(jnp.bfloat16).astype(jnp.float32)        # kernel casts before head matmul
    wh = params["head_w_pad"].astype(jnp.float32)
    out_ref = h2 @ wh + params["head_b_pad"]
    ref_cls = out_ref[:, :n_classes]
    ref_box = out_ref[:, n_classes:5 * n_classes]

    assert cls_scores.shape == (128, n_classes)
    assert bbox_deltas.shape == (128, 4 * n_classes)
    assert jnp.allclose(cls_scores, ref_cls, atol=2e-2, rtol=2e-2)
    assert jnp.allclose(bbox_deltas, ref_box, atol=2e-2, rtol=2e-2)

    print("KERNEL_OK")
</pallas_src>

<mosaic_0001>
module attributes {stable_mosaic.version = 11 : i64} {
  func.func @_linear_reduce_kernel(%arg0: i32, %arg1: i32, %arg2: i32, %arg3: memref<128x1792xbf16, #tpu.memory_space<vmem>>, %arg4: memref<1792x512xbf16, #tpu.memory_space<vmem>>, %arg5: memref<1x512xf32, #tpu.memory_space<vmem>>, %arg6: memref<128x512xbf16, #tpu.memory_space<vmem>>, %arg7: memref<128x512xf32, #tpu.memory_space<vmem>>) attributes {dimension_semantics = [#tpu.dimension_semantics<parallel>, #tpu.dimension_semantics<parallel>, #tpu.dimension_semantics<arbitrary>], iteration_bounds = array<i64: 1, 2, 7>, scalar_prefetch = 0 : i64, scratch_operands = 1 : i64, tpu.core_type = #tpu.core_type<tc>, window_params = [{transform_indices = @transform_0, window_bounds = array<i64: 128, 1792>}, {transform_indices = @transform_1, window_bounds = array<i64: 1792, 512>}, {transform_indices = @transform_2, window_bounds = array<i64: 1, 512>}, {transform_indices = @transform_3, window_bounds = array<i64: 128, 512>}]} {
    %c0_i32 = arith.constant 0 : i32
    %0 = arith.cmpi eq, %arg2, %c0_i32 : i32
    %1 = arith.extui %0 : i1 to i32
    %c0_i32_0 = arith.constant 0 : i32
    %2 = arith.cmpi ne, %1, %c0_i32_0 : i32
    scf.if %2 {
      %cst_9 = arith.constant 0.000000e+00 : f32
      %12 = vector.broadcast %cst_9 : f32 to vector<128x512xf32>
      %c0_10 = arith.constant 0 : index
      %c0_11 = arith.constant 0 : index
      %13 = vector.load %arg7[%c0_10, %c0_11] : memref<128x512xf32, #tpu.memory_space<vmem>>, vector<128x512xf32>
      tpu.vector_store %arg7[%c0_10, %c0_11], %12 {strides = array<i32>} : memref<128x512xf32, #tpu.memory_space<vmem>>, vector<128x512xf32>,
    } else {
    }
    %c0 = arith.constant 0 : index
    %c0_1 = arith.constant 0 : index
    %3 = vector.load %arg7[%c0, %c0_1] : memref<128x512xf32, #tpu.memory_space<vmem>>, vector<128x512xf32>
    %c0_2 = arith.constant 0 : index
    %c0_3 = arith.constant 0 : index
    %4 = vector.load %arg3[%c0_2, %c0_3] : memref<128x1792xbf16, #tpu.memory_space<vmem>>, vector<128x1792xbf16>
    %c0_4 = arith.constant 0 : index
    %c0_5 = arith.constant 0 : index
    %5 = vector.load %arg4[%c0_4, %c0_5] : memref<1792x512xbf16, #tpu.memory_space<vmem>>, vector<1792x512xbf16>
    %cst = arith.constant dense<0.000000e+00> : vector<128x512xf32>
    %6 = tpu.matmul %4, %5, %cst {dimension_numbers = #tpu.dot_dimension_numbers<[1], [0], [0], [1], [0, 0, 1, 1], [], []>} : vector<128x1792xbf16>, vector<1792x512xbf16>, vector<128x512xf32> -> vector<128x512xf32>
    %7 = arith.addf %3, %6 : vector<128x512xf32>
    %c0_6 = arith.constant 0 : index
    %c0_7 = arith.constant 0 : index
    %8 = vector.load %arg7[%c0_6, %c0_7] : memref<128x512xf32, #tpu.memory_space<vmem>>, vector<128x512xf32>
    tpu.vector_store %arg7[%c0_6, %c0_7], %7 {strides = array<i32>} : memref<128x512xf32, #tpu.memory_space<vmem>>, vector<128x512xf32>,
    %c6_i32 = arith.constant 6 : i32
    %9 = arith.cmpi eq, %arg2, %c6_i32 : i32
    %10 = arith.extui %9 : i1 to i32
    %c0_i32_8 = arith.constant 0 : i32
    %11 = arith.cmpi ne, %10, %c0_i32_8 : i32
    scf.if %11 {
      %c0_9 = arith.constant 0 : index
      %c0_10 = arith.constant 0 : index
      %12 = vector.load %arg7[%c0_9, %c0_10] : memref<128x512xf32, #tpu.memory_space<vmem>>, vector<128x512xf32>
      %c0_11 = arith.constant 0 : index
      %c0_12 = arith.constant 0 : index
      %13 = vector.load %arg5[%c0_11, %c0_12] : memref<1x512xf32, #tpu.memory_space<vmem>>, vector<1x512xf32>
      %14 = vector.broadcast %13 : vector<1x512xf32> to vector<128x512xf32>
      %15 = arith.addf %12, %14 : vector<128x512xf32>
      %cst_13 = arith.constant 0.000000e+00 : f32
      %16 = vector.broadcast %cst_13 : f32 to vector<128x512xf32>
      %17 = arith.maximumf %15, %16 : vector<128x512xf32>
      %18 = arith.truncf %17 : vector<128x512xf32> to vector<128x512xbf16>
      %c0_14 = arith.constant 0 : index
      %c0_15 = arith.constant 0 : index
      %19 = vector.load %arg6[%c0_14, %c0_15] : memref<128x512xbf16, #tpu.memory_space<vmem>>, vector<128x512xbf16>
      tpu.vector_store %arg6[%c0_14, %c0_15], %18 {strides = array<i32>} : memref<128x512xbf16, #tpu.memory_space<vmem>>, vector<128x512xbf16>,
    } else {
    }
    return
  }
  func.func @transform_0(%arg0: i32, %arg1: i32, %arg2: i32) -> (i32, i32) {
    %c0_i32 = arith.constant 0 : i32
    return %arg0, %arg2 : i32, i32
  }
  func.func @transform_1(%arg0: i32, %arg1: i32, %arg2: i32) -> (i32, i32) {
    %c0_i32 = arith.constant 0 : i32
    return %arg2, %arg1 : i32, i32
  }
  func.func @transform_2(%arg0: i32, %arg1: i32, %arg2: i32) -> (i32, i32) {
    %c0_i32 = arith.constant 0 : i32
    %c0_i32_0 = arith.constant 0 : i32
    return %c0_i32, %arg1 : i32, i32
  }
  func.func @transform_3(%arg0: i32, %arg1: i32, %arg2: i32) -> (i32, i32) {
    %c0_i32 = arith.constant 0 : i32
    return %arg0, %arg1 : i32, i32
  }
}

</mosaic_0001>

<llo_original>
// kernel: tpu_custom_call.1
$region0: #{tpu_custom_call.1}
  #allocation0 [shape = 'u32[]', space=smem, size = 0x4, offset = 0x4, fixed_abs, tag = 'smem constant byte address 0x4 - core index']
  #allocation1 [shape = 'u32[72,128]{1,0:T(1,128)}', space=vmem, size = 0x9000, scoped, tag = 'internal scratch']
  #allocation2 [shape = 'f32[128,512]{1,0:T(8,128)}', space=vmem, size = 0x40000, scoped, tag = 'scratch operand']
  %s0 = inlined_call_operand.hbm [shape: bf16[128,12544], index: 0, kind: input, shape index: {}]
  %s1 = inlined_call_operand.hbm [shape: bf16[12544,1024], index: 1, kind: input, shape index: {}]
  %s2 = inlined_call_operand.hbm [shape: f32[1,1024], index: 2, kind: input, shape index: {}]
  %s3 = inlined_call_operand.hbm [shape: bf16[128,1024], index: 3, kind: output, shape index: {}]
  %s4 = sld [smem:[#allocation0]]
  $region65: #{tpu_custom_call.1} parent=0
    _
  %s6 = ssub.s32 1, %s4
  %s7 = scalar_select 0, %s6, %s4
  $region1: #{tpu_custom_call.1} parent=0
    #allocation3 [shape = 'u8[917504]{0}', space=vmem, size = 0xe0000, scoped, tag = 'input window, operand 0']
    #allocation4 [shape = 's32[2]{0}', space=sflag, size = 0x8, scoped, tag = 'scoped memory for tpu_custom_call.1']
    #allocation5 [shape = 's32[2]{0}', space=sflag, size = 0x8, scoped, tag = 'scoped memory for tpu_custom_call.1']
    #allocation6 [shape = 'u8[3670016]{0}', space=vmem, size = 0x380000, scoped, tag = 'input window, operand 1']
    #allocation7 [shape = 's32[2]{0}', space=sflag, size = 0x8, scoped, tag = 'scoped memory for tpu_custom_call.1']
    #allocation8 [shape = 'u8[4096]{0}', space=vmem, size = 0x1000, scoped, tag = 'input window, operand 2']
    #allocation9 [shape = 'u8[262144]{0}', space=vmem, size = 0x40000, scoped, tag = 'output window, operand 0']
    %8 = vsyncpa [#allocation4], 0
    %s9 = scalar_lea.sflag [#allocation4], 1
    %10 = vsyncpa %s9, 0
    %11 = vsyncpa [#allocation7], 0
    %s12 = scalar_lea.sflag [#allocation7], 1
    %13 = vsyncpa %s12, 0
    %14 = vsyncpa [#allocation5], 0
    %s15 = scalar_lea.sflag [#allocation5], 1
    %16 = vsyncpa %s15, 0
    loop: start=0, step=1, limit=16
    $region2: #{tpu_custom_call.1} parent=1 // loop_pre_header
      _
    $region3: #{tpu_custom_call.1} parent=1 // loop_header
      %s18 = sphi 0, %s22
      %p19 = scmp.ge.s32.totalorder %s18, 16
      %s25 = sphi 0, %s44
      %s26 = sphi 0, %s40
      %s27 = sphi 0, %s36
      %s28 = sphi 0, %s25
      %s29 = sphi 0, %s26
      %s30 = sphi 0, %s27
      %s31 = sphi 0, %s28
      %s32 = sphi 0, %s29
      %s33 = sphi 0, %s30
      %s49 = sphi 0, %s51
      %s52 = sphi 0, %s49
      %s53 = sphi 0, %s52
      %s69 = sphi 0, %s53
      %s77 = sphi 0, %s79
      %s80 = sphi 0, %s77
      %s81 = sphi 0, %s80
      %s97 = sphi 0, %s81
      %s103 = sphi 0, %s105
      %s106 = sphi 0, %s103
      %s107 = sphi 0, %s106
      %s123 = sphi 0, %s107
      %s131 = sphi 0, %s133
      %s134 = sphi 0, %s131
      %s135 = sphi 0, %s134
      %s151 = sphi 0, %s135
    $region4: #{tpu_custom_call.1} parent=1 // loop_header_branch
      %21 = sbr.rel (%p19) target = $region8
    $region5: #{tpu_custom_call.1} parent=1 // loop_body
      %s23 = ssub.s32 %s18, 1
      %s24 = ssub.s32 %s18, 2
      %s34 = sadd.s32 1, %s27
      %p35 = scmp.ge.s32.totalorder %s34, 7
      %s36 = scalar_select %p35, 0, %s34
      %s37 = sadd.s32 1, %s26
      %s38 = scalar_select %p35, %s37, %s26
      %p39 = scmp.ge.s32.totalorder %s38, 2
      %s40 = scalar_select %p39, 0, %s38
      %s41 = sadd.s32 1, %s25
      %s42 = scalar_select %p39, %s41, %s25
      %p43 = scmp.ge.s32.totalorder %s42, 1
      %s44 = scalar_select %p43, 0, %s42
      %s45 = ssub.s32 %s25, %s44
      %s46 = ssub.s32 %s27, %s36
      %s47 = sor.u32 %s45, %s46
      %p48 = scmp.eq.s32.totalorder %s47, 0
      %s50 = sadd.s32 %s49, 1
      %s51 = scalar_select %p48, %s49, %s50
      %p54 = pneg %p48
      %p55 = scmp.eq.s32.totalorder %s18, 13
      %p56 = por %p54, %p55
      %p57 = scmp.ne.s32.totalorder %s49, %s52
      %p58 = scmp.eq.s32.totalorder %s18, 0
      %p59 = por %p57, %p58
      %p60 = scmp.ne.s32.totalorder %s49, %s52
      %p61 = scmp.eq.s32.totalorder %s23, 13
      %p62 = por %p60, %p61
      %p63 = scmp.ne.s32.totalorder %s52, %s53
      %p64 = scmp.eq.s32.totalorder %s23, 0
      %p65 = por %p63, %p64
      %p66 = scmp.ne.s32.totalorder %s52, %s53
      %p67 = scmp.eq.s32.totalorder %s24, 13
      %p68 = por %p66, %p67
      %p70 = scmp.ne.s32.totalorder %s53, %s69
      %p71 = scmp.eq.s32.totalorder %s24, 0
      %p72 = por %p70, %p71
      %s73 = ssub.s32 %s27, %s36
      %s74 = ssub.s32 %s26, %s40
      %s75 = sor.u32 %s73, %s74
      %p76 = scmp.eq.s32.totalorder %s75, 0
      %s78 = sadd.s32 %s77, 1
      %s79 = scalar_select %p76, %s77, %s78
      %p82 = pneg %p76
      %p83 = scmp.eq.s32.totalorder %s18, 13
      %p84 = por %p82, %p83
      %p85 = scmp.ne.s32.totalorder %s77, %s80
      %p86 = scmp.eq.s32.totalorder %s18, 0
      %p87 = por %p85, %p86
      %p88 = scmp.ne.s32.totalorder %s77, %s80
      %p89 = scmp.eq.s32.totalorder %s23, 13
      %p90 = por %p88, %p89
      %p91 = scmp.ne.s32.totalorder %s80, %s81
      %p92 = scmp.eq.s32.totalorder %s23, 0
      %p93 = por %p91, %p92
      %p94 = scmp.ne.s32.totalorder %s80, %s81
      %p95 = scmp.eq.s32.totalorder %s24, 13
      %p96 = por %p94, %p95
      %p98 = scmp.ne.s32.totalorder %s81, %s97
      %p99 = scmp.eq.s32.totalorder %s24, 0
      %p100 = por %p98, %p99
      %s101 = ssub.s32 %s26, %s40
      %p102 = scmp.eq.s32.totalorder %s101, 0
      %s104 = sadd.s32 %s103, 1
      %s105 = scalar_select %p102, %s103, %s104
      %p108 = pneg %p102
      %p109 = scmp.eq.s32.totalorder %s18, 13
      %p110 = por %p108, %p109
      %p111 = scmp.ne.s32.totalorder %s103, %s106
      %p112 = scmp.eq.s32.totalorder %s18, 0
      %p113 = por %p111, %p112
      %p114 = scmp.ne.s32.totalorder %s103, %s106
      %p115 = scmp.eq.s32.totalorder %s23, 13
      %p116 = por %p114, %p115
      %p117 = scmp.ne.s32.totalorder %s106, %s107
      %p118 = scmp.eq.s32.totalorder %s23, 0
      %p119 = por %p117, %p118
      %p120 = scmp.ne.s32.totalorder %s106, %s107
      %p121 = scmp.eq.s32.totalorder %s24, 13
      %p122 = por %p120, %p121
      %p124 = scmp.ne.s32.totalorder %s107, %s123
      %p125 = scmp.eq.s32.totalorder %s24, 0
      %p126 = por %p124, %p125
      %s127 = ssub.s32 %s25, %s44
      %s128 = ssub.s32 %s26, %s40
      %s129 = sor.u32 %s127, %s128
      %p130 = scmp.eq.s32.totalorder %s129, 0
      %s132 = sadd.s32 %s131, 1
      %s133 = scalar_select %p130, %s131, %s132
      %p136 = pneg %p130
      %p137 = scmp.eq.s32.totalorder %s18, 13
      %p138 = por %p136, %p137
      %p139 = scmp.ne.s32.totalorder %s131, %s134
      %p140 = scmp.eq.s32.totalorder %s18, 0
      %p141 = por %p139, %p140
      %p142 = scmp.ne.s32.totalorder %s131, %s134
      %p143 = scmp.eq.s32.totalorder %s23, 13
      %p144 = por %p142, %p143
      %p145 = scmp.ne.s32.totalorder %s134, %s135
      %p146 = scmp.eq.s32.totalorder %s23, 0
      %p147 = por %p145, %p146
      %p148 = scmp.ne.s32.totalorder %s134, %s135
      %p149 = scmp.eq.s32.totalorder %s24, 13
      %p150 = por %p148, %p149
      %p152 = scmp.ne.s32.totalorder %s135, %s151
      %p153 = scmp.eq.s32.totalorder %s24, 0
      %p154 = por %p152, %p153
      %p155 = scmp.le.s32.totalorder 1, %s18
      %p156 = scmp.lt.s32.totalorder %s18, 15
      %p157 = pnand %p155, %p156
      %p158 = pneg %p157
      // Predicated region
      $region9: #{tpu_custom_call.1} parent=5 // pred_check
        _
      $region10: #{tpu_custom_call.1} parent=5 // pred_check_branch
        %160 = sbr.rel (%p157) target = $region12
      $region11: #{tpu_custom_call.1} parent=5 // pred_region
        %s161 = ssub.s32 %s18, 1
      $region12: #{tpu_custom_call.1} parent=5 // pred_fallthru
        _
      %p162 = scmp.lt.s32.totalorder %s18, 14
      // Predicated region
      $region13: #{tpu_custom_call.1} parent=5 // pred_check
        %p163 = pneg %p162
      $region14: #{tpu_custom_call.1} parent=5 // pred_check_branch
        %165 = sbr.rel (%p163) target = $region16
      $region15: #{tpu_custom_call.1} parent=5 // pred_region
        // Predicated region
        $region17: #{tpu_custom_call.1} parent=15 // pred_check
          %p166 = pneg %p59
        $region18: #{tpu_custom_call.1} parent=15 // pred_check_branch
          %168 = sbr.rel (%p166) target = $region20
        $region19: #{tpu_custom_call.1} parent=15 // pred_region
          %s169 = sand.u32 %s49, 1
          %s170 = scalar_lea.sflag [#allocation4], %s169
          %s171 = sand.u32 %s49, 1
          %s172 = smul.addr %s171, 896
          %s173 = scalar_lea.vmem [#allocation3], %s172
          %s174 = smul.u32 16, %s25
          %s175 = smul.u32 14, %s27
          %177 = vsyncadd %s170, 0
          %s178 = smul.addr %s174, 98
          %s179 = sadd.s32 %s175, %s178
          %s180 = smul.addr %s179, 4
          %s181 = scalar_lea.hbm %s0, %s180
          %s182 = sshll.u32 %s181, 4
          %s183 = int_to_ptr.hbm [resolvable:$true] %s182
          %s184 = sshll.u32 %s173, 4
          %s185 = int_to_ptr.vmem [resolvable:$true] %s184
          %190 = dma.hbm_to_vmem [thread:$0]  %s183, 14336, %s185, %s170, 6272, 896, 56
        $region20: #{tpu_custom_call.1} parent=15 // pred_fallthru
          _
        // Predicated region
        $region21: #{tpu_custom_call.1} parent=15 // pred_check
          %p191 = pneg %p87
        $region22: #{tpu_custom_call.1} parent=15 // pred_check_branch
          %193 = sbr.rel (%p191) target = $region24
        $region23: #{tpu_custom_call.1} parent=15 // pred_region
          %s194 = sand.u32 %s18, 1
          %s195 = scalar_lea.sflag [#allocation7], %s194
          %s196 = sand.u32 %s77, 1
          %s197 = smul.addr %s196, 3584
          %s198 = scalar_lea.vmem [#allocation6], %s197
          %s199 = smul.u32 224, %s27
          %s200 = smul.u32 4, %s26
          %202 = vsyncadd %s195, 0
          %s203 = smul.addr %s199, 8
          %s204 = sadd.s32 %s200, %s203
          %s205 = smul.addr %s204, 4
          %s206 = scalar_lea.hbm %s1, %s205
          %s207 = sshll.u32 %s206, 4
          %s208 = int_to_ptr.hbm [resolvable:$true] %s207
          %s209 = sshll.u32 %s198, 4
          %s210 = int_to_ptr.vmem [resolvable:$true] %s209
          %215 = dma.hbm_to_vmem [thread:$0]  %s208, 57344, %s210, %s195, 512, 256, 16
        $region24: #{tpu_custom_call.1} parent=15 // pred_fallthru
          _
        // Predicated region
        $region25: #{tpu_custom_call.1} parent=15 // pred_check
          %p216 = pneg %p113
        $region26: #{tpu_custom_call.1} parent=15 // pred_check_branch
          %218 = sbr.rel (%p216) target = $region28
        $region27: #{tpu_custom_call.1} parent=15 // pred_region
          %s219 = sand.u32 %s18, 1
          %s220 = scalar_lea.sflag [#allocation7], %s219
          %s221 = sand.u32 %s103, 1
          %s222 = smul.addr %s221, 4
          %s223 = scalar_lea.vmem [#allocation8], %s222
          %s224 = smul.u32 4, %s26
          %226 = vsyncadd %s220, 0
          %s227 = scalar_lea.hbm %s2, %s224
          %s229 = sshll.u32 %s227, 4
          %s230 = int_to_ptr.hbm [resolvable:$true] %s229
          %s231 = sshll.u32 %s223, 4
          %s232 = int_to_ptr.vmem [resolvable:$true] %s231
          %234 = dma.hbm_to_vmem [thread:$0]  %s230, 64, %s232, %s220
        $region28: #{tpu_custom_call.1} parent=15 // pred_fallthru
          _
      $region16: #{tpu_custom_call.1} parent=5 // pred_fallthru
        _
      %p235 = scmp.le.s32.totalorder 1, %s18
      %p236 = scmp.lt.s32.totalorder %s18, 15
      %p237 = pnand %p235, %p236
      %p238 = pneg %p237
      // Predicated region
      $region29: #{tpu_custom_call.1} parent=5 // pred_check
        _
      $region30: #{tpu_custom_call.1} parent=5 // pred_check_branch
        %240 = sbr.rel (%p237) target = $region32
      $region31: #{tpu_custom_call.1} parent=5 // pred_region
        %s241 = ssub.s32 %s18, 1
        %s242 = sand.u32 %s52, 1
        %s243 = scalar_lea.sflag [#allocation4], %s242
        %s244 = sand.u32 %s52, 1
        %s245 = smul.addr %s244, 896
        %s246 = scalar_lea.vmem [#allocation3], %s245
        // Predicated region
        $region33: #{tpu_custom_call.1} parent=31 // pred_check
          %p247 = pneg %p65
        $region34: #{tpu_custom_call.1} parent=31 // pred_check_branch
          %249 = sbr.rel (%p247) target = $region36
        $region35: #{tpu_custom_call.1} parent=31 // pred_region
          %251 = dma.done %s243, 14336
        $region36: #{tpu_custom_call.1} parent=31 // pred_fallthru
          _
        %s252 = sand.u32 %s23, 1
        %s253 = scalar_lea.sflag [#allocation7], %s252
        %s254 = sand.u32 %s80, 1
        %s255 = smul.addr %s254, 3584
        %s256 = scalar_lea.vmem [#allocation6], %s255
        // Predicated region
        $region37: #{tpu_custom_call.1} parent=31 // pred_check
          %p257 = pneg %p93
        $region38: #{tpu_custom_call.1} parent=31 // pred_check_branch
          %259 = sbr.rel (%p257) target = $region40
        $region39: #{tpu_custom_call.1} parent=31 // pred_region
          %261 = dma.done %s253, 57344
        $region40: #{tpu_custom_call.1} parent=31 // pred_fallthru
          _
        %s262 = sand.u32 %s23, 1
        %s263 = scalar_lea.sflag [#allocation7], %s262
        %s264 = sand.u32 %s106, 1
        %s265 = smul.addr %s264, 4
        %s266 = scalar_lea.vmem [#allocation8], %s265
        // Predicated region
        $region41: #{tpu_custom_call.1} parent=31 // pred_check
          %p267 = pneg %p119
        $region42: #{tpu_custom_call.1} parent=31 // pred_check_branch
          %269 = sbr.rel (%p267) target = $region44
        $region43: #{tpu_custom_call.1} parent=31 // pred_region
          %271 = dma.done %s263, 64
        $region44: #{tpu_custom_call.1} parent=31 // pred_fallthru
          _
        %s272 = sand.u32 %s52, 1
        %s273 = scalar_lea.sflag [#allocation4], %s272
        %s274 = sand.u32 %s52, 1
        %s275 = smul.addr %s274, 896
        %s276 = scalar_lea.vmem [#allocation3], %s275
        %p277 = pneg %p65
        %p278 = pneg %p62
        %s279 = sand.u32 %s23, 1
        %s280 = scalar_lea.sflag [#allocation7], %s279
        %s281 = sand.u32 %s80, 1
        %s282 = smul.addr %s281, 3584
        %s283 = scalar_lea.vmem [#allocation6], %s282
        %p284 = pneg %p93
        %p285 = pneg %p90
        %s286 = sand.u32 %s23, 1
        %s287 = scalar_lea.sflag [#allocation7], %s286
        %s288 = sand.u32 %s106, 1
        %s289 = smul.addr %s288, 4
        %s290 = scalar_lea.vmem [#allocation8], %s289
        %p291 = pneg %p119
        %p292 = pneg %p116
        %p293 = pneg %p147
        %p294 = pneg %p144
        %s295 = sand.u32 %s134, 1
        %s296 = scalar_lea.sflag [#allocation5], %s295
        %s297 = sand.u32 %s134, 1
        %s298 = smul.addr %s297, 256
        %s299 = scalar_lea.vmem [#allocation9], %s298
        %s300 = smul.u32 16, %s28
        %s301 = smul.u32 14, %s30
        %s302 = smul.u32 224, %s30
        %s303 = smul.u32 4, %s29
        %s304 = smul.u32 4, %s29
        %s305 = smul.u32 16, %s28
        %s306 = smul.u32 4, %s29
        %p307 = scmp.eq.s32.totalorder %s30, 0
        // Predicated region
        $region45: #{tpu_custom_call.1} parent=31 // pred_check
          %p308 = pneg %p307
        $region46: #{tpu_custom_call.1} parent=31 // pred_check_branch
          %310 = sbr.rel (%p308) target = $region48
        $region47: #{tpu_custom_call.1} parent=31 // pred_region
          %311 = vst [vmem:[#allocation2] sm:$0xff] 0.0
          %312 = vst [vmem:[#allocation2 + $0x8] sm:$0xff] 0.0
          %313 = vst [vmem:[#allocation2 + $0x10] sm:$0xff] 0.0
          %314 = vst [vmem:[#allocation2 + $0x18] sm:$0xff] 0.0
          %315 = vst [vmem:[#allocation2 + $0x20] sm:$0xff] 0.0
          %316 = vst [vmem:[#allocation2 + $0x28] sm:$0xff] 0.0
          %317 = vst [vmem:[#allocation2 + $0x30] sm:$0xff] 0.0
          %318 = vst [vmem:[#allocation2 + $0x38] sm:$0xff] 0.0
          %319 = vst [vmem:[#allocation2 + $0x40] sm:$0xff] 0.0
          %320 = vst [vmem:[#allocation2 + $0x48] sm:$0xff] 0.0
          %321 = vst [vmem:[#allocation2 + $0x50] sm:$0xff] 0.0
          %322 = vst [vmem:[#allocation2 + $0x58] sm:$0xff] 0.0
          %323 = vst [vmem:[#allocation2 + $0x60] sm:$0xff] 0.0
          %324 = vst [vmem:[#allocation2 + $0x68] sm:$0xff] 0.0
          %325 = vst [vmem:[#allocation2 + $0x70] sm:$0xff] 0.0
          %326 = vst [vmem:[#allocation2 + $0x78] sm:$0xff] 0.0
          %327 = vst [vmem:[#allocation2 + $0x80] sm:$0xff] 0.0
          %328 = vst [vmem:[#allocation2 + $0x88] sm:$0xff] 0.0
          %329 = vst [vmem:[#allocation2 + $0x90] sm:$0xff] 0.0
          %330 = vst [vmem:[#allocation2 + $0x98] sm:$0xff] 0.0
          %331 = vst [vmem:[#allocation2 + $0xa0] sm:$0xff] 0.0
          %332 = vst [vmem:[#allocation2 + $0xa8] sm:$0xff] 0.0
          %333 = vst [vmem:[#allocation2 + $0xb0] sm:$0xff] 0.0
          %334 = vst [vmem:[#allocation2 + $0xb8] sm:$0xff] 0.0
          %335 = vst [vmem:[#allocation2 + $0xc0] sm:$0xff] 0.0
          %336 = vst [vmem:[#allocation2 + $0xc8] sm:$0xff] 0.0
          %337 = vst [vmem:[#allocation2 + $0xd0] sm:$0xff] 0.0
          %338 = vst [vmem:[#allocation2 + $0xd8] sm:$0xff] 0.0
          %339 = vst [vmem:[#allocation2 + $0xe0] sm:$0xff] 0.0
          %340 = vst [vmem:[#allocation2 + $0xe8] sm:$0xff] 0.0
          %341 = vst [vmem:[#allocation2 + $0xf0] sm:$0xff] 0.0
          %342 = vst [vmem:[#allocation2 + $0xf8] sm:$0xff] 0.0
          %343 = vst [vmem:[#allocation2 + $0x100] sm:$0xff] 0.0
          %344 = vst [vmem:[#allocation2 + $0x108] sm:$0xff] 0.0
          %345 = vst [vmem:[#allocation2 + $0x110] sm:$0xff] 0.0
          %346 = vst [vmem:[#allocation2 + $0x118] sm:$0xff] 0.0
          %347 = vst [vmem:[#allocation2 + $0x120] sm:$0xff] 0.0
          %348 = vst [vmem:[#allocation2 + $0x128] sm:$0xff] 0.0
          %349 = vst [vmem:[#allocation2 + $0x130] sm:$0xff] 0.0
          %350 = vst [vmem:[#allocation2 + $0x138] sm:$0xff] 0.0
          %351 = vst [vmem:[#allocation2 + $0x140] sm:$0xff] 0.0
          %352 = vst [vmem:[#allocation2 + $0x148] sm:$0xff] 0.0
          %353 = vst [vmem:[#allocation2 + $0x150] sm:$0xff] 0.0
          %354 = vst [vmem:[#allocation2 + $0x158] sm:$0xff] 0.0
          %355 = vst [vmem:[#allocation2 + $0x160] sm:$0xff] 0.0
          %356 = vst [vmem:[#allocation2 + $0x168] sm:$0xff] 0.0
          %357 = vst [vmem:[#allocation2 + $0x170] sm:$0xff] 0.0
          %358 = vst [vmem:[#allocation2 + $0x178] sm:$0xff] 0.0
          %359 = vst [vmem:[#allocation2 + $0x180] sm:$0xff] 0.0
          %360 = vst [vmem:[#allocation2 + $0x188] sm:$0xff] 0.0
          %361 = vst [vmem:[#allocation2 + $0x190] sm:$0xff] 0.0
          %362 = vst [vmem:[#allocation2 + $0x198] sm:$0xff] 0.0
          %363 = vst [vmem:[#allocation2 + $0x1a0] sm:$0xff] 0.0
          %364 = vst [vmem:[#allocation2 + $0x1a8] sm:$0xff] 0.0
          %365 = vst [vmem:[#allocation2 + $0x1b0] sm:$0xff] 0.0
          %366 = vst [vmem:[#allocation2 + $0x1b8] sm:$0xff] 0.0
          %367 = vst [vmem:[#allocation2 + $0x1c0] sm:$0xff] 0.0
          %368 = vst [vmem:[#allocation2 + $0x1c8] sm:$0xff] 0.0
          %369 = vst [vmem:[#allocation2 + $0x1d0] sm:$0xff] 0.0
          %370 = vst [vmem:[#allocation2 + $0x1d8] sm:$0xff] 0.0
          %371 = vst [vmem:[#allocation2 + $0x1e0] sm:$0xff] 0.0
          %372 = vst [vmem:[#allocation2 + $0x1e8] sm:$0xff] 0.0
          %373 = vst [vmem:[#allocation2 + $0x1f0] sm:$0xff] 0.0
          %374 = vst [vmem:[#allocation2 + $0x1f8] sm:$0xff] 0.0
        $region48: #{tpu_custom_call.1} parent=31 // pred_fallthru
          _
        %v375 = vld [vmem:[#allocation2] sm:$0xff]
        %v376 = vld [vmem:[#allocation2 + $0x8] sm:$0xff]
        %v377 = vld [vmem:[#allocation2 + $0x10] sm:$0xff]
        %v378 = vld [vmem:[#allocation2 + $0x18] sm:$0xff]
        %v379 = vld [vmem:[#allocation2 + $0x20] sm:$0xff]
        %v380 = vld [vmem:[#allocation2 + $0x28] sm:$0xff]
        %v381 = vld [vmem:[#allocation2 + $0x30] sm:$0xff]
        %v382 = vld [vmem:[#allocation2 + $0x38] sm:$0xff]
        %v383 = vld [vmem:[#allocation2 + $0x40] sm:$0xff]
        %v384 = vld [vmem:[#allocation2 + $0x48] sm:$0xff]
        %v385 = vld [vmem:[#allocation2 + $0x50] sm:$0xff]
        %v386 = vld [vmem:[#allocation2 + $0x58] sm:$0xff]
        %v387 = vld [vmem:[#allocation2 + $0x60] sm:$0xff]
        %v388 = vld [vmem:[#allocation2 + $0x68] sm:$0xff]
        %v389 = vld [vmem:[#allocation2 + $0x70] sm:$0xff]
        %v390 = vld [vmem:[#allocation2 + $0x78] sm:$0xff]
        %v391 = vld [vmem:[#allocation2 + $0x80] sm:$0xff]
        %v392 = vld [vmem:[#allocation2 + $0x88] sm:$0xff]
        %v393 = vld [vmem:[#allocation2 + $0x90] sm:$0xff]
        %v394 = vld [vmem:[#allocation2 + $0x98] sm:$0xff]
        %v395 = vld [vmem:[#allocation2 + $0xa0] sm:$0xff]
        %v396 = vld [vmem:[#allocation2 + $0xa8] sm:$0xff]
        %v397 = vld [vmem:[#allocation2 + $0xb0] sm:$0xff]
        %v398 = vld [vmem:[#allocation2 + $0xb8] sm:$0xff]
        %v399 = vld [vmem:[#allocation2 + $0xc0] sm:$0xff]
        %v400 = vld [vmem:[#allocation2 + $0xc8] sm:$0xff]
        %v401 = vld [vmem:[#allocation2 + $0xd0] sm:$0xff]
        %v402 = vld [vmem:[#allocation2 + $0xd8] sm:$0xff]
        %v403 = vld [vmem:[#allocation2 + $0xe0] sm:$0xff]
        %v404 = vld [vmem:[#allocation2 + $0xe8] sm:$0xff]
        %v405 = vld [vmem:[#allocation2 + $0xf0] sm:$0xff]
        %v406 = vld [vmem:[#allocation2 + $0xf8] sm:$0xff]
        %v407 = vld [vmem:[#allocation2 + $0x100] sm:$0xff]
        %v408 = vld [vmem:[#allocation2 + $0x108] sm:$0xff]
        %v409 = vld [vmem:[#allocation2 + $0x110] sm:$0xff]
        %v410 = vld [vmem:[#allocation2 + $0x118] sm:$0xff]
        %v411 = vld [vmem:[#allocation2 + $0x120] sm:$0xff]
        %v412 = vld [vmem:[#allocation2 + $0x128] sm:$0xff]
        %v413 = vld [vmem:[#allocation2 + $0x130] sm:$0xff]
        %v414 = vld [vmem:[#allocation2 + $0x138] sm:$0xff]
        %v415 = vld [vmem:[#allocation2 + $0x140] sm:$0xff]
        %v416 = vld [vmem:[#allocation2 + $0x148] sm:$0xff]
        %v417 = vld [vmem:[#allocation2 + $0x150] sm:$0xff]
        %v418 = vld [vmem:[#allocation2 + $0x158] sm:$0xff]
        %v419 = vld [vmem:[#allocation2 + $0x160] sm:$0xff]
        %v420 = vld [vmem:[#allocation2 + $0x168] sm:$0xff]
        %v421 = vld [vmem:[#allocation2 + $0x170] sm:$0xff]
        %v422 = vld [vmem:[#allocation2 + $0x178] sm:$0xff]
        %v423 = vld [vmem:[#allocation2 + $0x180] sm:$0xff]
        %v424 = vld [vmem:[#allocation2 + $0x188] sm:$0xff]
        %v425 = vld [vmem:[#allocation2 + $0x190] sm:$0xff]
        %v426 = vld [vmem:[#allocation2 + $0x198] sm:$0xff]
        %v427 = vld [vmem:[#allocation2 + $0x1a0] sm:$0xff]
        %v428 = vld [vmem:[#allocation2 + $0x1a8] sm:$0xff]
        %v429 = vld [vmem:[#allocation2 + $0x1b0] sm:$0xff]
        %v430 = vld [vmem:[#allocation2 + $0x1b8] sm:$0xff]
        %v431 = vld [vmem:[#allocation2 + $0x1c0] sm:$0xff]
        %v432 = vld [vmem:[#allocation2 + $0x1c8] sm:$0xff]
        %v433 = vld [vmem:[#allocation2 + $0x1d0] sm:$0xff]
        %v434 = vld [vmem:[#allocation2 + $0x1d8] sm:$0xff]
        %v435 = vld [vmem:[#allocation2 + $0x1e0] sm:$0xff]
        %v436 = vld [vmem:[#allocation2 + $0x1e8] sm:$0xff]
        %v437 = vld [vmem:[#allocation2 + $0x1f0] sm:$0xff]
        %v438 = vld [vmem:[#allocation2 + $0x1f8] sm:$0xff]
        %v439 = vld [vmem:[%s246] sm:$0xff]
        %v440 = vld [vmem:[%s246 + $0x8] sm:$0xff]
        %v441 = vld [vmem:[%s246 + $0x10] sm:$0xff]
        %v442 = vld [vmem:[%s246 + $0x18] sm:$0xff]
        %v443 = vld [vmem:[%s246 + $0x20] sm:$0xff]
        %v444 = vld [vmem:[%s246 + $0x28] sm:$0xff]
        %v445 = vld [vmem:[%s246 + $0x30] sm:$0xff]
        %v446 = vld [vmem:[%s246 + $0x38] sm:$0xff]
        %v447 = vld [vmem:[%s246 + $0x40] sm:$0xff]
        %v448 = vld [vmem:[%s246 + $0x48] sm:$0xff]
        %v449 = vld [vmem:[%s246 + $0x50] sm:$0xff]
        %v450 = vld [vmem:[%s246 + $0x58] sm:$0xff]
        %v451 = vld [vmem:[%s246 + $0x60] sm:$0xff]
        %v452 = vld [vmem:[%s246 + $0x68] sm:$0xff]
        %v453 = vld [vmem:[%s246 + $0x70] sm:$0xff]
        %v454 = vld [vmem:[%s246 + $0x78] sm:$0xff]
        %v455 = vld [vmem:[%s246 + $0x80] sm:$0xff]
        %v456 = vld [vmem:[%s246 + $0x88] sm:$0xff]
        %v457 = vld [vmem:[%s246 + $0x90] sm:$0xff]
        %v458 = vld [vmem:[%s246 + $0x98] sm:$0xff]
        %v459 = vld [vmem:[%s246 + $0xa0] sm:$0xff]
        %v460 = vld [vmem:[%s246 + $0xa8] sm:$0xff]
        %v461 = vld [vmem:[%s246 + $0xb0] sm:$0xff]
        %v462 = vld [vmem:[%s246 + $0xb8] sm:$0xff]
        %v463 = vld [vmem:[%s246 + $0xc0] sm:$0xff]
        %v464 = vld [vmem:[%s246 + $0xc8] sm:$0xff]
        %v465 = vld [vmem:[%s246 + $0xd0] sm:$0xff]
        %v466 = vld [vmem:[%s246 + $0xd8] sm:$0xff]
        %v467 = vld [vmem:[%s246 + $0xe0] sm:$0xff]
        %v468 = vld [vmem:[%s246 + $0xe8] sm:$0xff]
        %v469 = vld [vmem:[%s246 + $0xf0] sm:$0xff]
        %v470 = vld [vmem:[%s246 + $0xf8] sm:$0xff]
        %v471 = vld [vmem:[%s246 + $0x100] sm:$0xff]
        %v472 = vld [vmem:[%s246 + $0x108] sm:$0xff]
        %v473 = vld [vmem:[%s246 + $0x110] sm:$0xff]
        %v474 = vld [vmem:[%s246 + $0x118] sm:$0xff]
        %v475 = vld [vmem:[%s246 + $0x120] sm:$0xff]
        %v476 = vld [vmem:[%s246 + $0x128] sm:$0xff]
        %v477 = vld [vmem:[%s246 + $0x130] sm:$0xff]
        %v478 = vld [vmem:[%s246 + $0x138] sm:$0xff]
        %v479 = vld [vmem:[%s246 + $0x140] sm:$0xff]
        %v480 = vld [vmem:[%s246 + $0x148] sm:$0xff]
        %v481 = vld [vmem:[%s246 + $0x150] sm:$0xff]
        %v482 = vld [vmem:[%s246 + $0x158] sm:$0xff]
        %v483 = vld [vmem:[%s246 + $0x160] sm:$0xff]
        %v484 = vld [vmem:[%s246 + $0x168] sm:$0xff]
        %v485 = vld [vmem:[%s246 + $0x170] sm:$0xff]
        %v486 = vld [vmem:[%s246 + $0x178] sm:$0xff]
        %v487 = vld [vmem:[%s246 + $0x180] sm:$0xff]
        %v488 = vld [vmem:[%s246 + $0x188] sm:$0xff]
        %v489 = vld [vmem:[%s246 + $0x190] sm:$0xff]
        %v490 = vld [vmem:[%s246 + $0x198] sm:$0xff]
        %v491 = vld [vmem:[%s246 + $0x1a0] sm:$0xff]
        %v492 = vld [vmem:[%s246 + $0x1a8] sm:$0xff]
        %v493 = vld [vmem:[%s246 + $0x1b0] sm:$0xff]
        %v494 = vld [vmem:[%s246 + $0x1b8] sm:$0xff]
        %v495 = vld [vmem:[%s246 + $0x1c0] sm:$0xff]
        %v496 = vld [vmem:[%s246 + $0x1c8] sm:$0xff]
        %v497 = vld [vmem:[%s246 + $0x1d0] sm:$0xff]
        %v498 = vld [vmem:[%s246 + $0x1d8] sm:$0xff]
        %v499 = vld [vmem:[%s246 + $0x1e0] sm:$0xff]
        %v500 = vld [vmem:[%s246 + $0x1e8] sm:$0xff]
        %v501 = vld [vmem:[%s246 + $0x1f0] sm:$0xff]
        %v502 = vld [vmem:[%s246 + $0x1f8] sm:$0xff]
        %v503 = vld [vmem:[%s246 + $0x200] sm:$0xff]
        %v504 = vld [vmem:[%s246 + $0x208] sm:$0xff]
        %v505 = vld [vmem:[%s246 + $0x210] sm:$0xff]
        %v506 = vld [vmem:[%s246 + $0x218] sm:$0xff]
        %v507 = vld [vmem:[%s246 + $0x220] sm:$0xff]
        %v508 = vld [vmem:[%s246 + $0x228] sm:$0xff]
        %v509 = vld [vmem:[%s246 + $0x230] sm:$0xff]
        %v510 = vld [vmem:[%s246 + $0x238] sm:$0xff]
        %v511 = vld [vmem:[%s246 + $0x240] sm:$0xff]
        %v512 = vld [vmem:[%s246 + $0x248] sm:$0xff]
        %v513 = vld [vmem:[%s246 + $0x250] sm:$0xff]
        %v514 = vld [vmem:[%s246 + $0x258] sm:$0xff]
        %v515 = vld [vmem:[%s246 + $0x260] sm:$0xff]
        %v516 = vld [vmem:[%s246 + $0x268] sm:$0xff]
        %v517 = vld [vmem:[%s246 + $0x270] sm:$0xff]
        %v518 = vld [vmem:[%s246 + $0x278] sm:$0xff]
        %v519 = vld [vmem:[%s246 + $0x280] sm:$0xff]
        %v520 = vld [vmem:[%s246 + $0x288] sm:$0xff]
        %v521 = vld [vmem:[%s246 + $0x290] sm:$0xff]
        %v522 = vld [vmem:[%s246 + $0x298] sm:$0xff]
        %v523 = vld [vmem:[%s246 + $0x2a0] sm:$0xff]
        %v524 = vld [vmem:[%s246 + $0x2a8] sm:$0xff]
        %v525 = vld [vmem:[%s246 + $0x2b0] sm:$0xff]
        %v526 = vld [vmem:[%s246 + $0x2b8] sm:$0xff]
        %v527 = vld [vmem:[%s246 + $0x2c0] sm:$0xff]
        %v528 = vld [vmem:[%s246 + $0x2c8] sm:$0xff]
        %v529 = vld [vmem:[%s246 + $0x2d0] sm:$0xff]
        %v530 = vld [vmem:[%s246 + $0x2d8] sm:$0xff]
        %v531 = vld [vmem:[%s246 + $0x2e0] sm:$0xff]
        %v532 = vld [vmem:[%s246 + $0x2e8] sm:$0xff]
        %v533 = vld [vmem:[%s246 + $0x2f0] sm:$0xff]
        %v534 = vld [vmem:[%s246 + $0x2f8] sm:$0xff]
        %v535 = vld [vmem:[%s246 + $0x300] sm:$0xff]
        %v536 = vld [vmem:[%s246 + $0x308] sm:$0xff]
        %v537 = vld [vmem:[%s246 + $0x310] sm:$0xff]
        %v538 = vld [vmem:[%s246 + $0x318] sm:$0xff]
        %v539 = vld [vmem:[%s246 + $0x320] sm:$0xff]
        %v540 = vld [vmem:[%s246 + $0x328] sm:$0xff]
        %v541 = vld [vmem:[%s246 + $0x330] sm:$0xff]
        %v542 = vld [vmem:[%s246 + $0x338] sm:$0xff]
        %v543 = vld [vmem:[%s246 + $0x340] sm:$0xff]
        %v544 = vld [vmem:[%s246 + $0x348] sm:$0xff]
        %v545 = vld [vmem:[%s246 + $0x350] sm:$0xff]
        %v546 = vld [vmem:[%s246 + $0x358] sm:$0xff]
        %v547 = vld [vmem:[%s246 + $0x360] sm:$0xff]
        %v548 = vld [vmem:[%s246 + $0x368] sm:$0xff]
        %v549 = vld [vmem:[%s246 + $0x370] sm:$0xff]
        %v550 = vld [vmem:[%s246 + $0x378] sm:$0xff]
        %v551 = vld [vmem:[%s256] sm:$0xff]
        %v552 = vld [vmem:[%s256 + $0x8] sm:$0xff]
        %v553 = vld [vmem:[%s256 + $0x10] sm:$0xff]
        %v554 = vld [vmem:[%s256 + $0x18] sm:$0xff]
        %v555 = vld [vmem:[%s256 + $0x20] sm:$0xff]
        %v556 = vld [vmem:[%s256 + $0x28] sm:$0xff]
        %v557 = vld [vmem:[%s256 + $0x30] sm:$0xff]
        %v558 = vld [vmem:[%s256 + $0x38] sm:$0xff]
        %v559 = vld [vmem:[%s256 + $0x40] sm:$0xff]
        %v560 = vld [vmem:[%s256 + $0x48] sm:$0xff]
        %v561 = vld [vmem:[%s256 + $0x50] sm:$0xff]
        %v562 = vld [vmem:[%s256 + $0x58] sm:$0xff]
        %v563 = vld [vmem:[%s256 + $0x60] sm:$0xff]
        %v564 = vld [vmem:[%s256 + $0x68] sm:$0xff]
        %v565 = vld [vmem:[%s256 + $0x70] sm:$0xff]
        %v566 = vld [vmem:[%s256 + $0x78] sm:$0xff]
        %v567 = vld [vmem:[%s256 + $0x80] sm:$0xff]
        %v568 = vld [vmem:[%s256 + $0x88] sm:$0xff]
        %v569 = vld [vmem:[%s256 + $0x90] sm:$0xff]
        %v570 = vld [vmem:[%s256 + $0x98] sm:$0xff]
        %v571 = vld [vmem:[%s256 + $0xa0] sm:$0xff]
        %v572 = vld [vmem:[%s256 + $0xa8] sm:$0xff]
        %v573 = vld [vmem:[%s256 + $0xb0] sm:$0xff]
        %v574 = vld [vmem:[%s256 + $0xb8] sm:$0xff]
        %v575 = vld [vmem:[%s256 + $0xc0] sm:$0xff]
        %v576 = vld [vmem:[%s256 + $0xc8] sm:$0xff]
        %v577 = vld [vmem:[%s256 + $0xd0] sm:$0xff]
        %v578 = vld [vmem:[%s256 + $0xd8] sm:$0xff]
        %v579 = vld [vmem:[%s256 + $0xe0] sm:$0xff]
        %v580 = vld [vmem:[%s256 + $0xe8] sm:$0xff]
        %v581 = vld [vmem:[%s256 + $0xf0] sm:$0xff]
        %v582 = vld [vmem:[%s256 + $0xf8] sm:$0xff]
        %v583 = vld [vmem:[%s256 + $0x100] sm:$0xff]
        %v584 = vld [vmem:[%s256 + $0x108] sm:$0xff]
        %v585 = vld [vmem:[%s256 + $0x110] sm:$0xff]
        %v586 = vld [vmem:[%s256 + $0x118] sm:$0xff]
        %v587 = vld [vmem:[%s256 + $0x120] sm:$0xff]
        %v588 = vld [vmem:[%s256 + $0x128] sm:$0xff]
        %v589 = vld [vmem:[%s256 + $0x130] sm:$0xff]
        %v590 = vld [vmem:[%s256 + $0x138] sm:$0xff]
        %v591 = vld [vmem:[%s256 + $0x140] sm:$0xff]
        %v592 = vld [vmem:[%s256 + $0x148] sm:$0xff]
        %v593 = vld [vmem:[%s256 + $0x150] sm:$0xff]
        %v594 = vld [vmem:[%s256 + $0x158] sm:$0xff]
        %v595 = vld [vmem:[%s256 + $0x160] sm:$0xff]
        %v596 = vld [vmem:[%s256 + $0x168] sm:$0xff]
        %v597 = vld [vmem:[%s256 + $0x170] sm:$0xff]
        %v598 = vld [vmem:[%s256 + $0x178] sm:$0xff]
        %v599 = vld [vmem:[%s256 + $0x180] sm:$0xff]
        %v600 = vld [vmem:[%s256 + $0x188] sm:$0xff]
        %v601 = vld [vmem:[%s256 + $0x190] sm:$0xff]
        %v602 = vld [vmem:[%s256 + $0x198] sm:$0xff]
        %v603 = vld [vmem:[%s256 + $0x1a0] sm:$0xff]
        %v604 = vld [vmem:[%s256 + $0x1a8] sm:$0xff]
        %v605 = vld [vmem:[%s256 + $0x1b0] sm:$0xff]
        %v606 = vld [vmem:[%s256 + $0x1b8] sm:$0xff]
        %v607 = vld [vmem:[%s256 + $0x1c0] sm:$0xff]
        %v608 = vld [vmem:[%s256 + $0x1c8] sm:$0xff]
        %v609 = vld [vmem:[%s256 + $0x1d0] sm:$0xff]
        %v610 = vld [vmem:[%s256 + $0x1d8] sm:$0xff]
        %v611 = vld [vmem:[%s256 + $0x1e0] sm:$0xff]
        %v612 = vld [vmem:[%s256 + $0x1e8] sm:$0xff]
        %v613 = vld [vmem:[%s256 + $0x1f0] sm:$0xff]
        %v614 = vld [vmem:[%s256 + $0x1f8] sm:$0xff]
        %v615 = vld [vmem:[%s256 + $0x200] sm:$0xff]
        %v616 = vld [vmem:[%s256 + $0x208] sm:$0xff]
        %v617 = vld [vmem:[%s256 + $0x210] sm:$0xff]
        %v618 = vld [vmem:[%s256 + $0x218] sm:$0xff]
        %v619 = vld [vmem:[%s256 + $0x220] sm:$0xff]
        %v620 = vld [vmem:[%s256 + $0x228] sm:$0xff]
        %v621 = vld [vmem:[%s256 + $0x230] sm:$0xff]
        %v622 = vld [vmem:[%s256 + $0x238] sm:$0xff]
        %v623 = vld [vmem:[%s256 + $0x240] sm:$0xff]
        %v624 = vld [vmem:[%s256 + $0x248] sm:$0xff]
        %v625 = vld [vmem:[%s256 + $0x250] sm:$0xff]
        %v626 = vld [vmem:[%s256 + $0x258] sm:$0xff]
        %v627 = vld [vmem:[%s256 + $0x260] sm:$0xff]
        %v628 = vld [vmem:[%s256 + $0x268] sm:$0xff]
        %v629 = vld [vmem:[%s256 + $0x270] sm:$0xff]
        %v630 = vld [vmem:[%s256 + $0x278] sm:$0xff]
        %v631 = vld [vmem:[%s256 + $0x280] sm:$0xff]
        %v632 = vld [vmem:[%s256 + $0x288] sm:$0xff]
        %v633 = vld [vmem:[%s256 + $0x290] sm:$0xff]
        %v634 = vld [vmem:[%s256 + $0x298] sm:$0xff]
        %v635 = vld [vmem:[%s256 + $0x2a0] sm:$0xff]
        %v636 = vld [vmem:[%s256 + $0x2a8] sm:$0xff]
        %v637 = vld [vmem:[%s256 + $0x2b0] sm:$0xff]
        %v638 = vld [vmem:[%s256 + $0x2b8] sm:$0xff]
        %v639 = vld [vmem:[%s256 + $0x2c0] sm:$0xff]
        %v640 = vld [vmem:[%s256 + $0x2c8] sm:$0xff]
        %v641 = vld [vmem:[%s256 + $0x2d0] sm:$0xff]
        %v642 = vld [vmem:[%s256 + $0x2d8] sm:$0xff]
        %v643 = vld [vmem:[%s256 + $0x2e0] sm:$0xff]
        %v644 = vld [vmem:[%s256 + $0x2e8] sm:$0xff]
        %v645 = vld [vmem:[%s256 + $0x2f0] sm:$0xff]
        %v646 = vld [vmem:[%s256 + $0x2f8] sm:$0xff]
        %v647 = vld [vmem:[%s256 + $0x300] sm:$0xff]
        %v648 = vld [vmem:[%s256 + $0x308] sm:$0xff]
        %v649 = vld [vmem:[%s256 + $0x310] sm:$0xff]
        %v650 = vld [vmem:[%s256 + $0x318] sm:$0xff]
        %v651 = vld [vmem:[%s256 + $0x320] sm:$0xff]
        %v652 = vld [vmem:[%s256 + $0x328] sm:$0xff]
        %v653 = vld [vmem:[%s256 + $0x330] sm:$0xff]
        %v654 = vld [vmem:[%s256 + $0x338] sm:$0xff]
        %v655 = vld [vmem:[%s256 + $0x340] sm:$0xff]
        %v656 = vld [vmem:[%s256 + $0x348] sm:$0xff]
        %v657 = vld [vmem:[%s256 + $0x350] sm:$0xff]
        %v658 = vld [vmem:[%s256 + $0x358] sm:$0xff]
        %v659 = vld [vmem:[%s256 + $0x360] sm:$0xff]
        %v660 = vld [vmem:[%s256 + $0x368] sm:$0xff]
        %v661 = vld [vmem:[%s256 + $0x370] sm:$0xff]
        %v662 = vld [vmem:[%s256 + $0x378] sm:$0xff]
        %v663 = vld [vmem:[%s256 + $0x380] sm:$0xff]
        %v664 = vld [vmem:[%s256 + $0x388] sm:$0xff]
        %v665 = vld [vmem:[%s256 + $0x390] sm:$0xff]
        %v666 = vld [vmem:[%s256 + $0x398] sm:$0xff]
        %v667 = vld [vmem:[%s256 + $0x3a0] sm:$0xff]
        %v668 = vld [vmem:[%s256 + $0x3a8] sm:$0xff]
        %v669 = vld [vmem:[%s256 + $0x3b0] sm:$0xff]
        %v670 = vld [vmem:[%s256 + $0x3b8] sm:$0xff]
        %v671 = vld [vmem:[%s256 + $0x3c0] sm:$0xff]
        %v672 = vld [vmem:[%s256 + $0x3c8] sm:$0xff]
        %v673 = vld [vmem:[%s256 + $0x3d0] sm:$0xff]
        %v674 = vld [vmem:[%s256 + $0x3d8] sm:$0xff]
        %v675 = vld [vmem:[%s256 + $0x3e0] sm:$0xff]
        %v676 = vld [vmem:[%s256 + $0x3e8] sm:$0xff]
        %v677 = vld [vmem:[%s256 + $0x3f0] sm:$0xff]
        %v678 = vld [vmem:[%s256 + $0x3f8] sm:$0xff]
        %v679 = vld [vmem:[%s256 + $0x400] sm:$0xff]
        %v680 = vld [vmem:[%s256 + $0x408] sm:$0xff]
        %v681 = vld [vmem:[%s256 + $0x410] sm:$0xff]
        %v682 = vld [vmem:[%s256 + $0x418] sm:$0xff]
        %v683 = vld [vmem:[%s256 + $0x420] sm:$0xff]
        %v684 = vld [vmem:[%s256 + $0x428] sm:$0xff]
        %v685 = vld [vmem:[%s256 + $0x430] sm:$0xff]
        %v686 = vld [vmem:[%s256 + $0x438] sm:$0xff]
        %v687 = vld [vmem:[%s256 + $0x440] sm:$0xff]
        %v688 = vld [vmem:[%s256 + $0x448] sm:$0xff]
        %v689 = vld [vmem:[%s256 + $0x450] sm:$0xff]
        %v690 = vld [vmem:[%s256 + $0x458] sm:$0xff]
        %v691 = vld [vmem:[%s256 + $0x460] sm:$0xff]
        %v692 = vld [vmem:[%s256 + $0x468] sm:$0xff]
        %v693 = vld [vmem:[%s256 + $0x470] sm:$0xff]
        %v694 = vld [vmem:[%s256 + $0x478] sm:$0xff]
        %v695 = vld [vmem:[%s256 + $0x480] sm:$0xff]
        %v696 = vld [vmem:[%s256 + $0x488] sm:$0xff]
        %v697 = vld [vmem:[%s256 + $0x490] sm:$0xff]
        %v698 = vld [vmem:[%s256 + $0x498] sm:$0xff]
        %v699 = vld [vmem:[%s256 + $0x4a0] sm:$0xff]
        %v700 = vld [vmem:[%s256 + $0x4a8] sm:$0xff]
        %v701 = vld [vmem:[%s256 + $0x4b0] sm:$0xff]
        %v702 = vld [vmem:[%s256 + $0x4b8] sm:$0xff]
        %v703 = vld [vmem:[%s256 + $0x4c0] sm:$0xff]
        %v704 = vld [vmem:[%s256 + $0x4c8] sm:$0xff]
        %v705 = vld [vmem:[%s256 + $0x4d0] sm:$0xff]
        %v706 = vld [vmem:[%s256 + $0x4d8] sm:$0xff]
        %v707 = vld [vmem:[%s256 + $0x4e0] sm:$0xff]
        %v708 = vld [vmem:[%s256 + $0x4e8] sm:$0xff]
        %v709 = vld [vmem:[%s256 + $0x4f0] sm:$0xff]
        %v710 = vld [vmem:[%s256 + $0x4f8] sm:$0xff]
        %v711 = vld [vmem:[%s256 + $0x500] sm:$0xff]
        %v712 = vld [vmem:[%s256 + $0x508] sm:$0xff]
        %v713 = vld [vmem:[%s256 + $0x510] sm:$0xff]
        %v714 = vld [vmem:[%s256 + $0x518] sm:$0xff]
        %v715 = vld [vmem:[%s256 + $0x520] sm:$0xff]
        %v716 = vld [vmem:[%s256 + $0x528] sm:$0xff]
        %v717 = vld [vmem:[%s256 + $0x530] sm:$0xff]
        %v718 = vld [vmem:[%s256 + $0x538] sm:$0xff]
        %v719 = vld [vmem:[%s256 + $0x540] sm:$0xff]
        %v720 = vld [vmem:[%s256 + $0x548] sm:$0xff]
        %v721 = vld [vmem:[%s256 + $0x550] sm:$0xff]
        %v722 = vld [vmem:[%s256 + $0x558] sm:$0xff]
        %v723 = vld [vmem:[%s256 + $0x560] sm:$0xff]
        %v724 = vld [vmem:[%s256 + $0x568] sm:$0xff]
        %v725 = vld [vmem:[%s256 + $0x570] sm:$0xff]
        %v726 = vld [vmem:[%s256 + $0x578] sm:$0xff]
        %v727 = vld [vmem:[%s256 + $0x580] sm:$0xff]
        %v728 = vld [vmem:[%s256 + $0x588] sm:$0xff]
        %v729 = vld [vmem:[%s256 + $0x590] sm:$0xff]
        %v730 = vld [vmem:[%s256 + $0x598] sm:$0xff]
        %v731 = vld [vmem:[%s256 + $0x5a0] sm:$0xff]
        %v732 = vld [vmem:[%s256 + $0x5a8] sm:$0xff]
        %v733 = vld [vmem:[%s256 + $0x5b0] sm:$0xff]
        %v734 = vld [vmem:[%s256 + $0x5b8] sm:$0xff]
        %v735 = vld [vmem:[%s256 + $0x5c0] sm:$0xff]
        %v736 = vld [vmem:[%s256 + $0x5c8] sm:$0xff]
        %v737 = vld [vmem:[%s256 + $0x5d0] sm:$0xff]
        %v738 = vld [vmem:[%s256 + $0x5d8] sm:$0xff]
        %v739 = vld [vmem:[%s256 + $0x5e0] sm:$0xff]
        %v740 = vld [vmem:[%s256 + $0x5e8] sm:$0xff]
        %v741 = vld [vmem:[%s256 + $0x5f0] sm:$0xff]
        %v742 = vld [vmem:[%s256 + $0x5f8] sm:$0xff]
        %v743 = vld [vmem:[%s256 + $0x600] sm:$0xff]
        %v744 = vld [vmem:[%s256 + $0x608] sm:$0xff]
        %v745 = vld [vmem:[%s256 + $0x610] sm:$0xff]
        %v746 = vld [vmem:[%s256 + $0x618] sm:$0xff]
        %v747 = vld [vmem:[%s256 + $0x620] sm:$0xff]
        %v748 = vld [vmem:[%s256 + $0x628] sm:$0xff]
        %v749 = vld [vmem:[%s256 + $0x630] sm:$0xff]
        %v750 = vld [vmem:[%s256 + $0x638] sm:$0xff]
        %v751 = vld [vmem:[%s256 + $0x640] sm:$0xff]
        %v752 = vld [vmem:[%s256 + $0x648] sm:$0xff]
        %v753 = vld [vmem:[%s256 + $0x650] sm:$0xff]
        %v754 = vld [vmem:[%s256 + $0x658] sm:$0xff]
        %v755 = vld [vmem:[%s256 + $0x660] sm:$0xff]
        %v756 = vld [vmem:[%s256 + $0x668] sm:$0xff]
        %v757 = vld [vmem:[%s256 + $0x670] sm:$0xff]
        %v758 = vld [vmem:[%s256 + $0x678] sm:$0xff]
        %v759 = vld [vmem:[%s256 + $0x680] sm:$0xff]
        %v760 = vld [vmem:[%s256 + $0x688] sm:$0xff]
        %v761 = vld [vmem:[%s256 + $0x690] sm:$0xff]
        %v762 = vld [vmem:[%s256 + $0x698] sm:$0xff]
        %v763 = vld [vmem:[%s256 + $0x6a0] sm:$0xff]
        %v764 = vld [vmem:[%s256 + $0x6a8] sm:$0xff]
        %v765 = vld [vmem:[%s256 + $0x6b0] sm:$0xff]
        %v766 = vld [vmem:[%s256 + $0x6b8] sm:$0xff]
        %v767 = vld [vmem:[%s256 + $0x6c0] sm:$0xff]
        %v768 = vld [vmem:[%s256 + $0x6c8] sm:$0xff]
        %v769 = vld [vmem:[%s256 + $0x6d0] sm:$0xff]
        %v770 = vld [vmem:[%s256 + $0x6d8] sm:$0xff]
        %v771 = vld [vmem:[%s256 + $0x6e0] sm:$0xff]
        %v772 = vld [vmem:[%s256 + $0x6e8] sm:$0xff]
        %v773 = vld [vmem:[%s256 + $0x6f0] sm:$0xff]
        %v774 = vld [vmem:[%s256 + $0x6f8] sm:$0xff]
        %v775 = vld [vmem:[%s256 + $0x700] sm:$0xff]
        %v776 = vld [vmem:[%s256 + $0x708] sm:$0xff]
        %v777 = vld [vmem:[%s256 + $0x710] sm:$0xff]
        %v778 = vld [vmem:[%s256 + $0x718] sm:$0xff]
        %v779 = vld [vmem:[%s256 + $0x720] sm:$0xff]
        %v780 = vld [vmem:[%s256 + $0x728] sm:$0xff]
        %v781 = vld [vmem:[%s256 + $0x730] sm:$0xff]
        %v782 = vld [vmem:[%s256 + $0x738] sm:$0xff]
        %v783 = vld [vmem:[%s256 + $0x740] sm:$0xff]
        %v784 = vld [vmem:[%s256 + $0x748] sm:$0xff]
        %v785 = vld [vmem:[%s256 + $0x750] sm:$0xff]
        %v786 = vld [vmem:[%s256 + $0x758] sm:$0xff]
        %v787 = vld [vmem:[%s256 + $0x760] sm:$0xff]
        %v788 = vld [vmem:[%s256 + $0x768] sm:$0xff]
        %v789 = vld [vmem:[%s256 + $0x770] sm:$0xff]
        %v790 = vld [vmem:[%s256 + $0x778] sm:$0xff]
        %v791 = vld [vmem:[%s256 + $0x780] sm:$0xff]
        %v792 = vld [vmem:[%s256 + $0x788] sm:$0xff]
        %v793 = vld [vmem:[%s256 + $0x790] sm:$0xff]
        %v794 = vld [vmem:[%s256 + $0x798] sm:$0xff]
        %v795 = vld [vmem:[%s256 + $0x7a0] sm:$0xff]
        %v796 = vld [vmem:[%s256 + $0x7a8] sm:$0xff]
        %v797 = vld [vmem:[%s256 + $0x7b0] sm:$0xff]
        %v798 = vld [vmem:[%s256 + $0x7b8] sm:$0xff]
        %v799 = vld [vmem:[%s256 + $0x7c0] sm:$0xff]
        %v800 = vld [vmem:[%s256 + $0x7c8] sm:$0xff]
        %v801 = vld [vmem:[%s256 + $0x7d0] sm:$0xff]
        %v802 = vld [vmem:[%s256 + $0x7d8] sm:$0xff]
        %v803 = vld [vmem:[%s256 + $0x7e0] sm:$0xff]
        %v804 = vld [vmem:[%s256 + $0x7e8] sm:$0xff]
        %v805 = vld [vmem:[%s256 + $0x7f0] sm:$0xff]
        %v806 = vld [vmem:[%s256 + $0x7f8] sm:$0xff]
        %v807 = vld [vmem:[%s256 + $0x800] sm:$0xff]
        %v808 = vld [vmem:[%s256 + $0x808] sm:$0xff]
        %v809 = vld [vmem:[%s256 + $0x810] sm:$0xff]
        %v810 = vld [vmem:[%s256 + $0x818] sm:$0xff]
        %v811 = vld [vmem:[%s256 + $0x820] sm:$0xff]
        %v812 = vld [vmem:[%s256 + $0x828] sm:$0xff]
        %v813 = vld [vmem:[%s256 + $0x830] sm:$0xff]
        %v814 = vld [vmem:[%s256 + $0x838] sm:$0xff]
        %v815 = vld [vmem:[%s256 + $0x840] sm:$0xff]
        %v816 = vld [vmem:[%s256 + $0x848] sm:$0xff]
        %v817 = vld [vmem:[%s256 + $0x850] sm:$0xff]
        %v818 = vld [vmem:[%s256 + $0x858] sm:$0xff]
        %v819 = vld [vmem:[%s256 + $0x860] sm:$0xff]
        %v820 = vld [vmem:[%s256 + $0x868] sm:$0xff]
        %v821 = vld [vmem:[%s256 + $0x870] sm:$0xff]
        %v822 = vld [vmem:[%s256 + $0x878] sm:$0xff]
        %v823 = vld [vmem:[%s256 + $0x880] sm:$0xff]
        %v824 = vld [vmem:[%s256 + $0x888] sm:$0xff]
        %v825 = vld [vmem:[%s256 + $0x890] sm:$0xff]
        %v826 = vld [vmem:[%s256 + $0x898] sm:$0xff]
        %v827 = vld [vmem:[%s256 + $0x8a0] sm:$0xff]
        %v828 = vld [vmem:[%s256 + $0x8a8] sm:$0xff]
        %v829 = vld [vmem:[%s256 + $0x8b0] sm:$0xff]
        %v830 = vld [vmem:[%s256 + $0x8b8] sm:$0xff]
        %v831 = vld [vmem:[%s256 + $0x8c0] sm:$0xff]
        %v832 = vld [vmem:[%s256 + $0x8c8] sm:$0xff]
        %v833 = vld [vmem:[%s256 + $0x8d0] sm:$0xff]
        %v834 = vld [vmem:[%s256 + $0x8d8] sm:$0xff]
        %v835 = vld [vmem:[%s256 + $0x8e0] sm:$0xff]
        %v836 = vld [vmem:[%s256 + $0x8e8] sm:$0xff]
        %v837 = vld [vmem:[%s256 + $0x8f0] sm:$0xff]
        %v838 = vld [vmem:[%s256 + $0x8f8] sm:$0xff]
        %v839 = vld [vmem:[%s256 + $0x900] sm:$0xff]
        %v840 = vld [vmem:[%s256 + $0x908] sm:$0xff]
        %v841 = vld [vmem:[%s256 + $0x910] sm:$0xff]
        %v842 = vld [vmem:[%s256 + $0x918] sm:$0xff]
        %v843 = vld [vmem:[%s256 + $0x920] sm:$0xff]
        %v844 = vld [vmem:[%s256 + $0x928] sm:$0xff]
        %v845 = vld [vmem:[%s256 + $0x930] sm:$0xff]
        %v846 = vld [vmem:[%s256 + $0x938] sm:$0xff]
        %v847 = vld [vmem:[%s256 + $0x940] sm:$0xff]
        %v848 = vld [vmem:[%s256 + $0x948] sm:$0xff]
        %v849 = vld [vmem:[%s256 + $0x950] sm:$0xff]
        %v850 = vld [vmem:[%s256 + $0x958] sm:$0xff]
        %v851 = vld [vmem:[%s256 + $0x960] sm:$0xff]
        %v852 = vld [vmem:[%s256 + $0x968] sm:$0xff]
        %v853 = vld [vmem:[%s256 + $0x970] sm:$0xff]
        %v854 = vld [vmem:[%s256 + $0x978] sm:$0xff]
        %v855 = vld [vmem:[%s256 + $0x980] sm:$0xff]
        %v856 = vld [vmem:[%s256 + $0x988] sm:$0xff]
        %v857 = vld [vmem:[%s256 + $0x990] sm:$0xff]
        %v858 = vld [vmem:[%s256 + $0x998] sm:$0xff]
        %v859 = vld [vmem:[%s256 + $0x9a0] sm:$0xff]
        %v860 = vld [vmem:[%s256 + $0x9a8] sm:$0xff]
        %v861 = vld [vmem:[%s256 + $0x9b0] sm:$0xff]
        %v862 = vld [vmem:[%s256 + $0x9b8] sm:$0xff]
        %v863 = vld [vmem:[%s256 + $0x9c0] sm:$0xff]
        %v864 = vld [vmem:[%s256 + $0x9c8] sm:$0xff]
        %v865 = vld [vmem:[%s256 + $0x9d0] sm:$0xff]
        %v866 = vld [vmem:[%s256 + $0x9d8] sm:$0xff]
        %v867 = vld [vmem:[%s256 + $0x9e0] sm:$0xff]
        %v868 = vld [vmem:[%s256 + $0x9e8] sm:$0xff]
        %v869 = vld [vmem:[%s256 + $0x9f0] sm:$0xff]
        %v870 = vld [vmem:[%s256 + $0x9f8] sm:$0xff]
        %v871 = vld [vmem:[%s256 + $0xa00] sm:$0xff]
        %v872 = vld [vmem:[%s256 + $0xa08] sm:$0xff]
        %v873 = vld [vmem:[%s256 + $0xa10] sm:$0xff]
        %v874 = vld [vmem:[%s256 + $0xa18] sm:$0xff]
        %v875 = vld [vmem:[%s256 + $0xa20] sm:$0xff]
        %v876 = vld [vmem:[%s256 + $0xa28] sm:$0xff]
        %v877 = vld [vmem:[%s256 + $0xa30] sm:$0xff]
        %v878 = vld [vmem:[%s256 + $0xa38] sm:$0xff]
        %v879 = vld [vmem:[%s256 + $0xa40] sm:$0xff]
        %v880 = vld [vmem:[%s256 + $0xa48] sm:$0xff]
        %v881 = vld [vmem:[%s256 + $0xa50] sm:$0xff]
        %v882 = vld [vmem:[%s256 + $0xa58] sm:$0xff]
        %v883 = vld [vmem:[%s256 + $0xa60] sm:$0xff]
        %v884 = vld [vmem:[%s256 + $0xa68] sm:$0xff]
        %v885 = vld [vmem:[%s256 + $0xa70] sm:$0xff]
        %v886 = vld [vmem:[%s256 + $0xa78] sm:$0xff]
        %v887 = vld [vmem:[%s256 + $0xa80] sm:$0xff]
        %v888 = vld [vmem:[%s256 + $0xa88] sm:$0xff]
        %v889 = vld [vmem:[%s256 + $0xa90] sm:$0xff]
        %v890 = vld [vmem:[%s256 + $0xa98] sm:$0xff]
        %v891 = vld [vmem:[%s256 + $0xaa0] sm:$0xff]
        %v892 = vld [vmem:[%s256 + $0xaa8] sm:$0xff]
        %v893 = vld [vmem:[%s256 + $0xab0] sm:$0xff]
        %v894 = vld [vmem:[%s256 + $0xab8] sm:$0xff]
        %v895 = vld [vmem:[%s256 + $0xac0] sm:$0xff]
        %v896 = vld [vmem:[%s256 + $0xac8] sm:$0xff]
        %v897 = vld [vmem:[%s256 + $0xad0] sm:$0xff]
        %v898 = vld [vmem:[%s256 + $0xad8] sm:$0xff]
        %v899 = vld [vmem:[%s256 + $0xae0] sm:$0xff]
        %v900 = vld [vmem:[%s256 + $0xae8] sm:$0xff]
        %v901 = vld [vmem:[%s256 + $0xaf0] sm:$0xff]
        %v902 = vld [vmem:[%s256 + $0xaf8] sm:$0xff]
        %v903 = vld [vmem:[%s256 + $0xb00] sm:$0xff]
        %v904 = vld [vmem:[%s256 + $0xb08] sm:$0xff]
        %v905 = vld [vmem:[%s256 + $0xb10] sm:$0xff]
        %v906 = vld [vmem:[%s256 + $0xb18] sm:$0xff]
        %v907 = vld [vmem:[%s256 + $0xb20] sm:$0xff]
        %v908 = vld [vmem:[%s256 + $0xb28] sm:$0xff]
        %v909 = vld [vmem:[%s256 + $0xb30] sm:$0xff]
        %v910 = vld [vmem:[%s256 + $0xb38] sm:$0xff]
        %v911 = vld [vmem:[%s256 + $0xb40] sm:$0xff]
        %v912 = vld [vmem:[%s256 + $0xb48] sm:$0xff]
        %v913 = vld [vmem:[%s256 + $0xb50] sm:$0xff]
        %v914 = vld [vmem:[%s256 + $0xb58] sm:$0xff]
        %v915 = vld [vmem:[%s256 + $0xb60] sm:$0xff]
        %v916 = vld [vmem:[%s256 + $0xb68] sm:$0xff]
        %v917 = vld [vmem:[%s256 + $0xb70] sm:$0xff]
        %v918 = vld [vmem:[%s256 + $0xb78] sm:$0xff]
        %v919 = vld [vmem:[%s256 + $0xb80] sm:$0xff]
        %v920 = vld [vmem:[%s256 + $0xb88] sm:$0xff]
        %v921 = vld [vmem:[%s256 + $0xb90] sm:$0xff]
        %v922 = vld [vmem:[%s256 + $0xb98] sm:$0xff]
        %v923 = vld [vmem:[%s256 + $0xba0] sm:$0xff]
        %v924 = vld [vmem:[%s256 + $0xba8] sm:$0xff]
        %v925 = vld [vmem:[%s256 + $0xbb0] sm:$0xff]
        %v926 = vld [vmem:[%s256 + $0xbb8] sm:$0xff]
        %v927 = vld [vmem:[%s256 + $0xbc0] sm:$0xff]
        %v928 = vld [vmem:[%s256 + $0xbc8] sm:$0xff]
        %v929 = vld [vmem:[%s256 + $0xbd0] sm:$0xff]
        %v930 = vld [vmem:[%s256 + $0xbd8] sm:$0xff]
        %v931 = vld [vmem:[%s256 + $0xbe0] sm:$0xff]
        %v932 = vld [vmem:[%s256 + $0xbe8] sm:$0xff]
        %v933 = vld [vmem:[%s256 + $0xbf0] sm:$0xff]
        %v934 = vld [vmem:[%s256 + $0xbf8] sm:$0xff]
        %v935 = vld [vmem:[%s256 + $0xc00] sm:$0xff]
        %v936 = vld [vmem:[%s256 + $0xc08] sm:$0xff]
        %v937 = vld [vmem:[%s256 + $0xc10] sm:$0xff]
        %v938 = vld [vmem:[%s256 + $0xc18] sm:$0xff]
        %v939 = vld [vmem:[%s256 + $0xc20] sm:$0xff]
        %v940 = vld [vmem:[%s256 + $0xc28] sm:$0xff]
        %v941 = vld [vmem:[%s256 + $0xc30] sm:$0xff]
        %v942 = vld [vmem:[%s256 + $0xc38] sm:$0xff]
        %v943 = vld [vmem:[%s256 + $0xc40] sm:$0xff]
        %v944 = vld [vmem:[%s256 + $0xc48] sm:$0xff]
        %v945 = vld [vmem:[%s256 + $0xc50] sm:$0xff]
        %v946 = vld [vmem:[%s256 + $0xc58] sm:$0xff]
        %v947 = vld [vmem:[%s256 + $0xc60] sm:$0xff]
        %v948 = vld [vmem:[%s256 + $0xc68] sm:$0xff]
        %v949 = vld [vmem:[%s256 + $0xc70] sm:$0xff]
        %v950 = vld [vmem:[%s256 + $0xc78] sm:$0xff]
        %v951 = vld [vmem:[%s256 + $0xc80] sm:$0xff]
        %v952 = vld [vmem:[%s256 + $0xc88] sm:$0xff]
        %v953 = vld [vmem:[%s256 + $0xc90] sm:$0xff]
        %v954 = vld [vmem:[%s256 + $0xc98] sm:$0xff]
        %v955 = vld [vmem:[%s256 + $0xca0] sm:$0xff]
        %v956 = vld [vmem:[%s256 + $0xca8] sm:$0xff]
        %v957 = vld [vmem:[%s256 + $0xcb0] sm:$0xff]
        %v958 = vld [vmem:[%s256 + $0xcb8] sm:$0xff]
        %v959 = vld [vmem:[%s256 + $0xcc0] sm:$0xff]
        %v960 = vld [vmem:[%s256 + $0xcc8] sm:$0xff]
        %v961 = vld [vmem:[%s256 + $0xcd0] sm:$0xff]
        %v962 = vld [vmem:[%s256 + $0xcd8] sm:$0xff]
        %v963 = vld [vmem:[%s256 + $0xce0] sm:$0xff]
        %v964 = vld [vmem:[%s256 + $0xce8] sm:$0xff]
        %v965 = vld [vmem:[%s256 + $0xcf0] sm:$0xff]
        %v966 = vld [vmem:[%s256 + $0xcf8] sm:$0xff]
        %v967 = vld [vmem:[%s256 + $0xd00] sm:$0xff]
        %v968 = vld [vmem:[%s256 + $0xd08] sm:$0xff]
        %v969 = vld [vmem:[%s256 + $0xd10] sm:$0xff]
        %v970 = vld [vmem:[%s256 + $0xd18] sm:$0xff]
        %v971 = vld [vmem:[%s256 + $0xd20] sm:$0xff]
        %v972 = vld [vmem:[%s256 + $0xd28] sm:$0xff]
        %v973 = vld [vmem:[%s256 + $0xd30] sm:$0xff]
        %v974 = vld [vmem:[%s256 + $0xd38] sm:$0xff]
        %v975 = vld [vmem:[%s256 + $0xd40] sm:$0xff]
        %v976 = vld [vmem:[%s256 + $0xd48] sm:$0xff]
        %v977 = vld [vmem:[%s256 + $0xd50] sm:$0xff]
        %v978 = vld [vmem:[%s256 + $0xd58] sm:$0xff]
        %v979 = vld [vmem:[%s256 + $0xd60] sm:$0xff]
        %v980 = vld [vmem:[%s256 + $0xd68] sm:$0xff]
        %v981 = vld [vmem:[%s256 + $0xd70] sm:$0xff]
        %v982 = vld [vmem:[%s256 + $0xd78] sm:$0xff]
        %v983 = vld [vmem:[%s256 + $0xd80] sm:$0xff]
        %v984 = vld [vmem:[%s256 + $0xd88] sm:$0xff]
        %v985 = vld [vmem:[%s256 + $0xd90] sm:$0xff]
        %v986 = vld [vmem:[%s256 + $0xd98] sm:$0xff]
        %v987 = vld [vmem:[%s256 + $0xda0] sm:$0xff]
        %v988 = vld [vmem:[%s256 + $0xda8] sm:$0xff]
        %v989 = vld [vmem:[%s256 + $0xdb0] sm:$0xff]
        %v990 = vld [vmem:[%s256 + $0xdb8] sm:$0xff]
        %v991 = vld [vmem:[%s256 + $0xdc0] sm:$0xff]
        %v992 = vld [vmem:[%s256 + $0xdc8] sm:$0xff]
        %v993 = vld [vmem:[%s256 + $0xdd0] sm:$0xff]
        %v994 = vld [vmem:[%s256 + $0xdd8] sm:$0xff]
        %v995 = vld [vmem:[%s256 + $0xde0] sm:$0xff]
        %v996 = vld [vmem:[%s256 + $0xde8] sm:$0xff]
        %v997 = vld [vmem:[%s256 + $0xdf0] sm:$0xff]
        %v998 = vld [vmem:[%s256 + $0xdf8] sm:$0xff]
        %v1111 = vunpack.c.l.b16 %v439
        %v1112 = vunpack.c.h.b16 %v439
        %v1113 = vunpack.c.l.b16 %v440
        %v1114 = vunpack.c.h.b16 %v440
        %v1115 = vunpack.c.l.b16 %v441
        %v1116 = vunpack.c.h.b16 %v441
        %v1117 = vunpack.c.l.b16 %v442
        %v1118 = vunpack.c.h.b16 %v442
        %v1119 = vunpack.c.l.b16 %v443
        %v1120 = vunpack.c.h.b16 %v443
        %v1121 = vunpack.c.l.b16 %v444
        %v1122 = vunpack.c.h.b16 %v444
        %v1123 = vunpack.c.l.b16 %v445
        %v1124 = vunpack.c.h.b16 %v445
        %v1125 = vunpack.c.l.b16 %v446
        %v1126 = vunpack.c.h.b16 %v446
        %v1127 = vunpack.c.l.b16 %v447
        %v1128 = vunpack.c.h.b16 %v447
        %v1129 = vunpack.c.l.b16 %v448
        %v1130 = vunpack.c.h.b16 %v448
        %v1131 = vunpack.c.l.b16 %v449
        %v1132 = vunpack.c.h.b16 %v449
        %v1133 = vunpack.c.l.b16 %v450
        %v1134 = vunpack.c.h.b16 %v450
        %v1135 = vunpack.c.l.b16 %v451
        %v1136 = vunpack.c.h.b16 %v451
        %v1137 = vunpack.c.l.b16 %v452
        %v1138 = vunpack.c.h.b16 %v452
        %v1139 = vunpack.c.l.b16 %v453
        %v1140 = vunpack.c.h.b16 %v453
        %v1141 = vunpack.c.l.b16 %v454
        %v1142 = vunpack.c.h.b16 %v454
        %v1143 = vunpack.c.l.b16 %v455
        %v1144 = vunpack.c.h.b16 %v455
        %v1145 = vunpack.c.l.b16 %v456
        %v1146 = vunpack.c.h.b16 %v456
        %v1147 = vunpack.c.l.b16 %v457
        %v1148 = vunpack.c.h.b16 %v457
        %v1149 = vunpack.c.l.b16 %v458
        %v1150 = vunpack.c.h.b16 %v458
        %v1151 = vunpack.c.l.b16 %v459
        %v1152 = vunpack.c.h.b16 %v459
        %v1153 = vunpack.c.l.b16 %v460
        %v1154 = vunpack.c.h.b16 %v460
        %v1155 = vunpack.c.l.b16 %v461
        %v1156 = vunpack.c.h.b16 %v461
        %v1157 = vunpack.c.l.b16 %v462
        %v1158 = vunpack.c.h.b16 %v462
        %v1159 = vunpack.c.l.b16 %v463
        %v1160 = vunpack.c.h.b16 %v463
        %v1161 = vunpack.c.l.b16 %v464
        %v1162 = vunpack.c.h.b16 %v464
        %v1163 = vunpack.c.l.b16 %v465
        %v1164 = vunpack.c.h.b16 %v465
        %v1165 = vunpack.c.l.b16 %v466
        %v1166 = vunpack.c.h.b16 %v466
        %v1167 = vunpack.c.l.b16 %v467
        %v1168 = vunpack.c.h.b16 %v467
        %v1169 = vunpack.c.l.b16 %v468
        %v1170 = vunpack.c.h.b16 %v468
        %v1171 = vunpack.c.l.b16 %v469
        %v1172 = vunpack.c.h.b16 %v469
        %v1173 = vunpack.c.l.b16 %v470
        %v1174 = vunpack.c.h.b16 %v470
        %v1175 = vunpack.c.l.b16 %v471
        %v1176 = vunpack.c.h.b16 %v471
        %v1177 = vunpack.c.l.b16 %v472
        %v1178 = vunpack.c.h.b16 %v472
        %v1179 = vunpack.c.l.b16 %v473
        %v1180 = vunpack.c.h.b16 %v473
        %v1181 = vunpack.c.l.b16 %v474
        %v1182 = vunpack.c.h.b16 %v474
        %v1183 = vunpack.c.l.b16 %v475
        %v1184 = vunpack.c.h.b16 %v475
        %v1185 = vunpack.c.l.b16 %v476
        %v1186 = vunpack.c.h.b16 %v476
        %v1187 = vunpack.c.l.b16 %v477
        %v1188 = vunpack.c.h.b16 %v477
        %v1189 = vunpack.c.l.b16 %v478
        %v1190 = vunpack.c.h.b16 %v478
        %v1191 = vunpack.c.l.b16 %v479
        %v1192 = vunpack.c.h.b16 %v479
        %v1193 = vunpack.c.l.b16 %v480
        %v1194 = vunpack.c.h.b16 %v480
        %v1195 = vunpack.c.l.b16 %v481
        %v1196 = vunpack.c.h.b16 %v481
        %v1197 = vunpack.c.l.b16 %v482
        %v1198 = vunpack.c.h.b16 %v482
        %v1199 = vunpack.c.l.b16 %v483
        %v1200 = vunpack.c.h.b16 %v483
        %v1201 = vunpack.c.l.b16 %v484
        %v1202 = vunpack.c.h.b16 %v484
        %v1203 = vunpack.c.l.b16 %v485
        %v1204 = vunpack.c.h.b16 %v485
        %v1205 = vunpack.c.l.b16 %v486
        %v1206 = vunpack.c.h.b16 %v486
        %v1207 = vunpack.c.l.b16 %v487
        %v1208 = vunpack.c.h.b16 %v487
        %v1209 = vunpack.c.l.b16 %v488
        %v1210 = vunpack.c.h.b16 %v488
        %v1211 = vunpack.c.l.b16 %v489
        %v1212 = vunpack.c.h.b16 %v489
        %v1213 = vunpack.c.l.b16 %v490
        %v1214 = vunpack.c.h.b16 %v490
        %v1215 = vunpack.c.l.b16 %v491
        %v1216 = vunpack.c.h.b16 %v491
        %v1217 = vunpack.c.l.b16 %v492
        %v1218 = vunpack.c.h.b16 %v492
        %v1219 = vunpack.c.l.b16 %v493
        %v1220 = vunpack.c.h.b16 %v493
        %v1221 = vunpack.c.l.b16 %v494
        %v1222 = vunpack.c.h.b16 %v494
        %v1223 = vunpack.c.l.b16 %v495
        %v1224 = vunpack.c.h.b16 %v495
        %v1225 = vunpack.c.l.b16 %v496
        %v1226 = vunpack.c.h.b16 %v496
        %v1227 = vunpack.c.l.b16 %v497
        %v1228 = vunpack.c.h.b16 %v497
        %v1229 = vunpack.c.l.b16 %v498
        %v1230 = vunpack.c.h.b16 %v498
        %v1231 = vunpack.c.l.b16 %v499
        %v1232 = vunpack.c.h.b16 %v499
        %v1233 = vunpack.c.l.b16 %v500
        %v1234 = vunpack.c.h.b16 %v500
        %v1235 = vunpack.c.l.b16 %v501
        %v1236 = vunpack.c.h.b16 %v501
        %v1237 = vunpack.c.l.b16 %v502
        %v1238 = vunpack.c.h.b16 %v502
        %v1239 = vunpack.c.l.b16 %v503
        %v1240 = vunpack.c.h.b16 %v503
        %v1241 = vunpack.c.l.b16 %v504
        %v1242 = vunpack.c.h.b16 %v504
        %v1243 = vunpack.c.l.b16 %v505
        %v1244 = vunpack.c.h.b16 %v505
        %v1245 = vunpack.c.l.b16 %v506
        %v1246 = vunpack.c.h.b16 %v506
        %v1247 = vunpack.c.l.b16 %v507
        %v1248 = vunpack.c.h.b16 %v507
        %v1249 = vunpack.c.l.b16 %v508
        %v1250 = vunpack.c.h.b16 %v508
        %v1251 = vunpack.c.l.b16 %v509
        %v1252 = vunpack.c.h.b16 %v509
        %v1253 = vunpack.c.l.b16 %v510
        %v1254 = vunpack.c.h.b16 %v510
        %v1255 = vunpack.c.l.b16 %v511
        %v1256 = vunpack.c.h.b16 %v511
        %v1257 = vunpack.c.l.b16 %v512
        %v1258 = vunpack.c.h.b16 %v512
        %v1259 = vunpack.c.l.b16 %v513
        %v1260 = vunpack.c.h.b16 %v513
        %v1261 = vunpack.c.l.b16 %v514
        %v1262 = vunpack.c.h.b16 %v514
        %v1263 = vunpack.c.l.b16 %v515
        %v1264 = vunpack.c.h.b16 %v515
        %v1265 = vunpack.c.l.b16 %v516
        %v1266 = vunpack.c.h.b16 %v516
        %v1267 = vunpack.c.l.b16 %v517
        %v1268 = vunpack.c.h.b16 %v517
        %v1269 = vunpack.c.l.b16 %v518
        %v1270 = vunpack.c.h.b16 %v518
        %v1271 = vunpack.c.l.b16 %v519
        %v1272 = vunpack.c.h.b16 %v519
        %v1273 = vunpack.c.l.b16 %v520
        %v1274 = vunpack.c.h.b16 %v520
        %v1275 = vunpack.c.l.b16 %v521
        %v1276 = vunpack.c.h.b16 %v521
        %v1277 = vunpack.c.l.b16 %v522
        %v1278 = vunpack.c.h.b16 %v522
        %v1279 = vunpack.c.l.b16 %v523
        %v1280 = vunpack.c.h.b16 %v523
        %v1281 = vunpack.c.l.b16 %v524
        %v1282 = vunpack.c.h.b16 %v524
        %v1283 = vunpack.c.l.b16 %v525
        %v1284 = vunpack.c.h.b16 %v525
        %v1285 = vunpack.c.l.b16 %v526
        %v1286 = vunpack.c.h.b16 %v526
        %v1287 = vunpack.c.l.b16 %v527
        %v1288 = vunpack.c.h.b16 %v527
        %v1289 = vunpack.c.l.b16 %v528
        %v1290 = vunpack.c.h.b16 %v528
        %v1291 = vunpack.c.l.b16 %v529
        %v1292 = vunpack.c.h.b16 %v529
        %v1293 = vunpack.c.l.b16 %v530
        %v1294 = vunpack.c.h.b16 %v530
        %v1295 = vunpack.c.l.b16 %v531
        %v1296 = vunpack.c.h.b16 %v531
        %v1297 = vunpack.c.l.b16 %v532
        %v1298 = vunpack.c.h.b16 %v532
        %v1299 = vunpack.c.l.b16 %v533
        %v1300 = vunpack.c.h.b16 %v533
        %v1301 = vunpack.c.l.b16 %v534
        %v1302 = vunpack.c.h.b16 %v534
        %v1303 = vunpack.c.l.b16 %v535
        %v1304 = vunpack.c.h.b16 %v535
        %v1305 = vunpack.c.l.b16 %v536
        %v1306 = vunpack.c.h.b16 %v536
        %v1307 = vunpack.c.l.b16 %v537
        %v1308 = vunpack.c.h.b16 %v537
        %v1309 = vunpack.c.l.b16 %v538
        %v1310 = vunpack.c.h.b16 %v538
        %v1311 = vunpack.c.l.b16 %v539
        %v1312 = vunpack.c.h.b16 %v539
        %v1313 = vunpack.c.l.b16 %v540
        %v1314 = vunpack.c.h.b16 %v540
        %v1315 = vunpack.c.l.b16 %v541
        %v1316 = vunpack.c.h.b16 %v541
        %v1317 = vunpack.c.l.b16 %v542
        %v1318 = vunpack.c.h.b16 %v542
        %v1319 = vunpack.c.l.b16 %v543
        %v1320 = vunpack.c.h.b16 %v543
        %v1321 = vunpack.c.l.b16 %v544
        %v1322 = vunpack.c.h.b16 %v544
        %v1323 = vunpack.c.l.b16 %v545
        %v1324 = vunpack.c.h.b16 %v545
        %v1325 = vunpack.c.l.b16 %v546
        %v1326 = vunpack.c.h.b16 %v546
        %v1327 = vunpack.c.l.b16 %v547
        %v1328 = vunpack.c.h.b16 %v547
        %v1329 = vunpack.c.l.b16 %v548
        %v1330 = vunpack.c.h.b16 %v548
        %v1331 = vunpack.c.l.b16 %v549
        %v1332 = vunpack.c.h.b16 %v549
        %v1333 = vunpack.c.l.b16 %v550
        %v1334 = vunpack.c.h.b16 %v550
        %v1335 = vpack.c.b16 %v1125, %v1111
        %v1336 = vpack.c.b16 %v1126, %v1112
        %v1337 = vpack.c.b16 %v1127, %v1113
        %v1338 = vpack.c.b16 %v1128, %v1114
        %v1339 = vpack.c.b16 %v1129, %v1115
        %v1340 = vpack.c.b16 %v1130, %v1116
        %v1341 = vpack.c.b16 %v1131, %v1117
        %v1342 = vpack.c.b16 %v1132, %v1118
        %v1343 = vpack.c.b16 %v1133, %v1119
        %v1344 = vpack.c.b16 %v1134, %v1120
        %v1345 = vpack.c.b16 %v1135, %v1121
        %v1346 = vpack.c.b16 %v1136, %v1122
        %v1347 = vpack.c.b16 %v1137, %v1123
        %v1348 = vpack.c.b16 %v1138, %v1124
        %v1349 = vpack.c.b16 %v1153, %v1139
        %v1350 = vpack.c.b16 %v1154, %v1140
        %v1351 = vpack.c.b16 %v1155, %v1141
        %v1352 = vpack.c.b16 %v1156, %v1142
        %v1353 = vpack.c.b16 %v1157, %v1143
        %v1354 = vpack.c.b16 %v1158, %v1144
        %v1355 = vpack.c.b16 %v1159, %v1145
        %v1356 = vpack.c.b16 %v1160, %v1146
        %v1357 = vpack.c.b16 %v1161, %v1147
        %v1358 = vpack.c.b16 %v1162, %v1148
        %v1359 = vpack.c.b16 %v1163, %v1149
        %v1360 = vpack.c.b16 %v1164, %v1150
        %v1361 = vpack.c.b16 %v1165, %v1151
        %v1362 = vpack.c.b16 %v1166, %v1152
        %v1363 = vpack.c.b16 %v1181, %v1167
        %v1364 = vpack.c.b16 %v1182, %v1168
        %v1365 = vpack.c.b16 %v1183, %v1169
        %v1366 = vpack.c.b16 %v1184, %v1170
        %v1367 = vpack.c.b16 %v1185, %v1171
        %v1368 = vpack.c.b16 %v1186, %v1172
        %v1369 = vpack.c.b16 %v1187, %v1173
        %v1370 = vpack.c.b16 %v1188, %v1174
        %v1371 = vpack.c.b16 %v1189, %v1175
        %v1372 = vpack.c.b16 %v1190, %v1176
        %v1373 = vpack.c.b16 %v1191, %v1177
        %v1374 = vpack.c.b16 %v1192, %v1178
        %v1375 = vpack.c.b16 %v1193, %v1179
        %v1376 = vpack.c.b16 %v1194, %v1180
        %v1377 = vpack.c.b16 %v1209, %v1195
        %v1378 = vpack.c.b16 %v1210, %v1196
        %v1379 = vpack.c.b16 %v1211, %v1197
        %v1380 = vpack.c.b16 %v1212, %v1198
        %v1381 = vpack.c.b16 %v1213, %v1199
        %v1382 = vpack.c.b16 %v1214, %v1200
        %v1383 = vpack.c.b16 %v1215, %v1201
        %v1384 = vpack.c.b16 %v1216, %v1202
        %v1385 = vpack.c.b16 %v1217, %v1203
        %v1386 = vpack.c.b16 %v1218, %v1204
        %v1387 = vpack.c.b16 %v1219, %v1205
        %v1388 = vpack.c.b16 %v1220, %v1206
        %v1389 = vpack.c.b16 %v1221, %v1207
        %v1390 = vpack.c.b16 %v1222, %v1208
        %v1391 = vpack.c.b16 %v1237, %v1223
        %v1392 = vpack.c.b16 %v1238, %v1224
        %v1393 = vpack.c.b16 %v1239, %v1225
        %v1394 = vpack.c.b16 %v1240, %v1226
        %v1395 = vpack.c.b16 %v1241, %v1227
        %v1396 = vpack.c.b16 %v1242, %v1228
        %v1397 = vpack.c.b16 %v1243, %v1229
        %v1398 = vpack.c.b16 %v1244, %v1230
        %v1399 = vpack.c.b16 %v1245, %v1231
        %v1400 = vpack.c.b16 %v1246, %v1232
        %v1401 = vpack.c.b16 %v1247, %v1233
        %v1402 = vpack.c.b16 %v1248, %v1234
        %v1403 = vpack.c.b16 %v1249, %v1235
        %v1404 = vpack.c.b16 %v1250, %v1236
        %v1405 = vpack.c.b16 %v1265, %v1251
        %v1406 = vpack.c.b16 %v1266, %v1252
        %v1407 = vpack.c.b16 %v1267, %v1253
        %v1408 = vpack.c.b16 %v1268, %v1254
        %v1409 = vpack.c.b16 %v1269, %v1255
        %v1410 = vpack.c.b16 %v1270, %v1256
        %v1411 = vpack.c.b16 %v1271, %v1257
        %v1412 = vpack.c.b16 %v1272, %v1258
        %v1413 = vpack.c.b16 %v1273, %v1259
        %v1414 = vpack.c.b16 %v1274, %v1260
        %v1415 = vpack.c.b16 %v1275, %v1261
        %v1416 = vpack.c.b16 %v1276, %v1262
        %v1417 = vpack.c.b16 %v1277, %v1263
        %v1418 = vpack.c.b16 %v1278, %v1264
        %v1419 = vpack.c.b16 %v1293, %v1279
        %v1420 = vpack.c.b16 %v1294, %v1280
        %v1421 = vpack.c.b16 %v1295, %v1281
        %v1422 = vpack.c.b16 %v1296, %v1282
        %v1423 = vpack.c.b16 %v1297, %v1283
        %v1424 = vpack.c.b16 %v1298, %v1284
        %v1425 = vpack.c.b16 %v1299, %v1285
        %v1426 = vpack.c.b16 %v1300, %v1286
        %v1427 = vpack.c.b16 %v1301, %v1287
        %v1428 = vpack.c.b16 %v1302, %v1288
        %v1429 = vpack.c.b16 %v1303, %v1289
        %v1430 = vpack.c.b16 %v1304, %v1290
        %v1431 = vpack.c.b16 %v1305, %v1291
        %v1432 = vpack.c.b16 %v1306, %v1292
        %v1433 = vpack.c.b16 %v1321, %v1307
        %v1434 = vpack.c.b16 %v1322, %v1308
        %v1435 = vpack.c.b16 %v1323, %v1309
        %v1436 = vpack.c.b16 %v1324, %v1310
        %v1437 = vpack.c.b16 %v1325, %v1311
        %v1438 = vpack.c.b16 %v1326, %v1312
        %v1439 = vpack.c.b16 %v1327, %v1313
        %v1440 = vpack.c.b16 %v1328, %v1314
        %v1441 = vpack.c.b16 %v1329, %v1315
        %v1442 = vpack.c.b16 %v1330, %v1316
        %v1443 = vpack.c.b16 %v1331, %v1317
        %v1444 = vpack.c.b16 %v1332, %v1318
        %v1445 = vpack.c.b16 %v1333, %v1319
        %v1446 = vpack.c.b16 %v1334, %v1320
        %v2007 = vunpack.c.l.b16 %v551
        %v2008 = vunpack.c.h.b16 %v551
        %v2009 = vunpack.c.l.b16 %v552
        %v2010 = vunpack.c.h.b16 %v552
        %v2011 = vunpack.c.l.b16 %v553
        %v2012 = vunpack.c.h.b16 %v553
        %v2013 = vunpack.c.l.b16 %v554
        %v2014 = vunpack.c.h.b16 %v554
        %v2015 = vunpack.c.l.b16 %v555
        %v2016 = vunpack.c.h.b16 %v555
        %v2017 = vunpack.c.l.b16 %v556
        %v2018 = vunpack.c.h.b16 %v556
        %v2019 = vunpack.c.l.b16 %v557
        %v2020 = vunpack.c.h.b16 %v557
        %v2021 = vunpack.c.l.b16 %v558
        %v2022 = vunpack.c.h.b16 %v558
        %v2023 = vunpack.c.l.b16 %v559
        %v2024 = vunpack.c.h.b16 %v559
        %v2025 = vunpack.c.l.b16 %v560
        %v2026 = vunpack.c.h.b16 %v560
        %v2027 = vunpack.c.l.b16 %v561
        %v2028 = vunpack.c.h.b16 %v561
        %v2029 = vunpack.c.l.b16 %v562
        %v2030 = vunpack.c.h.b16 %v562
        %v2031 = vunpack.c.l.b16 %v563
        %v2032 = vunpack.c.h.b16 %v563
        %v2033 = vunpack.c.l.b16 %v564
        %v2034 = vunpack.c.h.b16 %v564
        %v2035 = vunpack.c.l.b16 %v565
        %v2036 = vunpack.c.h.b16 %v565
        %v2037 = vunpack.c.l.b16 %v566
        %v2038 = vunpack.c.h.b16 %v566
        %v2039 = vunpack.c.l.b16 %v567
        %v2040 = vunpack.c.h.b16 %v567
        %v2041 = vunpack.c.l.b16 %v568
        %v2042 = vunpack.c.h.b16 %v568
        %v2043 = vunpack.c.l.b16 %v569
        %v2044 = vunpack.c.h.b16 %v569
        %v2045 = vunpack.c.l.b16 %v570
        %v2046 = vunpack.c.h.b16 %v570
        %v2047 = vunpack.c.l.b16 %v571
        %v2048 = vunpack.c.h.b16 %v571
        %v2049 = vunpack.c.l.b16 %v572
        %v2050 = vunpack.c.h.b16 %v572
        %v2051 = vunpack.c.l.b16 %v573
        %v2052 = vunpack.c.h.b16 %v573
        %v2053 = vunpack.c.l.b16 %v574
        %v2054 = vunpack.c.h.b16 %v574
        %v2055 = vunpack.c.l.b16 %v575
        %v2056 = vunpack.c.h.b16 %v575
        %v2057 = vunpack.c.l.b16 %v576
        %v2058 = vunpack.c.h.b16 %v576
        %v2059 = vunpack.c.l.b16 %v577
        %v2060 = vunpack.c.h.b16 %v577
        %v2061 = vunpack.c.l.b16 %v578
        %v2062 = vunpack.c.h.b16 %v578
        %v2063 = vunpack.c.l.b16 %v579
        %v2064 = vunpack.c.h.b16 %v579
        %v2065 = vunpack.c.l.b16 %v580
        %v2066 = vunpack.c.h.b16 %v580
        %v2067 = vunpack.c.l.b16 %v581
        %v2068 = vunpack.c.h.b16 %v581
        %v2069 = vunpack.c.l.b16 %v582
        %v2070 = vunpack.c.h.b16 %v582
        %v2071 = vunpack.c.l.b16 %v583
        %v2072 = vunpack.c.h.b16 %v583
        %v2073 = vunpack.c.l.b16 %v584
        %v2074 = vunpack.c.h.b16 %v584
        %v2075 = vunpack.c.l.b16 %v585
        %v2076 = vunpack.c.h.b16 %v585
        %v2077 = vunpack.c.l.b16 %v586
        %v2078 = vunpack.c.h.b16 %v586
        %v2079 = vunpack.c.l.b16 %v587
        %v2080 = vunpack.c.h.b16 %v587
        %v2081 = vunpack.c.l.b16 %v588
        %v2082 = vunpack.c.h.b16 %v588
        %v2083 = vunpack.c.l.b16 %v589
        %v2084 = vunpack.c.h.b16 %v589
        %v2085 = vunpack.c.l.b16 %v590
        %v2086 = vunpack.c.h.b16 %v590
        %v2087 = vunpack.c.l.b16 %v591
        %v2088 = vunpack.c.h.b16 %v591
        %v2089 = vunpack.c.l.b16 %v592
        %v2090 = vunpack.c.h.b16 %v592
        %v2091 = vunpack.c.l.b16 %v593
        %v2092 = vunpack.c.h.b16 %v593
        %v2093 = vunpack.c.l.b16 %v594
        %v2094 = vunpack.c.h.b16 %v594
        %v2095 = vunpack.c.l.b16 %v595
        %v2096 = vunpack.c.h.b16 %v595
        %v2097 = vunpack.c.l.b16 %v596
        %v2098 = vunpack.c.h.b16 %v596
        %v2099 = vunpack.c.l.b16 %v597
        %v2100 = vunpack.c.h.b16 %v597
        %v2101 = vunpack.c.l.b16 %v598
        %v2102 = vunpack.c.h.b16 %v598
        %v2103 = vunpack.c.l.b16 %v599
        %v2104 = vunpack.c.h.b16 %v599
        %v2105 = vunpack.c.l.b16 %v600
        %v2106 = vunpack.c.h.b16 %v600
        %v2107 = vunpack.c.l.b16 %v601
        %v2108 = vunpack.c.h.b16 %v601
        %v2109 = vunpack.c.l.b16 %v602
        %v2110 = vunpack.c.h.b16 %v602
        %v2111 = vunpack.c.l.b16 %v603
        %v2112 = vunpack.c.h.b16 %v603
        %v2113 = vunpack.c.l.b16 %v604
        %v2114 = vunpack.c.h.b16 %v604
        %v2115 = vunpack.c.l.b16 %v605
        %v2116 = vunpack.c.h.b16 %v605
        %v2117 = vunpack.c.l.b16 %v606
        %v2118 = vunpack.c.h.b16 %v606
        %v2119 = vunpack.c.l.b16 %v607
        %v2120 = vunpack.c.h.b16 %v607
        %v2121 = vunpack.c.l.b16 %v608
        %v2122 = vunpack.c.h.b16 %v608
        %v2123 = vunpack.c.l.b16 %v609
        %v2124 = vunpack.c.h.b16 %v609
        %v2125 = vunpack.c.l.b16 %v610
        %v2126 = vunpack.c.h.b16 %v610
        %v2127 = vunpack.c.l.b16 %v611
        %v2128 = vunpack.c.h.b16 %v611
        %v2129 = vunpack.c.l.b16 %v612
        %v2130 = vunpack.c.h.b16 %v612
        %v2131 = vunpack.c.l.b16 %v613
        %v2132 = vunpack.c.h.b16 %v613
        %v2133 = vunpack.c.l.b16 %v614
        %v2134 = vunpack.c.h.b16 %v614
        %v2135 = vunpack.c.l.b16 %v615
        %v2136 = vunpack.c.h.b16 %v615
        %v2137 = vunpack.c.l.b16 %v616
        %v2138 = vunpack.c.h.b16 %v616
        %v2139 = vunpack.c.l.b16 %v617
        %v2140 = vunpack.c.h.b16 %v617
        %v2141 = vunpack.c.l.b16 %v618
        %v2142 = vunpack.c.h.b16 %v618
        %v2143 = vunpack.c.l.b16 %v619
        %v2144 = vunpack.c.h.b16 %v619
        %v2145 = vunpack.c.l.b16 %v620
        %v2146 = vunpack.c.h.b16 %v620
        %v2147 = vunpack.c.l.b16 %v621
        %v2148 = vunpack.c.h.b16 %v621
        %v2149 = vunpack.c.l.b16 %v622
        %v2150 = vunpack.c.h.b16 %v622
        %v2151 = vunpack.c.l.b16 %v623
        %v2152 = vunpack.c.h.b16 %v623
        %v2153 = vunpack.c.l.b16 %v624
        %v2154 = vunpack.c.h.b16 %v624
        %v2155 = vunpack.c.l.b16 %v625
        %v2156 = vunpack.c.h.b16 %v625
        %v2157 = vunpack.c.l.b16 %v626
        %v2158 = vunpack.c.h.b16 %v626
        %v2159 = vunpack.c.l.b16 %v627
        %v2160 = vunpack.c.h.b16 %v627
        %v2161 = vunpack.c.l.b16 %v628
        %v2162 = vunpack.c.h.b16 %v628
        %v2163 = vunpack.c.l.b16 %v629
        %v2164 = vunpack.c.h.b16 %v629
        %v2165 = vunpack.c.l.b16 %v630
        %v2166 = vunpack.c.h.b16 %v630
        %v2167 = vunpack.c.l.b16 %v631
        %v2168 = vunpack.c.h.b16 %v631
        %v2169 = vunpack.c.l.b16 %v632
        %v2170 = vunpack.c.h.b16 %v632
        %v2171 = vunpack.c.l.b16 %v633
        %v2172 = vunpack.c.h.b16 %v633
        %v2173 = vunpack.c.l.b16 %v634
        %v2174 = vunpack.c.h.b16 %v634
        %v2175 = vunpack.c.l.b16 %v635
        %v2176 = vunpack.c.h.b16 %v635
        %v2177 = vunpack.c.l.b16 %v636
        %v2178 = vunpack.c.h.b16 %v636
        %v2179 = vunpack.c.l.b16 %v637
        %v2180 = vunpack.c.h.b16 %v637
        %v2181 = vunpack.c.l.b16 %v638
        %v2182 = vunpack.c.h.b16 %v638
        %v2183 = vunpack.c.l.b16 %v639
        %v2184 = vunpack.c.h.b16 %v639
        %v2185 = vunpack.c.l.b16 %v640
        %v2186 = vunpack.c.h.b16 %v640
        %v2187 = vunpack.c.l.b16 %v641
        %v2188 = vunpack.c.h.b16 %v641
        %v2189 = vunpack.c.l.b16 %v642
        %v2190 = vunpack.c.h.b16 %v642
        %v2191 = vunpack.c.l.b16 %v643
        %v2192 = vunpack.c.h.b16 %v643
        %v2193 = vunpack.c.l.b16 %v644
        %v2194 = vunpack.c.h.b16 %v644
        %v2195 = vunpack.c.l.b16 %v645
        %v2196 = vunpack.c.h.b16 %v645
        %v2197 = vunpack.c.l.b16 %v646
        %v2198 = vunpack.c.h.b16 %v646
        %v2199 = vunpack.c.l.b16 %v647
        %v2200 = vunpack.c.h.b16 %v647
        %v2201 = vunpack.c.l.b16 %v648
        %v2202 = vunpack.c.h.b16 %v648
        %v2203 = vunpack.c.l.b16 %v649
        %v2204 = vunpack.c.h.b16 %v649
        %v2205 = vunpack.c.l.b16 %v650
        %v2206 = vunpack.c.h.b16 %v650
        %v2207 = vunpack.c.l.b16 %v651
        %v2208 = vunpack.c.h.b16 %v651
        %v2209 = vunpack.c.l.b16 %v652
        %v2210 = vunpack.c.h.b16 %v652
        %v2211 = vunpack.c.l.b16 %v653
        %v2212 = vunpack.c.h.b16 %v653
        %v2213 = vunpack.c.l.b16 %v654
        %v2214 = vunpack.c.h.b16 %v654
        %v2215 = vunpack.c.l.b16 %v655
        %v2216 = vunpack.c.h.b16 %v655
        %v2217 = vunpack.c.l.b16 %v656
        %v2218 = vunpack.c.h.b16 %v656
        %v2219 = vunpack.c.l.b16 %v657
        %v2220 = vunpack.c.h.b16 %v657
        %v2221 = vunpack.c.l.b16 %v658
        %v2222 = vunpack.c.h.b16 %v658
        %v2223 = vunpack.c.l.b16 %v659
        %v2224 = vunpack.c.h.b16 %v659
        %v2225 = vunpack.c.l.b16 %v660
        %v2226 = vunpack.c.h.b16 %v660
        %v2227 = vunpack.c.l.b16 %v661
        %v2228 = vunpack.c.h.b16 %v661
        %v2229 = vunpack.c.l.b16 %v662
        %v2230 = vunpack.c.h.b16 %v662
        %v2231 = vunpack.c.l.b16 %v663
        %v2232 = vunpack.c.h.b16 %v663
        %v2233 = vunpack.c.l.b16 %v664
        %v2234 = vunpack.c.h.b16 %v664
        %v2235 = vunpack.c.l.b16 %v665
        %v2236 = vunpack.c.h.b16 %v665
        %v2237 = vunpack.c.l.b16 %v666
        %v2238 = vunpack.c.h.b16 %v666
        %v2239 = vunpack.c.l.b16 %v667
        %v2240 = vunpack.c.h.b16 %v667
        %v2241 = vunpack.c.l.b16 %v668
        %v2242 = vunpack.c.h.b16 %v668
        %v2243 = vunpack.c.l.b16 %v669
        %v2244 = vunpack.c.h.b16 %v669
        %v2245 = vunpack.c.l.b16 %v670
        %v2246 = vunpack.c.h.b16 %v670
        %v2247 = vunpack.c.l.b16 %v671
        %v2248 = vunpack.c.h.b16 %v671
        %v2249 = vunpack.c.l.b16 %v672
        %v2250 = vunpack.c.h.b16 %v672
        %v2251 = vunpack.c.l.b16 %v673
        %v2252 = vunpack.c.h.b16 %v673
        %v2253 = vunpack.c.l.b16 %v674
        %v2254 = vunpack.c.h.b16 %v674
        %v2255 = vunpack.c.l.b16 %v675
        %v2256 = vunpack.c.h.b16 %v675
        %v2257 = vunpack.c.l.b16 %v676
        %v2258 = vunpack.c.h.b16 %v676
        %v2259 = vunpack.c.l.b16 %v677
        %v2260 = vunpack.c.h.b16 %v677
        %v2261 = vunpack.c.l.b16 %v678
        %v2262 = vunpack.c.h.b16 %v678
        %v2263 = vunpack.c.l.b16 %v679
        %v2264 = vunpack.c.h.b16 %v679
        %v2265 = vunpack.c.l.b16 %v680
        %v2266 = vunpack.c.h.b16 %v680
        %v2267 = vunpack.c.l.b16 %v681
        %v2268 = vunpack.c.h.b16 %v681
        %v2269 = vunpack.c.l.b16 %v682
        %v2270 = vunpack.c.h.b16 %v682
        %v2271 = vunpack.c.l.b16 %v683
        %v2272 = vunpack.c.h.b16 %v683
        %v2273 = vunpack.c.l.b16 %v684
        %v2274 = vunpack.c.h.b16 %v684
        %v2275 = vunpack.c.l.b16 %v685
        %v2276 = vunpack.c.h.b16 %v685
        %v2277 = vunpack.c.l.b16 %v686
        %v2278 = vunpack.c.h.b16 %v686
        %v2279 = vunpack.c.l.b16 %v687
        %v2280 = vunpack.c.h.b16 %v687
        %v2281 = vunpack.c.l.b16 %v688
        %v2282 = vunpack.c.h.b16 %v688
        %v2283 = vunpack.c.l.b16 %v689
        %v2284 = vunpack.c.h.b16 %v689
        %v2285 = vunpack.c.l.b16 %v690
        %v2286 = vunpack.c.h.b16 %v690
        %v2287 = vunpack.c.l.b16 %v691
        %v2288 = vunpack.c.h.b16 %v691
        %v2289 = vunpack.c.l.b16 %v692
        %v2290 = vunpack.c.h.b16 %v692
        %v2291 = vunpack.c.l.b16 %v693
        %v2292 = vunpack.c.h.b16 %v693
        %v2293 = vunpack.c.l.b16 %v694
        %v2294 = vunpack.c.h.b16 %v694
        %v2295 = vunpack.c.l.b16 %v695
        %v2296 = vunpack.c.h.b16 %v695
        %v2297 = vunpack.c.l.b16 %v696
        %v2298 = vunpack.c.h.b16 %v696
        %v2299 = vunpack.c.l.b16 %v697
        %v2300 = vunpack.c.h.b16 %v697
        %v2301 = vunpack.c.l.b16 %v698
        %v2302 = vunpack.c.h.b16 %v698
        %v2303 = vunpack.c.l.b16 %v699
        %v2304 = vunpack.c.h.b16 %v699
        %v2305 = vunpack.c.l.b16 %v700
        %v2306 = vunpack.c.h.b16 %v700
        %v2307 = vunpack.c.l.b16 %v701
        %v2308 = vunpack.c.h.b16 %v701
        %v2309 = vunpack.c.l.b16 %v702
        %v2310 = vunpack.c.h.b16 %v702
        %v2311 = vunpack.c.l.b16 %v703
        %v2312 = vunpack.c.h.b16 %v703
        %v2313 = vunpack.c.l.b16 %v704
        %v2314 = vunpack.c.h.b16 %v704
        %v2315 = vunpack.c.l.b16 %v705
        %v2316 = vunpack.c.h.b16 %v705
        %v2317 = vunpack.c.l.b16 %v706
        %v2318 = vunpack.c.h.b16 %v706
        %v2319 = vunpack.c.l.b16 %v707
        %v2320 = vunpack.c.h.b16 %v707
        %v2321 = vunpack.c.l.b16 %v708
        %v2322 = vunpack.c.h.b16 %v708
        %v2323 = vunpack.c.l.b16 %v709
        %v2324 = vunpack.c.h.b16 %v709
        %v2325 = vunpack.c.l.b16 %v710
        %v2326 = vunpack.c.h.b16 %v710
        %v2327 = vunpack.c.l.b16 %v711
        %v2328 = vunpack.c.h.b16 %v711
        %v2329 = vunpack.c.l.b16 %v712
        %v2330 = vunpack.c.h.b16 %v712
        %v2331 = vunpack.c.l.b16 %v713
        %v2332 = vunpack.c.h.b16 %v713
        %v2333 = vunpack.c.l.b16 %v714
        %v2334 = vunpack.c.h.b16 %v714
        %v2335 = vunpack.c.l.b16 %v715
        %v2336 = vunpack.c.h.b16 %v715
        %v2337 = vunpack.c.l.b16 %v716
        %v2338 = vunpack.c.h.b16 %v716
        %v2339 = vunpack.c.l.b16 %v717
        %v2340 = vunpack.c.h.b16 %v717
        %v2341 = vunpack.c.l.b16 %v718
        %v2342 = vunpack.c.h.b16 %v718
        %v2343 = vunpack.c.l.b16 %v719
        %v2344 = vunpack.c.h.b16 %v719
        %v2345 = vunpack.c.l.b16 %v720
        %v2346 = vunpack.c.h.b16 %v720
        %v2347 = vunpack.c.l.b16 %v721
        %v2348 = vunpack.c.h.b16 %v721
        %v2349 = vunpack.c.l.b16 %v722
        %v2350 = vunpack.c.h.b16 %v722
        %v2351 = vunpack.c.l.b16 %v723
        %v2352 = vunpack.c.h.b16 %v723
        %v2353 = vunpack.c.l.b16 %v724
        %v2354 = vunpack.c.h.b16 %v724
        %v2355 = vunpack.c.l.b16 %v725
        %v2356 = vunpack.c.h.b16 %v725
        %v2357 = vunpack.c.l.b16 %v726
        %v2358 = vunpack.c.h.b16 %v726
        %v2359 = vunpack.c.l.b16 %v727
        %v2360 = vunpack.c.h.b16 %v727
        %v2361 = vunpack.c.l.b16 %v728
        %v2362 = vunpack.c.h.b16 %v728
        %v2363 = vunpack.c.l.b16 %v729
        %v2364 = vunpack.c.h.b16 %v729
        %v2365 = vunpack.c.l.b16 %v730
        %v2366 = vunpack.c.h.b16 %v730
        %v2367 = vunpack.c.l.b16 %v731
        %v2368 = vunpack.c.h.b16 %v731
        %v2369 = vunpack.c.l.b16 %v732
        %v2370 = vunpack.c.h.b16 %v732
        %v2371 = vunpack.c.l.b16 %v733
        %v2372 = vunpack.c.h.b16 %v733
        %v2373 = vunpack.c.l.b16 %v734
        %v2374 = vunpack.c.h.b16 %v734
        %v2375 = vunpack.c.l.b16 %v735
        %v2376 = vunpack.c.h.b16 %v735
        %v2377 = vunpack.c.l.b16 %v736
        %v2378 = vunpack.c.h.b16 %v736
        %v2379 = vunpack.c.l.b16 %v737
        %v2380 = vunpack.c.h.b16 %v737
        %v2381 = vunpack.c.l.b16 %v738
        %v2382 = vunpack.c.h.b16 %v738
        %v2383 = vunpack.c.l.b16 %v739
        %v2384 = vunpack.c.h.b16 %v739
        %v2385 = vunpack.c.l.b16 %v740
        %v2386 = vunpack.c.h.b16 %v740
        %v2387 = vunpack.c.l.b16 %v741
        %v2388 = vunpack.c.h.b16 %v741
        %v2389 = vunpack.c.l.b16 %v742
        %v2390 = vunpack.c.h.b16 %v742
        %v2391 = vunpack.c.l.b16 %v743
        %v2392 = vunpack.c.h.b16 %v743
        %v2393 = vunpack.c.l.b16 %v744
        %v2394 = vunpack.c.h.b16 %v744
        %v2395 = vunpack.c.l.b16 %v745
        %v2396 = vunpack.c.h.b16 %v745
        %v2397 = vunpack.c.l.b16 %v746
        %v2398 = vunpack.c.h.b16 %v746
        %v2399 = vunpack.c.l.b16 %v747
        %v2400 = vunpack.c.h.b16 %v747
        %v2401 = vunpack.c.l.b16 %v748
        %v2402 = vunpack.c.h.b16 %v748
        %v2403 = vunpack.c.l.b16 %v749
        %v2404 = vunpack.c.h.b16 %v749
        %v2405 = vunpack.c.l.b16 %v750
        %v2406 = vunpack.c.h.b16 %v750
        %v2407 = vunpack.c.l.b16 %v751
        %v2408 = vunpack.c.h.b16 %v751
        %v2409 = vunpack.c.l.b16 %v752
        %v2410 = vunpack.c.h.b16 %v752
        %v2411 = vunpack.c.l.b16 %v753
        %v2412 = vunpack.c.h.b16 %v753
        %v2413 = vunpack.c.l.b16 %v754
        %v2414 = vunpack.c.h.b16 %v754
        %v2415 = vunpack.c.l.b16 %v755
        %v2416 = vunpack.c.h.b16 %v755
        %v2417 = vunpack.c.l.b16 %v756
        %v2418 = vunpack.c.h.b16 %v756
        %v2419 = vunpack.c.l.b16 %v757
        %v2420 = vunpack.c.h.b16 %v757
        %v2421 = vunpack.c.l.b16 %v758
        %v2422 = vunpack.c.h.b16 %v758
        %v2423 = vunpack.c.l.b16 %v759
        %v2424 = vunpack.c.h.b16 %v759
        %v2425 = vunpack.c.l.b16 %v760
        %v2426 = vunpack.c.h.b16 %v760
        %v2427 = vunpack.c.l.b16 %v761
        %v2428 = vunpack.c.h.b16 %v761
        %v2429 = vunpack.c.l.b16 %v762
        %v2430 = vunpack.c.h.b16 %v762
        %v2431 = vunpack.c.l.b16 %v763
        %v2432 = vunpack.c.h.b16 %v763
        %v2433 = vunpack.c.l.b16 %v764
        %v2434 = vunpack.c.h.b16 %v764
        %v2435 = vunpack.c.l.b16 %v765
        %v2436 = vunpack.c.h.b16 %v765
        %v2437 = vunpack.c.l.b16 %v766
        %v2438 = vunpack.c.h.b16 %v766
        %v2439 = vunpack.c.l.b16 %v767
        %v2440 = vunpack.c.h.b16 %v767
        %v2441 = vunpack.c.l.b16 %v768
        %v2442 = vunpack.c.h.b16 %v768
        %v2443 = vunpack.c.l.b16 %v769
        %v2444 = vunpack.c.h.b16 %v769
        %v2445 = vunpack.c.l.b16 %v770
        %v2446 = vunpack.c.h.b16 %v770
        %v2447 = vunpack.c.l.b16 %v771
        %v2448 = vunpack.c.h.b16 %v771
        %v2449 = vunpack.c.l.b16 %v772
        %v2450 = vunpack.c.h.b16 %v772
        %v2451 = vunpack.c.l.b16 %v773
        %v2452 = vunpack.c.h.b16 %v773
        %v2453 = vunpack.c.l.b16 %v774
        %v2454 = vunpack.c.h.b16 %v774
        %v2455 = vunpack.c.l.b16 %v775
        %v2456 = vunpack.c.h.b16 %v775
        %v2457 = vunpack.c.l.b16 %v776
        %v2458 = vunpack.c.h.b16 %v776
        %v2459 = vunpack.c.l.b16 %v777
        %v2460 = vunpack.c.h.b16 %v777
        %v2461 = vunpack.c.l.b16 %v778
        %v2462 = vunpack.c.h.b16 %v778
        %v2463 = vunpack.c.l.b16 %v779
        %v2464 = vunpack.c.h.b16 %v779
        %v2465 = vunpack.c.l.b16 %v780
        %v2466 = vunpack.c.h.b16 %v780
        %v2467 = vunpack.c.l.b16 %v781
        %v2468 = vunpack.c.h.b16 %v781
        %v2469 = vunpack.c.l.b16 %v782
        %v2470 = vunpack.c.h.b16 %v782
        %v2471 = vunpack.c.l.b16 %v783
        %v2472 = vunpack.c.h.b16 %v783
        %v2473 = vunpack.c.l.b16 %v784
        %v2474 = vunpack.c.h.b16 %v784
        %v2475 = vunpack.c.l.b16 %v785
        %v2476 = vunpack.c.h.b16 %v785
        %v2477 = vunpack.c.l.b16 %v786
        %v2478 = vunpack.c.h.b16 %v786
        %v2479 = vunpack.c.l.b16 %v787
        %v2480 = vunpack.c.h.b16 %v787
        %v2481 = vunpack.c.l.b16 %v788
        %v2482 = vunpack.c.h.b16 %v788
        %v2483 = vunpack.c.l.b16 %v789
        %v2484 = vunpack.c.h.b16 %v789
        %v2485 = vunpack.c.l.b16 %v790
        %v2486 = vunpack.c.h.b16 %v790
        %v2487 = vunpack.c.l.b16 %v791
        %v2488 = vunpack.c.h.b16 %v791
        %v2489 = vunpack.c.l.b16 %v792
        %v2490 = vunpack.c.h.b16 %v792
        %v2491 = vunpack.c.l.b16 %v793
        %v2492 = vunpack.c.h.b16 %v793
        %v2493 = vunpack.c.l.b16 %v794
        %v2494 = vunpack.c.h.b16 %v794
        %v2495 = vunpack.c.l.b16 %v795
        %v2496 = vunpack.c.h.b16 %v795
        %v2497 = vunpack.c.l.b16 %v796
        %v2498 = vunpack.c.h.b16 %v796
        %v2499 = vunpack.c.l.b16 %v797
        %v2500 = vunpack.c.h.b16 %v797
        %v2501 = vunpack.c.l.b16 %v798
        %v2502 = vunpack.c.h.b16 %v798
        %v2503 = vunpack.c.l.b16 %v799
        %v2504 = vunpack.c.h.b16 %v799
        %v2505 = vunpack.c.l.b16 %v800
        %v2506 = vunpack.c.h.b16 %v800
        %v2507 = vunpack.c.l.b16 %v801
        %v2508 = vunpack.c.h.b16 %v801
        %v2509 = vunpack.c.l.b16 %v802
        %v2510 = vunpack.c.h.b16 %v802
        %v2511 = vunpack.c.l.b16 %v803
        %v2512 = vunpack.c.h.b16 %v803
        %v2513 = vunpack.c.l.b16 %v804
        %v2514 = vunpack.c.h.b16 %v804
        %v2515 = vunpack.c.l.b16 %v805
        %v2516 = vunpack.c.h.b16 %v805
        %v2517 = vunpack.c.l.b16 %v806
        %v2518 = vunpack.c.h.b16 %v806
        %v2519 = vunpack.c.l.b16 %v807
        %v2520 = vunpack.c.h.b16 %v807
        %v2521 = vunpack.c.l.b16 %v808
        %v2522 = vunpack.c.h.b16 %v808
        %v2523 = vunpack.c.l.b16 %v809
        %v2524 = vunpack.c.h.b16 %v809
        %v2525 = vunpack.c.l.b16 %v810
        %v2526 = vunpack.c.h.b16 %v810
        %v2527 = vunpack.c.l.b16 %v811
        %v2528 = vunpack.c.h.b16 %v811
        %v2529 = vunpack.c.l.b16 %v812
        %v2530 = vunpack.c.h.b16 %v812
        %v2531 = vunpack.c.l.b16 %v813
        %v2532 = vunpack.c.h.b16 %v813
        %v2533 = vunpack.c.l.b16 %v814
        %v2534 = vunpack.c.h.b16 %v814
        %v2535 = vunpack.c.l.b16 %v815
        %v2536 = vunpack.c.h.b16 %v815
        %v2537 = vunpack.c.l.b16 %v816
        %v2538 = vunpack.c.h.b16 %v816
        %v2539 = vunpack.c.l.b16 %v817
        %v2540 = vunpack.c.h.b16 %v817
        %v2541 = vunpack.c.l.b16 %v818
        %v2542 = vunpack.c.h.b16 %v818
        %v2543 = vunpack.c.l.b16 %v819
        %v2544 = vunpack.c.h.b16 %v819
        %v2545 = vunpack.c.l.b16 %v820
        %v2546 = vunpack.c.h.b16 %v820
        %v2547 = vunpack.c.l.b16 %v821
        %v2548 = vunpack.c.h.b16 %v821
        %v2549 = vunpack.c.l.b16 %v822
        %v2550 = vunpack.c.h.b16 %v822
        %v2551 = vunpack.c.l.b16 %v823
        %v2552 = vunpack.c.h.b16 %v823
        %v2553 = vunpack.c.l.b16 %v824
        %v2554 = vunpack.c.h.b16 %v824
        %v2555 = vunpack.c.l.b16 %v825
        %v2556 = vunpack.c.h.b16 %v825
        %v2557 = vunpack.c.l.b16 %v826
        %v2558 = vunpack.c.h.b16 %v826
        %v2559 = vunpack.c.l.b16 %v827
        %v2560 = vunpack.c.h.b16 %v827
        %v2561 = vunpack.c.l.b16 %v828
        %v2562 = vunpack.c.h.b16 %v828
        %v2563 = vunpack.c.l.b16 %v829
        %v2564 = vunpack.c.h.b16 %v829
        %v2565 = vunpack.c.l.b16 %v830
        %v2566 = vunpack.c.h.b16 %v830
        %v2567 = vunpack.c.l.b16 %v831
        %v2568 = vunpack.c.h.b16 %v831
        %v2569 = vunpack.c.l.b16 %v832
        %v2570 = vunpack.c.h.b16 %v832
        %v2571 = vunpack.c.l.b16 %v833
        %v2572 = vunpack.c.h.b16 %v833
        %v2573 = vunpack.c.l.b16 %v834
        %v2574 = vunpack.c.h.b16 %v834
        %v2575 = vunpack.c.l.b16 %v835
        %v2576 = vunpack.c.h.b16 %v835
        %v2577 = vunpack.c.l.b16 %v836
        %v2578 = vunpack.c.h.b16 %v836
        %v2579 = vunpack.c.l.b16 %v837
        %v2580 = vunpack.c.h.b16 %v837
        %v2581 = vunpack.c.l.b16 %v838
        %v2582 = vunpack.c.h.b16 %v838
        %v2583 = vunpack.c.l.b16 %v839
        %v2584 = vunpack.c.h.b16 %v839
        %v2585 = vunpack.c.l.b16 %v840
        %v2586 = vunpack.c.h.b16 %v840
        %v2587 = vunpack.c.l.b16 %v841
        %v2588 = vunpack.c.h.b16 %v841
        %v2589 = vunpack.c.l.b16 %v842
        %v2590 = vunpack.c.h.b16 %v842
        %v2591 = vunpack.c.l.b16 %v843
        %v2592 = vunpack.c.h.b16 %v843
        %v2593 = vunpack.c.l.b16 %v844
        %v2594 = vunpack.c.h.b16 %v844
        %v2595 = vunpack.c.l.b16 %v845
        %v2596 = vunpack.c.h.b16 %v845
        %v2597 = vunpack.c.l.b16 %v846
        %v2598 = vunpack.c.h.b16 %v846
        %v2599 = vunpack.c.l.b16 %v847
        %v2600 = vunpack.c.h.b16 %v847
        %v2601 = vunpack.c.l.b16 %v848
        %v2602 = vunpack.c.h.b16 %v848
        %v2603 = vunpack.c.l.b16 %v849
        %v2604 = vunpack.c.h.b16 %v849
        %v2605 = vunpack.c.l.b16 %v850
        %v2606 = vunpack.c.h.b16 %v850
        %v2607 = vunpack.c.l.b16 %v851
        %v2608 = vunpack.c.h.b16 %v851
        %v2609 = vunpack.c.l.b16 %v852
        %v2610 = vunpack.c.h.b16 %v852
        %v2611 = vunpack.c.l.b16 %v853
        %v2612 = vunpack.c.h.b16 %v853
        %v2613 = vunpack.c.l.b16 %v854
        %v2614 = vunpack.c.h.b16 %v854
        %v2615 = vunpack.c.l.b16 %v855
        %v2616 = vunpack.c.h.b16 %v855
        %v2617 = vunpack.c.l.b16 %v856
        %v2618 = vunpack.c.h.b16 %v856
        %v2619 = vunpack.c.l.b16 %v857
        %v2620 = vunpack.c.h.b16 %v857
        %v2621 = vunpack.c.l.b16 %v858
        %v2622 = vunpack.c.h.b16 %v858
        %v2623 = vunpack.c.l.b16 %v859
        %v2624 = vunpack.c.h.b16 %v859
        %v2625 = vunpack.c.l.b16 %v860
        %v2626 = vunpack.c.h.b16 %v860
        %v2627 = vunpack.c.l.b16 %v861
        %v2628 = vunpack.c.h.b16 %v861
        %v2629 = vunpack.c.l.b16 %v862
        %v2630 = vunpack.c.h.b16 %v862
        %v2631 = vunpack.c.l.b16 %v863
        %v2632 = vunpack.c.h.b16 %v863
        %v2633 = vunpack.c.l.b16 %v864
        %v2634 = vunpack.c.h.b16 %v864
        %v2635 = vunpack.c.l.b16 %v865
        %v2636 = vunpack.c.h.b16 %v865
        %v2637 = vunpack.c.l.b16 %v866
        %v2638 = vunpack.c.h.b16 %v866
        %v2639 = vunpack.c.l.b16 %v867
        %v2640 = vunpack.c.h.b16 %v867
        %v2641 = vunpack.c.l.b16 %v868
        %v2642 = vunpack.c.h.b16 %v868
        %v2643 = vunpack.c.l.b16 %v869
        %v2644 = vunpack.c.h.b16 %v869
        %v2645 = vunpack.c.l.b16 %v870
        %v2646 = vunpack.c.h.b16 %v870
        %v2647 = vunpack.c.l.b16 %v871
        %v2648 = vunpack.c.h.b16 %v871
        %v2649 = vunpack.c.l.b16 %v872
        %v2650 = vunpack.c.h.b16 %v872
        %v2651 = vunpack.c.l.b16 %v873
        %v2652 = vunpack.c.h.b16 %v873
        %v2653 = vunpack.c.l.b16 %v874
        %v2654 = vunpack.c.h.b16 %v874
        %v2655 = vunpack.c.l.b16 %v875
        %v2656 = vunpack.c.h.b16 %v875
        %v2657 = vunpack.c.l.b16 %v876
        %v2658 = vunpack.c.h.b16 %v876
        %v2659 = vunpack.c.l.b16 %v877
        %v2660 = vunpack.c.h.b16 %v877
        %v2661 = vunpack.c.l.b16 %v878
        %v2662 = vunpack.c.h.b16 %v878
        %v2663 = vunpack.c.l.b16 %v879
        %v2664 = vunpack.c.h.b16 %v879
        %v2665 = vunpack.c.l.b16 %v880
        %v2666 = vunpack.c.h.b16 %v880
        %v2667 = vunpack.c.l.b16 %v881
        %v2668 = vunpack.c.h.b16 %v881
        %v2669 = vunpack.c.l.b16 %v882
        %v2670 = vunpack.c.h.b16 %v882
        %v2671 = vunpack.c.l.b16 %v883
        %v2672 = vunpack.c.h.b16 %v883
        %v2673 = vunpack.c.l.b16 %v884
        %v2674 = vunpack.c.h.b16 %v884
        %v2675 = vunpack.c.l.b16 %v885
        %v2676 = vunpack.c.h.b16 %v885
        %v2677 = vunpack.c.l.b16 %v886
        %v2678 = vunpack.c.h.b16 %v886
        %v2679 = vunpack.c.l.b16 %v887
        %v2680 = vunpack.c.h.b16 %v887
        %v2681 = vunpack.c.l.b16 %v888
        %v2682 = vunpack.c.h.b16 %v888
        %v2683 = vunpack.c.l.b16 %v889
        %v2684 = vunpack.c.h.b16 %v889
        %v2685 = vunpack.c.l.b16 %v890
        %v2686 = vunpack.c.h.b16 %v890
        %v2687 = vunpack.c.l.b16 %v891
        %v2688 = vunpack.c.h.b16 %v891
        %v2689 = vunpack.c.l.b16 %v892
        %v2690 = vunpack.c.h.b16 %v892
        %v2691 = vunpack.c.l.b16 %v893
        %v2692 = vunpack.c.h.b16 %v893
        %v2693 = vunpack.c.l.b16 %v894
        %v2694 = vunpack.c.h.b16 %v894
        %v2695 = vunpack.c.l.b16 %v895
        %v2696 = vunpack.c.h.b16 %v895
        %v2697 = vunpack.c.l.b16 %v896
        %v2698 = vunpack.c.h.b16 %v896
        %v2699 = vunpack.c.l.b16 %v897
        %v2700 = vunpack.c.h.b16 %v897
        %v2701 = vunpack.c.l.b16 %v898
        %v2702 = vunpack.c.h.b16 %v898
        %v2703 = vunpack.c.l.b16 %v899
        %v2704 = vunpack.c.h.b16 %v899
        %v2705 = vunpack.c.l.b16 %v900
        %v2706 = vunpack.c.h.b16 %v900
        %v2707 = vunpack.c.l.b16 %v901
        %v2708 = vunpack.c.h.b16 %v901
        %v2709 = vunpack.c.l.b16 %v902
        %v2710 = vunpack.c.h.b16 %v902
        %v2711 = vunpack.c.l.b16 %v903
        %v2712 = vunpack.c.h.b16 %v903
        %v2713 = vunpack.c.l.b16 %v904
        %v2714 = vunpack.c.h.b16 %v904
        %v2715 = vunpack.c.l.b16 %v905
        %v2716 = vunpack.c.h.b16 %v905
        %v2717 = vunpack.c.l.b16 %v906
        %v2718 = vunpack.c.h.b16 %v906
        %v2719 = vunpack.c.l.b16 %v907
        %v2720 = vunpack.c.h.b16 %v907
        %v2721 = vunpack.c.l.b16 %v908
        %v2722 = vunpack.c.h.b16 %v908
        %v2723 = vunpack.c.l.b16 %v909
        %v2724 = vunpack.c.h.b16 %v909
        %v2725 = vunpack.c.l.b16 %v910
        %v2726 = vunpack.c.h.b16 %v910
        %v2727 = vunpack.c.l.b16 %v911
        %v2728 = vunpack.c.h.b16 %v911
        %v2729 = vunpack.c.l.b16 %v912
        %v2730 = vunpack.c.h.b16 %v912
        %v2731 = vunpack.c.l.b16 %v913
        %v2732 = vunpack.c.h.b16 %v913
        %v2733 = vunpack.c.l.b16 %v914
        %v2734 = vunpack.c.h.b16 %v914
        %v2735 = vunpack.c.l.b16 %v915
        %v2736 = vunpack.c.h.b16 %v915
        %v2737 = vunpack.c.l.b16 %v916
        %v2738 = vunpack.c.h.b16 %v916
        %v2739 = vunpack.c.l.b16 %v917
        %v2740 = vunpack.c.h.b16 %v917
        %v2741 = vunpack.c.l.b16 %v918
        %v2742 = vunpack.c.h.b16 %v918
        %v2743 = vunpack.c.l.b16 %v919
        %v2744 = vunpack.c.h.b16 %v919
        %v2745 = vunpack.c.l.b16 %v920
        %v2746 = vunpack.c.h.b16 %v920
        %v2747 = vunpack.c.l.b16 %v921
        %v2748 = vunpack.c.h.b16 %v921
        %v2749 = vunpack.c.l.b16 %v922
        %v2750 = vunpack.c.h.b16 %v922
        %v2751 = vunpack.c.l.b16 %v923
        %v2752 = vunpack.c.h.b16 %v923
        %v2753 = vunpack.c.l.b16 %v924
        %v2754 = vunpack.c.h.b16 %v924
        %v2755 = vunpack.c.l.b16 %v925
        %v2756 = vunpack.c.h.b16 %v925
        %v2757 = vunpack.c.l.b16 %v926
        %v2758 = vunpack.c.h.b16 %v926
        %v2759 = vunpack.c.l.b16 %v927
        %v2760 = vunpack.c.h.b16 %v927
        %v2761 = vunpack.c.l.b16 %v928
        %v2762 = vunpack.c.h.b16 %v928
        %v2763 = vunpack.c.l.b16 %v929
        %v2764 = vunpack.c.h.b16 %v929
        %v2765 = vunpack.c.l.b16 %v930
        %v2766 = vunpack.c.h.b16 %v930
        %v2767 = vunpack.c.l.b16 %v931
        %v2768 = vunpack.c.h.b16 %v931
        %v2769 = vunpack.c.l.b16 %v932
        %v2770 = vunpack.c.h.b16 %v932
        %v2771 = vunpack.c.l.b16 %v933
        %v2772 = vunpack.c.h.b16 %v933
        %v2773 = vunpack.c.l.b16 %v934
        %v2774 = vunpack.c.h.b16 %v934
        %v2775 = vunpack.c.l.b16 %v935
        %v2776 = vunpack.c.h.b16 %v935
        %v2777 = vunpack.c.l.b16 %v936
        %v2778 = vunpack.c.h.b16 %v936
        %v2779 = vunpack.c.l.b16 %v937
        %v2780 = vunpack.c.h.b16 %v937
        %v2781 = vunpack.c.l.b16 %v938
        %v2782 = vunpack.c.h.b16 %v938
        %v2783 = vunpack.c.l.b16 %v939
        %v2784 = vunpack.c.h.b16 %v939
        %v2785 = vunpack.c.l.b16 %v940
        %v2786 = vunpack.c.h.b16 %v940
        %v2787 = vunpack.c.l.b16 %v941
        %v2788 = vunpack.c.h.b16 %v941
        %v2789 = vunpack.c.l.b16 %v942
        %v2790 = vunpack.c.h.b16 %v942
        %v2791 = vunpack.c.l.b16 %v943
        %v2792 = vunpack.c.h.b16 %v943
        %v2793 = vunpack.c.l.b16 %v944
        %v2794 = vunpack.c.h.b16 %v944
        %v2795 = vunpack.c.l.b16 %v945
        %v2796 = vunpack.c.h.b16 %v945
        %v2797 = vunpack.c.l.b16 %v946
        %v2798 = vunpack.c.h.b16 %v946
        %v2799 = vunpack.c.l.b16 %v947
        %v2800 = vunpack.c.h.b16 %v947
        %v2801 = vunpack.c.l.b16 %v948
        %v2802 = vunpack.c.h.b16 %v948
        %v2803 = vunpack.c.l.b16 %v949
        %v2804 = vunpack.c.h.b16 %v949
        %v2805 = vunpack.c.l.b16 %v950
        %v2806 = vunpack.c.h.b16 %v950
        %v2807 = vunpack.c.l.b16 %v951
        %v2808 = vunpack.c.h.b16 %v951
        %v2809 = vunpack.c.l.b16 %v952
        %v2810 = vunpack.c.h.b16 %v952
        %v2811 = vunpack.c.l.b16 %v953
        %v2812 = vunpack.c.h.b16 %v953
        %v2813 = vunpack.c.l.b16 %v954
        %v2814 = vunpack.c.h.b16 %v954
        %v2815 = vunpack.c.l.b16 %v955
        %v2816 = vunpack.c.h.b16 %v955
        %v2817 = vunpack.c.l.b16 %v956
        %v2818 = vunpack.c.h.b16 %v956
        %v2819 = vunpack.c.l.b16 %v957
        %v2820 = vunpack.c.h.b16 %v957
        %v2821 = vunpack.c.l.b16 %v958
        %v2822 = vunpack.c.h.b16 %v958
        %v2823 = vunpack.c.l.b16 %v959
        %v2824 = vunpack.c.h.b16 %v959
        %v2825 = vunpack.c.l.b16 %v960
        %v2826 = vunpack.c.h.b16 %v960
        %v2827 = vunpack.c.l.b16 %v961
        %v2828 = vunpack.c.h.b16 %v961
        %v2829 = vunpack.c.l.b16 %v962
        %v2830 = vunpack.c.h.b16 %v962
        %v2831 = vunpack.c.l.b16 %v963
        %v2832 = vunpack.c.h.b16 %v963
        %v2833 = vunpack.c.l.b16 %v964
        %v2834 = vunpack.c.h.b16 %v964
        %v2835 = vunpack.c.l.b16 %v965
        %v2836 = vunpack.c.h.b16 %v965
        %v2837 = vunpack.c.l.b16 %v966
        %v2838 = vunpack.c.h.b16 %v966
        %v2839 = vunpack.c.l.b16 %v967
        %v2840 = vunpack.c.h.b16 %v967
        %v2841 = vunpack.c.l.b16 %v968
        %v2842 = vunpack.c.h.b16 %v968
        %v2843 = vunpack.c.l.b16 %v969
        %v2844 = vunpack.c.h.b16 %v969
        %v2845 = vunpack.c.l.b16 %v970
        %v2846 = vunpack.c.h.b16 %v970
        %v2847 = vunpack.c.l.b16 %v971
        %v2848 = vunpack.c.h.b16 %v971
        %v2849 = vunpack.c.l.b16 %v972
        %v2850 = vunpack.c.h.b16 %v972
        %v2851 = vunpack.c.l.b16 %v973
        %v2852 = vunpack.c.h.b16 %v973
        %v2853 = vunpack.c.l.b16 %v974
        %v2854 = vunpack.c.h.b16 %v974
        %v2855 = vunpack.c.l.b16 %v975
        %v2856 = vunpack.c.h.b16 %v975
        %v2857 = vunpack.c.l.b16 %v976
        %v2858 = vunpack.c.h.b16 %v976
        %v2859 = vunpack.c.l.b16 %v977
        %v2860 = vunpack.c.h.b16 %v977
        %v2861 = vunpack.c.l.b16 %v978
        %v2862 = vunpack.c.h.b16 %v978
        %v2863 = vunpack.c.l.b16 %v979
        %v2864 = vunpack.c.h.b16 %v979
        %v2865 = vunpack.c.l.b16 %v980
        %v2866 = vunpack.c.h.b16 %v980
        %v2867 = vunpack.c.l.b16 %v981
        %v2868 = vunpack.c.h.b16 %v981
        %v2869 = vunpack.c.l.b16 %v982
        %v2870 = vunpack.c.h.b16 %v982
        %v2871 = vunpack.c.l.b16 %v983
        %v2872 = vunpack.c.h.b16 %v983
        %v2873 = vunpack.c.l.b16 %v984
        %v2874 = vunpack.c.h.b16 %v984
        %v2875 = vunpack.c.l.b16 %v985
        %v2876 = vunpack.c.h.b16 %v985
        %v2877 = vunpack.c.l.b16 %v986
        %v2878 = vunpack.c.h.b16 %v986
        %v2879 = vunpack.c.l.b16 %v987
        %v2880 = vunpack.c.h.b16 %v987
        %v2881 = vunpack.c.l.b16 %v988
        %v2882 = vunpack.c.h.b16 %v988
        %v2883 = vunpack.c.l.b16 %v989
        %v2884 = vunpack.c.h.b16 %v989
        %v2885 = vunpack.c.l.b16 %v990
        %v2886 = vunpack.c.h.b16 %v990
        %v2887 = vunpack.c.l.b16 %v991
        %v2888 = vunpack.c.h.b16 %v991
        %v2889 = vunpack.c.l.b16 %v992
        %v2890 = vunpack.c.h.b16 %v992
        %v2891 = vunpack.c.l.b16 %v993
        %v2892 = vunpack.c.h.b16 %v993
        %v2893 = vunpack.c.l.b16 %v994
        %v2894 = vunpack.c.h.b16 %v994
        %v2895 = vunpack.c.l.b16 %v995
        %v2896 = vunpack.c.h.b16 %v995
        %v2897 = vunpack.c.l.b16 %v996
        %v2898 = vunpack.c.h.b16 %v996
        %v2899 = vunpack.c.l.b16 %v997
        %v2900 = vunpack.c.h.b16 %v997
        %v2901 = vunpack.c.l.b16 %v998
        %v2902 = vunpack.c.h.b16 %v998
        %v2903 = vpack.c.b16 %v2011, %v2007
        %v2904 = vpack.c.b16 %v2012, %v2008
        %v2905 = vpack.c.b16 %v2013, %v2009
        %v2906 = vpack.c.b16 %v2014, %v2010
        %v2907 = vpack.c.b16 %v2019, %v2015
        %v2908 = vpack.c.b16 %v2020, %v2016
        %v2909 = vpack.c.b16 %v2021, %v2017
        %v2910 = vpack.c.b16 %v2022, %v2018
        %v2911 = vpack.c.b16 %v2027, %v2023
        %v2912 = vpack.c.b16 %v2028, %v2024
        %v2913 = vpack.c.b16 %v2029, %v2025
        %v2914 = vpack.c.b16 %v2030, %v2026
        %v2915 = vpack.c.b16 %v2035, %v2031
        %v2916 = vpack.c.b16 %v2036, %v2032
        %v2917 = vpack.c.b16 %v2037, %v2033
        %v2918 = vpack.c.b16 %v2038, %v2034
        %v2919 = vpack.c.b16 %v2043, %v2039
        %v2920 = vpack.c.b16 %v2044, %v2040
        %v2921 = vpack.c.b16 %v2045, %v2041
        %v2922 = vpack.c.b16 %v2046, %v2042
        %v2923 = vpack.c.b16 %v2051, %v2047
        %v2924 = vpack.c.b16 %v2052, %v2048
        %v2925 = vpack.c.b16 %v2053, %v2049
        %v2926 = vpack.c.b16 %v2054, %v2050
        %v2927 = vpack.c.b16 %v2059, %v2055
        %v2928 = vpack.c.b16 %v2060, %v2056
        %v2929 = vpack.c.b16 %v2061, %v2057
        %v2930 = vpack.c.b16 %v2062, %v2058
        %v2931 = vpack.c.b16 %v2067, %v2063
        %v2932 = vpack.c.b16 %v2068, %v2064
        %v2933 = vpack.c.b16 %v2069, %v2065
        %v2934 = vpack.c.b16 %v2070, %v2066
        %v2935 = vpack.c.b16 %v2075, %v2071
        %v2936 = vpack.c.b16 %v2076, %v2072
        %v2937 = vpack.c.b16 %v2077, %v2073
        %v2938 = vpack.c.b16 %v2078, %v2074
        %v2939 = vpack.c.b16 %v2083, %v2079
        %v2940 = vpack.c.b16 %v2084, %v2080
        %v2941 = vpack.c.b16 %v2085, %v2081
        %v2942 = vpack.c.b16 %v2086, %v2082
        %v2943 = vpack.c.b16 %v2091, %v2087
        %v2944 = vpack.c.b16 %v2092, %v2088
        %v2945 = vpack.c.b16 %v2093, %v2089
        %v2946 = vpack.c.b16 %v2094, %v2090
        %v2947 = vpack.c.b16 %v2099, %v2095
        %v2948 = vpack.c.b16 %v2100, %v2096
        %v2949 = vpack.c.b16 %v2101, %v2097
        %v2950 = vpack.c.b16 %v2102, %v2098
        %v2951 = vpack.c.b16 %v2107, %v2103
        %v2952 = vpack.c.b16 %v2108, %v2104
        %v2953 = vpack.c.b16 %v2109, %v2105
        %v2954 = vpack.c.b16 %v2110, %v2106
        %v2955 = vpack.c.b16 %v2115, %v2111
        %v2956 = vpack.c.b16 %v2116, %v2112
        %v2957 = vpack.c.b16 %v2117, %v2113
        %v2958 = vpack.c.b16 %v2118, %v2114
        %v2959 = vpack.c.b16 %v2123, %v2119
        %v2960 = vpack.c.b16 %v2124, %v2120
        %v2961 = vpack.c.b16 %v2125, %v2121
        %v2962 = vpack.c.b16 %v2126, %v2122
        %v2963 = vpack.c.b16 %v2131, %v2127
        %v2964 = vpack.c.b16 %v2132, %v2128
        %v2965 = vpack.c.b16 %v2133, %v2129
        %v2966 = vpack.c.b16 %v2134, %v2130
        %v2967 = vpack.c.b16 %v2139, %v2135
        %v2968 = vpack.c.b16 %v2140, %v2136
        %v2969 = vpack.c.b16 %v2141, %v2137
        %v2970 = vpack.c.b16 %v2142, %v2138
        %v2971 = vpack.c.b16 %v2147, %v2143
        %v2972 = vpack.c.b16 %v2148, %v2144
        %v2973 = vpack.c.b16 %v2149, %v2145
        %v2974 = vpack.c.b16 %v2150, %v2146
        %v2975 = vpack.c.b16 %v2155, %v2151
        %v2976 = vpack.c.b16 %v2156, %v2152
        %v2977 = vpack.c.b16 %v2157, %v2153
        %v2978 = vpack.c.b16 %v2158, %v2154
        %v2979 = vpack.c.b16 %v2163, %v2159
        %v2980 = vpack.c.b16 %v2164, %v2160
        %v2981 = vpack.c.b16 %v2165, %v2161
        %v2982 = vpack.c.b16 %v2166, %v2162
        %v2983 = vpack.c.b16 %v2171, %v2167
        %v2984 = vpack.c.b16 %v2172, %v2168
        %v2985 = vpack.c.b16 %v2173, %v2169
        %v2986 = vpack.c.b16 %v2174, %v2170
        %v2987 = vpack.c.b16 %v2179, %v2175
        %v2988 = vpack.c.b16 %v2180, %v2176
        %v2989 = vpack.c.b16 %v2181, %v2177
        %v2990 = vpack.c.b16 %v2182, %v2178
        %v2991 = vpack.c.b16 %v2187, %v2183
        %v2992 = vpack.c.b16 %v2188, %v2184
        %v2993 = vpack.c.b16 %v2189, %v2185
        %v2994 = vpack.c.b16 %v2190, %v2186
        %v2995 = vpack.c.b16 %v2195, %v2191
        %v2996 = vpack.c.b16 %v2196, %v2192
        %v2997 = vpack.c.b16 %v2197, %v2193
        %v2998 = vpack.c.b16 %v2198, %v2194
        %v2999 = vpack.c.b16 %v2203, %v2199
        %v3000 = vpack.c.b16 %v2204, %v2200
        %v3001 = vpack.c.b16 %v2205, %v2201
        %v3002 = vpack.c.b16 %v2206, %v2202
        %v3003 = vpack.c.b16 %v2211, %v2207
        %v3004 = vpack.c.b16 %v2212, %v2208
        %v3005 = vpack.c.b16 %v2213, %v2209
        %v3006 = vpack.c.b16 %v2214, %v2210
        %v3007 = vpack.c.b16 %v2219, %v2215
        %v3008 = vpack.c.b16 %v2220, %v2216
        %v3009 = vpack.c.b16 %v2221, %v2217
        %v3010 = vpack.c.b16 %v2222, %v2218
        %v3011 = vpack.c.b16 %v2227, %v2223
        %v3012 = vpack.c.b16 %v2228, %v2224
        %v3013 = vpack.c.b16 %v2229, %v2225
        %v3014 = vpack.c.b16 %v2230, %v2226
        %v3015 = vpack.c.b16 %v2235, %v2231
        %v3016 = vpack.c.b16 %v2236, %v2232
        %v3017 = vpack.c.b16 %v2237, %v2233
        %v3018 = vpack.c.b16 %v2238, %v2234
        %v3019 = vpack.c.b16 %v2243, %v2239
        %v3020 = vpack.c.b16 %v2244, %v2240
        %v3021 = vpack.c.b16 %v2245, %v2241
        %v3022 = vpack.c.b16 %v2246, %v2242
        %v3023 = vpack.c.b16 %v2251, %v2247
        %v3024 = vpack.c.b16 %v2252, %v2248
        %v3025 = vpack.c.b16 %v2253, %v2249
        %v3026 = vpack.c.b16 %v2254, %v2250
        %v3027 = vpack.c.b16 %v2259, %v2255
        %v3028 = vpack.c.b16 %v2260, %v2256
        %v3029 = vpack.c.b16 %v2261, %v2257
        %v3030 = vpack.c.b16 %v2262, %v2258
        %v3031 = vpack.c.b16 %v2267, %v2263
        %v3032 = vpack.c.b16 %v2268, %v2264
        %v3033 = vpack.c.b16 %v2269, %v2265
        %v3034 = vpack.c.b16 %v2270, %v2266
        %v3035 = vpack.c.b16 %v2275, %v2271
        %v3036 = vpack.c.b16 %v2276, %v2272
        %v3037 = vpack.c.b16 %v2277, %v2273
        %v3038 = vpack.c.b16 %v2278, %v2274
        %v3039 = vpack.c.b16 %v2283, %v2279
        %v3040 = vpack.c.b16 %v2284, %v2280
        %v3041 = vpack.c.b16 %v2285, %v2281
        %v3042 = vpack.c.b16 %v2286, %v2282
        %v3043 = vpack.c.b16 %v2291, %v2287
        %v3044 = vpack.c.b16 %v2292, %v2288
        %v3045 = vpack.c.b16 %v2293, %v2289
        %v3046 = vpack.c.b16 %v2294, %v2290
        %v3047 = vpack.c.b16 %v2299, %v2295
        %v3048 = vpack.c.b16 %v2300, %v2296
        %v3049 = vpack.c.b16 %v2301, %v2297
        %v3050 = vpack.c.b16 %v2302, %v2298
        %v3051 = vpack.c.b16 %v2307, %v2303
        %v3052 = vpack.c.b16 %v2308, %v2304
        %v3053 = vpack.c.b16 %v2309, %v2305
        %v3054 = vpack.c.b16 %v2310, %v2306
        %v3055 = vpack.c.b16 %v2315, %v2311
        %v3056 = vpack.c.b16 %v2316, %v2312
        %v3057 = vpack.c.b16 %v2317, %v2313
        %v3058 = vpack.c.b16 %v2318, %v2314
        %v3059 = vpack.c.b16 %v2323, %v2319
        %v3060 = vpack.c.b16 %v2324, %v2320
        %v3061 = vpack.c.b16 %v2325, %v2321
        %v3062 = vpack.c.b16 %v2326, %v2322
        %v3063 = vpack.c.b16 %v2331, %v2327
        %v3064 = vpack.c.b16 %v2332, %v2328
        %v3065 = vpack.c.b16 %v2333, %v2329
        %v3066 = vpack.c.b16 %v2334, %v2330
        %v3067 = vpack.c.b16 %v2339, %v2335
        %v3068 = vpack.c.b16 %v2340, %v2336
        %v3069 = vpack.c.b16 %v2341, %v2337
        %v3070 = vpack.c.b16 %v2342, %v2338
        %v3071 = vpack.c.b16 %v2347, %v2343
        %v3072 = vpack.c.b16 %v2348, %v2344
        %v3073 = vpack.c.b16 %v2349, %v2345
        %v3074 = vpack.c.b16 %v2350, %v2346
        %v3075 = vpack.c.b16 %v2355, %v2351
        %v3076 = vpack.c.b16 %v2356, %v2352
        %v3077 = vpack.c.b16 %v2357, %v2353
        %v3078 = vpack.c.b16 %v2358, %v2354
        %v3079 = vpack.c.b16 %v2363, %v2359
        %v3080 = vpack.c.b16 %v2364, %v2360
        %v3081 = vpack.c.b16 %v2365, %v2361
        %v3082 = vpack.c.b16 %v2366, %v2362
        %v3083 = vpack.c.b16 %v2371, %v2367
        %v3084 = vpack.c.b16 %v2372, %v2368
        %v3085 = vpack.c.b16 %v2373, %v2369
        %v3086 = vpack.c.b16 %v2374, %v2370
        %v3087 = vpack.c.b16 %v2379, %v2375
        %v3088 = vpack.c.b16 %v2380, %v2376
        %v3089 = vpack.c.b16 %v2381, %v2377
        %v3090 = vpack.c.b16 %v2382, %v2378
        %v3091 = vpack.c.b16 %v2387, %v2383
        %v3092 = vpack.c.b16 %v2388, %v2384
        %v3093 = vpack.c.b16 %v2389, %v2385
        %v3094 = vpack.c.b16 %v2390, %v2386
        %v3095 = vpack.c.b16 %v2395, %v2391
        %v3096 = vpack.c.b16 %v2396, %v2392
        %v3097 = vpack.c.b16 %v2397, %v2393
        %v3098 = vpack.c.b16 %v2398, %v2394
        %v3099 = vpack.c.b16 %v2403, %v2399
        %v3100 = vpack.c.b16 %v2404, %v2400
        %v3101 = vpack.c.b16 %v2405, %v2401
        %v3102 = vpack.c.b16 %v2406, %v2402
        %v3103 = vpack.c.b16 %v2411, %v2407
        %v3104 = vpack.c.b16 %v2412, %v2408
        %v3105 = vpack.c.b16 %v2413, %v2409
        %v3106 = vpack.c.b16 %v2414, %v2410
        %v3107 = vpack.c.b16 %v2419, %v2415
        %v3108 = vpack.c.b16 %v2420, %v2416
        %v3109 = vpack.c.b16 %v2421, %v2417
        %v3110 = vpack.c.b16 %v2422, %v2418
        %v3111 = vpack.c.b16 %v2427, %v2423
        %v3112 = vpack.c.b16 %v2428, %v2424
        %v3113 = vpack.c.b16 %v2429, %v2425
        %v3114 = vpack.c.b16 %v2430, %v2426
        %v3115 = vpack.c.b16 %v2435, %v2431
        %v3116 = vpack.c.b16 %v2436, %v2432
        %v3117 = vpack.c.b16 %v2437, %v2433
        %v3118 = vpack.c.b16 %v2438, %v2434
        %v3119 = vpack.c.b16 %v2443, %v2439
        %v3120 = vpack.c.b16 %v2444, %v2440
        %v3121 = vpack.c.b16 %v2445, %v2441
        %v3122 = vpack.c.b16 %v2446, %v2442
        %v3123 = vpack.c.b16 %v2451, %v2447
        %v3124 = vpack.c.b16 %v2452, %v2448
        %v3125 = vpack.c.b16 %v2453, %v2449
        %v3126 = vpack.c.b16 %v2454, %v2450
        %v3127 = vpack.c.b16 %v2459, %v2455
        %v3128 = vpack.c.b16 %v2460, %v2456
        %v3129 = vpack.c.b16 %v2461, %v2457
        %v3130 = vpack.c.b16 %v2462, %v2458
        %v3131 = vpack.c.b16 %v2467, %v2463
        %v3132 = vpack.c.b16 %v2468, %v2464
        %v3133 = vpack.c.b16 %v2469, %v2465
        %v3134 = vpack.c.b16 %v2470, %v2466
        %v3135 = vpack.c.b16 %v2475, %v2471
        %v3136 = vpack.c.b16 %v2476, %v2472
        %v3137 = vpack.c.b16 %v2477, %v2473
        %v3138 = vpack.c.b16 %v2478, %v2474
        %v3139 = vpack.c.b16 %v2483, %v2479
        %v3140 = vpack.c.b16 %v2484, %v2480
        %v3141 = vpack.c.b16 %v2485, %v2481
        %v3142 = vpack.c.b16 %v2486, %v2482
        %v3143 = vpack.c.b16 %v2491, %v2487
        %v3144 = vpack.c.b16 %v2492, %v2488
        %v3145 = vpack.c.b16 %v2493, %v2489
        %v3146 = vpack.c.b16 %v2494, %v2490
        %v3147 = vpack.c.b16 %v2499, %v2495
        %v3148 = vpack.c.b16 %v2500, %v2496
        %v3149 = vpack.c.b16 %v2501, %v2497
        %v3150 = vpack.c.b16 %v2502, %v2498
        %v3151 = vpack.c.b16 %v2507, %v2503
        %v3152 = vpack.c.b16 %v2508, %v2504
        %v3153 = vpack.c.b16 %v2509, %v2505
        %v3154 = vpack.c.b16 %v2510, %v2506
        %v3155 = vpack.c.b16 %v2515, %v2511
        %v3156 = vpack.c.b16 %v2516, %v2512
        %v3157 = vpack.c.b16 %v2517, %v2513
        %v3158 = vpack.c.b16 %v2518, %v2514
        %v3159 = vpack.c.b16 %v2523, %v2519
        %v3160 = vpack.c.b16 %v2524, %v2520
        %v3161 = vpack.c.b16 %v2525, %v2521
        %v3162 = vpack.c.b16 %v2526, %v2522
        %v3163 = vpack.c.b16 %v2531, %v2527
        %v3164 = vpack.c.b16 %v2532, %v2528
        %v3165 = vpack.c.b16 %v2533, %v2529
        %v3166 = vpack.c.b16 %v2534, %v2530
        %v3167 = vpack.c.b16 %v2539, %v2535
        %v3168 = vpack.c.b16 %v2540, %v2536
        %v3169 = vpack.c.b16 %v2541, %v2537
        %v3170 = vpack.c.b16 %v2542, %v2538
        %v3171 = vpack.c.b16 %v2547, %v2543
        %v3172 = vpack.c.b16 %v2548, %v2544
        %v3173 = vpack.c.b16 %v2549, %v2545
        %v3174 = vpack.c.b16 %v2550, %v2546
        %v3175 = vpack.c.b16 %v2555, %v2551
        %v3176 = vpack.c.b16 %v2556, %v2552
        %v3177 = vpack.c.b16 %v2557, %v2553
        %v3178 = vpack.c.b16 %v2558, %v2554
        %v3179 = vpack.c.b16 %v2563, %v2559
        %v3180 = vpack.c.b16 %v2564, %v2560
        %v3181 = vpack.c.b16 %v2565, %v2561
        %v3182 = vpack.c.b16 %v2566, %v2562
        %v3183 = vpack.c.b16 %v2571, %v2567
        %v3184 = vpack.c.b16 %v2572, %v2568
        %v3185 = vpack.c.b16 %v2573, %v2569
        %v3186 = vpack.c.b16 %v2574, %v2570
        %v3187 = vpack.c.b16 %v2579, %v2575
        %v3188 = vpack.c.b16 %v2580, %v2576
        %v3189 = vpack.c.b16 %v2581, %v2577
        %v3190 = vpack.c.b16 %v2582, %v2578
        %v3191 = vpack.c.b16 %v2587, %v2583
        %v3192 = vpack.c.b16 %v2588, %v2584
        %v3193 = vpack.c.b16 %v2589, %v2585
        %v3194 = vpack.c.b16 %v2590, %v2586
        %v3195 = vpack.c.b16 %v2595, %v2591
        %v3196 = vpack.c.b16 %v2596, %v2592
        %v3197 = vpack.c.b16 %v2597, %v2593
        %v3198 = vpack.c.b16 %v2598, %v2594
        %v3199 = vpack.c.b16 %v2603, %v2599
        %v3200 = vpack.c.b16 %v2604, %v2600
        %v3201 = vpack.c.b16 %v2605, %v2601
        %v3202 = vpack.c.b16 %v2606, %v2602
        %v3203 = vpack.c.b16 %v2611, %v2607
        %v3204 = vpack.c.b16 %v2612, %v2608
        %v3205 = vpack.c.b16 %v2613, %v2609
        %v3206 = vpack.c.b16 %v2614, %v2610
        %v3207 = vpack.c.b16 %v2619, %v2615
        %v3208 = vpack.c.b16 %v2620, %v2616
        %v3209 = vpack.c.b16 %v2621, %v2617
        %v3210 = vpack.c.b16 %v2622, %v2618
        %v3211 = vpack.c.b16 %v2627, %v2623
        %v3212 = vpack.c.b16 %v2628, %v2624
        %v3213 = vpack.c.b16 %v2629, %v2625
        %v3214 = vpack.c.b16 %v2630, %v2626
        %v3215 = vpack.c.b16 %v2635, %v2631
        %v3216 = vpack.c.b16 %v2636, %v2632
        %v3217 = vpack.c.b16 %v2637, %v2633
        %v3218 = vpack.c.b16 %v2638, %v2634
        %v3219 = vpack.c.b16 %v2643, %v2639
        %v3220 = vpack.c.b16 %v2644, %v2640
        %v3221 = vpack.c.b16 %v2645, %v2641
        %v3222 = vpack.c.b16 %v2646, %v2642
        %v3223 = vpack.c.b16 %v2651, %v2647
        %v3224 = vpack.c.b16 %v2652, %v2648
        %v3225 = vpack.c.b16 %v2653, %v2649
        %v3226 = vpack.c.b16 %v2654, %v2650
        %v3227 = vpack.c.b16 %v2659, %v2655
        %v3228 = vpack.c.b16 %v2660, %v2656
        %v3229 = vpack.c.b16 %v2661, %v2657
        %v3230 = vpack.c.b16 %v2662, %v2658
        %v3231 = vpack.c.b16 %v2667, %v2663
        %v3232 = vpack.c.b16 %v2668, %v2664
        %v3233 = vpack.c.b16 %v2669, %v2665
        %v3234 = vpack.c.b16 %v2670, %v2666
        %v3235 = vpack.c.b16 %v2675, %v2671
        %v3236 = vpack.c.b16 %v2676, %v2672
        %v3237 = vpack.c.b16 %v2677, %v2673
        %v3238 = vpack.c.b16 %v2678, %v2674
        %v3239 = vpack.c.b16 %v2683, %v2679
        %v3240 = vpack.c.b16 %v2684, %v2680
        %v3241 = vpack.c.b16 %v2685, %v2681
        %v3242 = vpack.c.b16 %v2686, %v2682
        %v3243 = vpack.c.b16 %v2691, %v2687
        %v3244 = vpack.c.b16 %v2692, %v2688
        %v3245 = vpack.c.b16 %v2693, %v2689
        %v3246 = vpack.c.b16 %v2694, %v2690
        %v3247 = vpack.c.b16 %v2699, %v2695
        %v3248 = vpack.c.b16 %v2700, %v2696
        %v3249 = vpack.c.b16 %v2701, %v2697
        %v3250 = vpack.c.b16 %v2702, %v2698
        %v3251 = vpack.c.b16 %v2707, %v2703
        %v3252 = vpack.c.b16 %v2708, %v2704
        %v3253 = vpack.c.b16 %v2709, %v2705
        %v3254 = vpack.c.b16 %v2710, %v2706
        %v3255 = vpack.c.b16 %v2715, %v2711
        %v3256 = vpack.c.b16 %v2716, %v2712
        %v3257 = vpack.c.b16 %v2717, %v2713
        %v3258 = vpack.c.b16 %v2718, %v2714
        %v3259 = vpack.c.b16 %v2723, %v2719
        %v3260 = vpack.c.b16 %v2724, %v2720
        %v3261 = vpack.c.b16 %v2725, %v2721
        %v3262 = vpack.c.b16 %v2726, %v2722
        %v3263 = vpack.c.b16 %v2731, %v2727
        %v3264 = vpack.c.b16 %v2732, %v2728
        %v3265 = vpack.c.b16 %v2733, %v2729
        %v3266 = vpack.c.b16 %v2734, %v2730
        %v3267 = vpack.c.b16 %v2739, %v2735
        %v3268 = vpack.c.b16 %v2740, %v2736
        %v3269 = vpack.c.b16 %v2741, %v2737
        %v3270 = vpack.c.b16 %v2742, %v2738
        %v3271 = vpack.c.b16 %v2747, %v2743
        %v3272 = vpack.c.b16 %v2748, %v2744
        %v3273 = vpack.c.b16 %v2749, %v2745
        %v3274 = vpack.c.b16 %v2750, %v2746
        %v3275 = vpack.c.b16 %v2755, %v2751
        %v3276 = vpack.c.b16 %v2756, %v2752
        %v3277 = vpack.c.b16 %v2757, %v2753
        %v3278 = vpack.c.b16 %v2758, %v2754
        %v3279 = vpack.c.b16 %v2763, %v2759
        %v3280 = vpack.c.b16 %v2764, %v2760
        %v3281 = vpack.c.b16 %v2765, %v2761
        %v3282 = vpack.c.b16 %v2766, %v2762
        %v3283 = vpack.c.b16 %v2771, %v2767
        %v3284 = vpack.c.b16 %v2772, %v2768
        %v3285 = vpack.c.b16 %v2773, %v2769
        %v3286 = vpack.c.b16 %v2774, %v2770
        %v3287 = vpack.c.b16 %v2779, %v2775
        %v3288 = vpack.c.b16 %v2780, %v2776
        %v3289 = vpack.c.b16 %v2781, %v2777
        %v3290 = vpack.c.b16 %v2782, %v2778
        %v3291 = vpack.c.b16 %v2787, %v2783
        %v3292 = vpack.c.b16 %v2788, %v2784
        %v3293 = vpack.c.b16 %v2789, %v2785
        %v3294 = vpack.c.b16 %v2790, %v2786
        %v3295 = vpack.c.b16 %v2795, %v2791
        %v3296 = vpack.c.b16 %v2796, %v2792
        %v3297 = vpack.c.b16 %v2797, %v2793
        %v3298 = vpack.c.b16 %v2798, %v2794
        %v3299 = vpack.c.b16 %v2803, %v2799
        %v3300 = vpack.c.b16 %v2804, %v2800
        %v3301 = vpack.c.b16 %v2805, %v2801
        %v3302 = vpack.c.b16 %v2806, %v2802
        %v3303 = vpack.c.b16 %v2811, %v2807
        %v3304 = vpack.c.b16 %v2812, %v2808
        %v3305 = vpack.c.b16 %v2813, %v2809
        %v3306 = vpack.c.b16 %v2814, %v2810
        %v3307 = vpack.c.b16 %v2819, %v2815
        %v3308 = vpack.c.b16 %v2820, %v2816
        %v3309 = vpack.c.b16 %v2821, %v2817
        %v3310 = vpack.c.b16 %v2822, %v2818
        %v3311 = vpack.c.b16 %v2827, %v2823
        %v3312 = vpack.c.b16 %v2828, %v2824
        %v3313 = vpack.c.b16 %v2829, %v2825
        %v3314 = vpack.c.b16 %v2830, %v2826
        %v3315 = vpack.c.b16 %v2835, %v2831
        %v3316 = vpack.c.b16 %v2836, %v2832
        %v3317 = vpack.c.b16 %v2837, %v2833
        %v3318 = vpack.c.b16 %v2838, %v2834
        %v3319 = vpack.c.b16 %v2843, %v2839
        %v3320 = vpack.c.b16 %v2844, %v2840
        %v3321 = vpack.c.b16 %v2845, %v2841
        %v3322 = vpack.c.b16 %v2846, %v2842
        %v3323 = vpack.c.b16 %v2851, %v2847
        %v3324 = vpack.c.b16 %v2852, %v2848
        %v3325 = vpack.c.b16 %v2853, %v2849
        %v3326 = vpack.c.b16 %v2854, %v2850
        %v3327 = vpack.c.b16 %v2859, %v2855
        %v3328 = vpack.c.b16 %v2860, %v2856
        %v3329 = vpack.c.b16 %v2861, %v2857
        %v3330 = vpack.c.b16 %v2862, %v2858
        %v3331 = vpack.c.b16 %v2867, %v2863
        %v3332 = vpack.c.b16 %v2868, %v2864
        %v3333 = vpack.c.b16 %v2869, %v2865
        %v3334 = vpack.c.b16 %v2870, %v2866
        %v3335 = vpack.c.b16 %v2875, %v2871
        %v3336 = vpack.c.b16 %v2876, %v2872
        %v3337 = vpack.c.b16 %v2877, %v2873
        %v3338 = vpack.c.b16 %v2878, %v2874
        %v3339 = vpack.c.b16 %v2883, %v2879
        %v3340 = vpack.c.b16 %v2884, %v2880
        %v3341 = vpack.c.b16 %v2885, %v2881
        %v3342 = vpack.c.b16 %v2886, %v2882
        %v3343 = vpack.c.b16 %v2891, %v2887
        %v3344 = vpack.c.b16 %v2892, %v2888
        %v3345 = vpack.c.b16 %v2893, %v2889
        %v3346 = vpack.c.b16 %v2894, %v2890
        %v3347 = vpack.c.b16 %v2899, %v2895
        %v3348 = vpack.c.b16 %v2900, %v2896
        %v3349 = vpack.c.b16 %v2901, %v2897
        %v3350 = vpack.c.b16 %v2902, %v2898
        %3799 = vmatpush.bf16.msra.mxu0 %v2931
        %3800 = vmatpush.bf16.msra.mxu0 %v2927
        %3801 = vmatpush.bf16.msra.mxu0 %v2923
        %3802 = vmatpush.bf16.msra.mxu0 %v2919
        %3803 = vmatpush.bf16.msra.mxu0 %v2915
        %3804 = vmatpush.bf16.msra.mxu0 %v2911
        %3805 = vmatpush.bf16.msra.mxu0 %v2907
        %3806 = vmatpush.bf16.msra.mxu0 %v2903
        %3807 = vmatmul.bf16.gmra.mxu0 %v1335
        %v3808 = vpop.f32.mrf.mxu0
        %v3809 = vadd.f32 0.0, %v3808
        %v3810 = vpop.f32.mrf.mxu0
        %v3811 = vadd.f32 0.0, %v3810
        %3812 = vmatmul.bf16.gmra.mxu0 %v1349
        %v3813 = vpop.f32.mrf.mxu0
        %v3814 = vadd.f32 0.0, %v3813
        %v3815 = vpop.f32.mrf.mxu0
        %v3816 = vadd.f32 0.0, %v3815
        %3817 = vmatmul.bf16.gmra.mxu0 %v1363
        %v3818 = vpop.f32.mrf.mxu0
        %v3819 = vadd.f32 0.0, %v3818
        %v3820 = vpop.f32.mrf.mxu0
        %v3821 = vadd.f32 0.0, %v3820
        %3822 = vmatmul.bf16.gmra.mxu0 %v1377
        %v3823 = vpop.f32.mrf.mxu0
        %v3824 = vadd.f32 0.0, %v3823
        %v3825 = vpop.f32.mrf.mxu0
        %v3826 = vadd.f32 0.0, %v3825
        %3827 = vmatmul.bf16.gmra.mxu0 %v1391
        %v3828 = vpop.f32.mrf.mxu0
        %v3829 = vadd.f32 0.0, %v3828
        %v3830 = vpop.f32.mrf.mxu0
        %v3831 = vadd.f32 0.0, %v3830
        %3832 = vmatmul.bf16.gmra.mxu0 %v1405
        %v3833 = vpop.f32.mrf.mxu0
        %v3834 = vadd.f32 0.0, %v3833
        %v3835 = vpop.f32.mrf.mxu0
        %v3836 = vadd.f32 0.0, %v3835
        %3837 = vmatmul.bf16.gmra.mxu0 %v1419
        %v3838 = vpop.f32.mrf.mxu0
        %v3839 = vadd.f32 0.0, %v3838
        %v3840 = vpop.f32.mrf.mxu0
        %v3841 = vadd.f32 0.0, %v3840
        %3842 = vmatmul.bf16.gmra.mxu0 %v1433
        %v3843 = vpop.f32.mrf.mxu0
        %v3844 = vadd.f32 0.0, %v3843
        %v3845 = vpop.f32.mrf.mxu0
        %v3846 = vadd.f32 0.0, %v3845
        %3847 = vdwg.mxu0
        %3848 = vmatpush.bf16.msra.mxu0 %v2963
        %3849 = vmatpush.bf16.msra.mxu0 %v2959
        %3850 = vmatpush.bf16.msra.mxu0 %v2955
        %3851 = vmatpush.bf16.msra.mxu0 %v2951
        %3852 = vmatpush.bf16.msra.mxu0 %v2947
        %3853 = vmatpush.bf16.msra.mxu0 %v2943
        %3854 = vmatpush.bf16.msra.mxu0 %v2939
        %3855 = vmatpush.bf16.msra.mxu0 %v2935
        %3856 = vmatmul.bf16.gmra.mxu0 %v1336
        %v3857 = vpop.f32.mrf.mxu0
        %v3858 = vadd.f32 %v3809, %v3857
        %v3859 = vpop.f32.mrf.mxu0
        %v3860 = vadd.f32 %v3811, %v3859
        %3861 = vmatmul.bf16.gmra.mxu0 %v1350
        %v3862 = vpop.f32.mrf.mxu0
        %v3863 = vadd.f32 %v3814, %v3862
        %v3864 = vpop.f32.mrf.mxu0
        %v3865 = vadd.f32 %v3816, %v3864
        %3866 = vmatmul.bf16.gmra.mxu0 %v1364
        %v3867 = vpop.f32.mrf.mxu0
        %v3868 = vadd.f32 %v3819, %v3867
        %v3869 = vpop.f32.mrf.mxu0
        %v3870 = vadd.f32 %v3821, %v3869
        %3871 = vmatmul.bf16.gmra.mxu0 %v1378
        %v3872 = vpop.f32.mrf.mxu0
        %v3873 = vadd.f32 %v3824, %v3872
        %v3874 = vpop.f32.mrf.mxu0
        %v3875 = vadd.f32 %v3826, %v3874
        %3876 = vmatmul.bf16.gmra.mxu0 %v1392
        %v3877 = vpop.f32.mrf.mxu0
        %v3878 = vadd.f32 %v3829, %v3877
        %v3879 = vpop.f32.mrf.mxu0
        %v3880 = vadd.f32 %v3831, %v3879
        %3881 = vmatmul.bf16.gmra.mxu0 %v1406
        %v3882 = vpop.f32.mrf.mxu0
        %v3883 = vadd.f32 %v3834, %v3882
        %v3884 = vpop.f32.mrf.mxu0
        %v3885 = vadd.f32 %v3836, %v3884
        %3886 = vmatmul.bf16.gmra.mxu0 %v1420
        %v3887 = vpop.f32.mrf.mxu0
        %v3888 = vadd.f32 %v3839, %v3887
        %v3889 = vpop.f32.mrf.mxu0
        %v3890 = vadd.f32 %v3841, %v3889
        %3891 = vmatmul.bf16.gmra.mxu0 %v1434
        %v3892 = vpop.f32.mrf.mxu0
        %v3893 = vadd.f32 %v3844, %v3892
        %v3894 = vpop.f32.mrf.mxu0
        %v3895 = vadd.f32 %v3846, %v3894
        %3896 = vdwg.mxu0
        %3897 = vmatpush.bf16.msra.mxu0 %v2995
        %3898 = vmatpush.bf16.msra.mxu0 %v2991
        %3899 = vmatpush.bf16.msra.mxu0 %v2987
        %3900 = vmatpush.bf16.msra.mxu0 %v2983
        %3901 = vmatpush.bf16.msra.mxu0 %v2979
        %3902 = vmatpush.bf16.msra.mxu0 %v2975
        %3903 = vmatpush.bf16.msra.mxu0 %v2971
        %3904 = vmatpush.bf16.msra.mxu0 %v2967
        %3905 = vmatmul.bf16.gmra.mxu0 %v1337
        %v3906 = vpop.f32.mrf.mxu0
        %v3907 = vadd.f32 %v3858, %v3906
        %v3908 = vpop.f32.mrf.mxu0
        %v3909 = vadd.f32 %v3860, %v3908
        %3910 = vmatmul.bf16.gmra.mxu0 %v1351
        %v3911 = vpop.f32.mrf.mxu0
        %v3912 = vadd.f32 %v3863, %v3911
        %v3913 = vpop.f32.mrf.mxu0
        %v3914 = vadd.f32 %v3865, %v3913
        %3915 = vmatmul.bf16.gmra.mxu0 %v1365
        %v3916 = vpop.f32.mrf.mxu0
        %v3917 = vadd.f32 %v3868, %v3916
        %v3918 = vpop.f32.mrf.mxu0
        %v3919 = vadd.f32 %v3870, %v3918
        %3920 = vmatmul.bf16.gmra.mxu0 %v1379
        %v3921 = vpop.f32.mrf.mxu0
        %v3922 = vadd.f32 %v3873, %v3921
        %v3923 = vpop.f32.mrf.mxu0
        %v3924 = vadd.f32 %v3875, %v3923
        %3925 = vmatmul.bf16.gmra.mxu0 %v1393
        %v3926 = vpop.f32.mrf.mxu0
        %v3927 = vadd.f32 %v3878, %v3926
        %v3928 = vpop.f32.mrf.mxu0
        %v3929 = vadd.f32 %v3880, %v3928
        %3930 = vmatmul.bf16.gmra.mxu0 %v1407
        %v3931 = vpop.f32.mrf.mxu0
        %v3932 = vadd.f32 %v3883, %v3931
        %v3933 = vpop.f32.mrf.mxu0
        %v3934 = vadd.f32 %v3885, %v3933
        %3935 = vmatmul.bf16.gmra.mxu0 %v1421
        %v3936 = vpop.f32.mrf.mxu0
        %v3937 = vadd.f32 %v3888, %v3936
        %v3938 = vpop.f32.mrf.mxu0
        %v3939 = vadd.f32 %v3890, %v3938
        %3940 = vmatmul.bf16.gmra.mxu0 %v1435
        %v3941 = vpop.f32.mrf.mxu0
        %v3942 = vadd.f32 %v3893, %v3941
        %v3943 = vpop.f32.mrf.mxu0
        %v3944 = vadd.f32 %v3895, %v3943
        %3945 = vdwg.mxu0
        %3946 = vmatpush.bf16.msra.mxu0 %v3027
        %3947 = vmatpush.bf16.msra.mxu0 %v3023
        %3948 = vmatpush.bf16.msra.mxu0 %v3019
        %3949 = vmatpush.bf16.msra.mxu0 %v3015
        %3950 = vmatpush.bf16.msra.mxu0 %v3011
        %3951 = vmatpush.bf16.msra.mxu0 %v3007
        %3952 = vmatpush.bf16.msra.mxu0 %v3003
        %3953 = vmatpush.bf16.msra.mxu0 %v2999
        %3954 = vmatmul.bf16.gmra.mxu0 %v1338
        %v3955 = vpop.f32.mrf.mxu0
        %v3956 = vadd.f32 %v3907, %v3955
        %v3957 = vpop.f32.mrf.mxu0
        %v3958 = vadd.f32 %v3909, %v3957
        %3959 = vmatmul.bf16.gmra.mxu0 %v1352
        %v3960 = vpop.f32.mrf.mxu0
        %v3961 = vadd.f32 %v3912, %v3960
        %v3962 = vpop.f32.mrf.mxu0
        %v3963 = vadd.f32 %v3914, %v3962
        %3964 = vmatmul.bf16.gmra.mxu0 %v1366
        %v3965 = vpop.f32.mrf.mxu0
        %v3966 = vadd.f32 %v3917, %v3965
        %v3967 = vpop.f32.mrf.mxu0
        %v3968 = vadd.f32 %v3919, %v3967
        %3969 = vmatmul.bf16.gmra.mxu0 %v1380
        %v3970 = vpop.f32.mrf.mxu0
        %v3971 = vadd.f32 %v3922, %v3970
        %v3972 = vpop.f32.mrf.mxu0
        %v3973 = vadd.f32 %v3924, %v3972
        %3974 = vmatmul.bf16.gmra.mxu0 %v1394
        %v3975 = vpop.f32.mrf.mxu0
        %v3976 = vadd.f32 %v3927, %v3975
        %v3977 = vpop.f32.mrf.mxu0
        %v3978 = vadd.f32 %v3929, %v3977
        %3979 = vmatmul.bf16.gmra.mxu0 %v1408
        %v3980 = vpop.f32.mrf.mxu0
        %v3981 = vadd.f32 %v3932, %v3980
        %v3982 = vpop.f32.mrf.mxu0
        %v3983 = vadd.f32 %v3934, %v3982
        %3984 = vmatmul.bf16.gmra.mxu0 %v1422
        %v3985 = vpop.f32.mrf.mxu0
        %v3986 = vadd.f32 %v3937, %v3985
        %v3987 = vpop.f32.mrf.mxu0
        %v3988 = vadd.f32 %v3939, %v3987
        %3989 = vmatmul.bf16.gmra.mxu0 %v1436
        %v3990 = vpop.f32.mrf.mxu0
        %v3991 = vadd.f32 %v3942, %v3990
        %v3992 = vpop.f32.mrf.mxu0
        %v3993 = vadd.f32 %v3944, %v3992
        %3994 = vdwg.mxu0
        %3995 = vmatpush.bf16.msra.mxu0 %v3059
        %3996 = vmatpush.bf16.msra.mxu0 %v3055
        %3997 = vmatpush.bf16.msra.mxu0 %v3051
        %3998 = vmatpush.bf16.msra.mxu0 %v3047
        %3999 = vmatpush.bf16.msra.mxu0 %v3043
        %4000 = vmatpush.bf16.msra.mxu0 %v3039
        %4001 = vmatpush.bf16.msra.mxu0 %v3035
        %4002 = vmatpush.bf16.msra.mxu0 %v3031
        %4003 = vmatmul.bf16.gmra.mxu0 %v1339
        %v4004 = vpop.f32.mrf.mxu0
        %v4005 = vadd.f32 %v3956, %v4004
        %v4006 = vpop.f32.mrf.mxu0
        %v4007 = vadd.f32 %v3958, %v4006
        %4008 = vmatmul.bf16.gmra.mxu0 %v1353
        %v4009 = vpop.f32.mrf.mxu0
        %v4010 = vadd.f32 %v3961, %v4009
        %v4011 = vpop.f32.mrf.mxu0
        %v4012 = vadd.f32 %v3963, %v4011
        %4013 = vmatmul.bf16.gmra.mxu0 %v1367
        %v4014 = vpop.f32.mrf.mxu0
        %v4015 = vadd.f32 %v3966, %v4014
        %v4016 = vpop.f32.mrf.mxu0
        %v4017 = vadd.f32 %v3968, %v4016
        %4018 = vmatmul.bf16.gmra.mxu0 %v1381
        %v4019 = vpop.f32.mrf.mxu0
        %v4020 = vadd.f32 %v3971, %v4019
        %v4021 = vpop.f32.mrf.mxu0
        %v4022 = vadd.f32 %v3973, %v4021
        %4023 = vmatmul.bf16.gmra.mxu0 %v1395
        %v4024 = vpop.f32.mrf.mxu0
        %v4025 = vadd.f32 %v3976, %v4024
        %v4026 = vpop.f32.mrf.mxu0
        %v4027 = vadd.f32 %v3978, %v4026
        %4028 = vmatmul.bf16.gmra.mxu0 %v1409
        %v4029 = vpop.f32.mrf.mxu0
        %v4030 = vadd.f32 %v3981, %v4029
        %v4031 = vpop.f32.mrf.mxu0
        %v4032 = vadd.f32 %v3983, %v4031
        %4033 = vmatmul.bf16.gmra.mxu0 %v1423
        %v4034 = vpop.f32.mrf.mxu0
        %v4035 = vadd.f32 %v3986, %v4034
        %v4036 = vpop.f32.mrf.mxu0
        %v4037 = vadd.f32 %v3988, %v4036
        %4038 = vmatmul.bf16.gmra.mxu0 %v1437
        %v4039 = vpop.f32.mrf.mxu0
        %v4040 = vadd.f32 %v3991, %v4039
        %v4041 = vpop.f32.mrf.mxu0
        %v4042 = vadd.f32 %v3993, %v4041
        %4043 = vdwg.mxu0
        %4044 = vmatpush.bf16.msra.mxu0 %v3091
        %4045 = vmatpush.bf16.msra.mxu0 %v3087
        %4046 = vmatpush.bf16.msra.mxu0 %v3083
        %4047 = vmatpush.bf16.msra.mxu0 %v3079
        %4048 = vmatpush.bf16.msra.mxu0 %v3075
        %4049 = vmatpush.bf16.msra.mxu0 %v3071
        %4050 = vmatpush.bf16.msra.mxu0 %v3067
        %4051 = vmatpush.bf16.msra.mxu0 %v3063
        %4052 = vmatmul.bf16.gmra.mxu0 %v1340
        %v4053 = vpop.f32.mrf.mxu0
        %v4054 = vadd.f32 %v4005, %v4053
        %v4055 = vpop.f32.mrf.mxu0
        %v4056 = vadd.f32 %v4007, %v4055
        %4057 = vmatmul.bf16.gmra.mxu0 %v1354
        %v4058 = vpop.f32.mrf.mxu0
        %v4059 = vadd.f32 %v4010, %v4058
        %v4060 = vpop.f32.mrf.mxu0
        %v4061 = vadd.f32 %v4012, %v4060
        %4062 = vmatmul.bf16.gmra.mxu0 %v1368
        %v4063 = vpop.f32.mrf.mxu0
        %v4064 = vadd.f32 %v4015, %v4063
        %v4065 = vpop.f32.mrf.mxu0
        %v4066 = vadd.f32 %v4017, %v4065
        %4067 = vmatmul.bf16.gmra.mxu0 %v1382
        %v4068 = vpop.f32.mrf.mxu0
        %v4069 = vadd.f32 %v4020, %v4068
        %v4070 = vpop.f32.mrf.mxu0
        %v4071 = vadd.f32 %v4022, %v4070
        %4072 = vmatmul.bf16.gmra.mxu0 %v1396
        %v4073 = vpop.f32.mrf.mxu0
        %v4074 = vadd.f32 %v4025, %v4073
        %v4075 = vpop.f32.mrf.mxu0
        %v4076 = vadd.f32 %v4027, %v4075
        %4077 = vmatmul.bf16.gmra.mxu0 %v1410
        %v4078 = vpop.f32.mrf.mxu0
        %v4079 = vadd.f32 %v4030, %v4078
        %v4080 = vpop.f32.mrf.mxu0
        %v4081 = vadd.f32 %v4032, %v4080
        %4082 = vmatmul.bf16.gmra.mxu0 %v1424
        %v4083 = vpop.f32.mrf.mxu0
        %v4084 = vadd.f32 %v4035, %v4083
        %v4085 = vpop.f32.mrf.mxu0
        %v4086 = vadd.f32 %v4037, %v4085
        %4087 = vmatmul.bf16.gmra.mxu0 %v1438
        %v4088 = vpop.f32.mrf.mxu0
        %v4089 = vadd.f32 %v4040, %v4088
        %v4090 = vpop.f32.mrf.mxu0
        %v4091 = vadd.f32 %v4042, %v4090
        %4092 = vdwg.mxu0
        %4093 = vmatpush.bf16.msra.mxu0 %v3123
        %4094 = vmatpush.bf16.msra.mxu0 %v3119
        %4095 = vmatpush.bf16.msra.mxu0 %v3115
        %4096 = vmatpush.bf16.msra.mxu0 %v3111
        %4097 = vmatpush.bf16.msra.mxu0 %v3107
        %4098 = vmatpush.bf16.msra.mxu0 %v3103
        %4099 = vmatpush.bf16.msra.mxu0 %v3099
        %4100 = vmatpush.bf16.msra.mxu0 %v3095
        %4101 = vmatmul.bf16.gmra.mxu0 %v1341
        %v4102 = vpop.f32.mrf.mxu0
        %v4103 = vadd.f32 %v4054, %v4102
        %v4104 = vpop.f32.mrf.mxu0
        %v4105 = vadd.f32 %v4056, %v4104
        %4106 = vmatmul.bf16.gmra.mxu0 %v1355
        %v4107 = vpop.f32.mrf.mxu0
        %v4108 = vadd.f32 %v4059, %v4107
        %v4109 = vpop.f32.mrf.mxu0
        %v4110 = vadd.f32 %v4061, %v4109
        %4111 = vmatmul.bf16.gmra.mxu0 %v1369
        %v4112 = vpop.f32.mrf.mxu0
        %v4113 = vadd.f32 %v4064, %v4112
        %v4114 = vpop.f32.mrf.mxu0
        %v4115 = vadd.f32 %v4066, %v4114
        %4116 = vmatmul.bf16.gmra.mxu0 %v1383
        %v4117 = vpop.f32.mrf.mxu0
        %v4118 = vadd.f32 %v4069, %v4117
        %v4119 = vpop.f32.mrf.mxu0
        %v4120 = vadd.f32 %v4071, %v4119
        %4121 = vmatmul.bf16.gmra.mxu0 %v1397
        %v4122 = vpop.f32.mrf.mxu0
        %v4123 = vadd.f32 %v4074, %v4122
        %v4124 = vpop.f32.mrf.mxu0
        %v4125 = vadd.f32 %v4076, %v4124
        %4126 = vmatmul.bf16.gmra.mxu0 %v1411
        %v4127 = vpop.f32.mrf.mxu0
        %v4128 = vadd.f32 %v4079, %v4127
        %v4129 = vpop.f32.mrf.mxu0
        %v4130 = vadd.f32 %v4081, %v4129
        %4131 = vmatmul.bf16.gmra.mxu0 %v1425
        %v4132 = vpop.f32.mrf.mxu0
        %v4133 = vadd.f32 %v4084, %v4132
        %v4134 = vpop.f32.mrf.mxu0
        %v4135 = vadd.f32 %v4086, %v4134
        %4136 = vmatmul.bf16.gmra.mxu0 %v1439
        %v4137 = vpop.f32.mrf.mxu0
        %v4138 = vadd.f32 %v4089, %v4137
        %v4139 = vpop.f32.mrf.mxu0
        %v4140 = vadd.f32 %v4091, %v4139
        %4141 = vdwg.mxu0
        %4142 = vmatpush.bf16.msra.mxu0 %v3155
        %4143 = vmatpush.bf16.msra.mxu0 %v3151
        %4144 = vmatpush.bf16.msra.mxu0 %v3147
        %4145 = vmatpush.bf16.msra.mxu0 %v3143
        %4146 = vmatpush.bf16.msra.mxu0 %v3139
        %4147 = vmatpush.bf16.msra.mxu0 %v3135
        %4148 = vmatpush.bf16.msra.mxu0 %v3131
        %4149 = vmatpush.bf16.msra.mxu0 %v3127
        %4150 = vmatmul.bf16.gmra.mxu0 %v1342
        %v4151 = vpop.f32.mrf.mxu0
        %v4152 = vadd.f32 %v4103, %v4151
        %v4153 = vpop.f32.mrf.mxu0
        %v4154 = vadd.f32 %v4105, %v4153
        %4155 = vmatmul.bf16.gmra.mxu0 %v1356
        %v4156 = vpop.f32.mrf.mxu0
        %v4157 = vadd.f32 %v4108, %v4156
        %v4158 = vpop.f32.mrf.mxu0
        %v4159 = vadd.f32 %v4110, %v4158
        %4160 = vmatmul.bf16.gmra.mxu0 %v1370
        %v4161 = vpop.f32.mrf.mxu0
        %v4162 = vadd.f32 %v4113, %v4161
        %v4163 = vpop.f32.mrf.mxu0
        %v4164 = vadd.f32 %v4115, %v4163
        %4165 = vmatmul.bf16.gmra.mxu0 %v1384
        %v4166 = vpop.f32.mrf.mxu0
        %v4167 = vadd.f32 %v4118, %v4166
        %v4168 = vpop.f32.mrf.mxu0
        %v4169 = vadd.f32 %v4120, %v4168
        %4170 = vmatmul.bf16.gmra.mxu0 %v1398
        %v4171 = vpop.f32.mrf.mxu0
        %v4172 = vadd.f32 %v4123, %v4171
        %v4173 = vpop.f32.mrf.mxu0
        %v4174 = vadd.f32 %v4125, %v4173
        %4175 = vmatmul.bf16.gmra.mxu0 %v1412
        %v4176 = vpop.f32.mrf.mxu0
        %v4177 = vadd.f32 %v4128, %v4176
        %v4178 = vpop.f32.mrf.mxu0
        %v4179 = vadd.f32 %v4130, %v4178
        %4180 = vmatmul.bf16.gmra.mxu0 %v1426
        %v4181 = vpop.f32.mrf.mxu0
        %v4182 = vadd.f32 %v4133, %v4181
        %v4183 = vpop.f32.mrf.mxu0
        %v4184 = vadd.f32 %v4135, %v4183
        %4185 = vmatmul.bf16.gmra.mxu0 %v1440
        %v4186 = vpop.f32.mrf.mxu0
        %v4187 = vadd.f32 %v4138, %v4186
        %v4188 = vpop.f32.mrf.mxu0
        %v4189 = vadd.f32 %v4140, %v4188
        %4190 = vdwg.mxu0
        %4191 = vmatpush.bf16.msra.mxu0 %v3187
        %4192 = vmatpush.bf16.msra.mxu0 %v3183
        %4193 = vmatpush.bf16.msra.mxu0 %v3179
        %4194 = vmatpush.bf16.msra.mxu0 %v3175
        %4195 = vmatpush.bf16.msra.mxu0 %v3171
        %4196 = vmatpush.bf16.msra.mxu0 %v3167
        %4197 = vmatpush.bf16.msra.mxu0 %v3163
        %4198 = vmatpush.bf16.msra.mxu0 %v3159
        %4199 = vmatmul.bf16.gmra.mxu0 %v1343
        %v4200 = vpop.f32.mrf.mxu0
        %v4201 = vadd.f32 %v4152, %v4200
        %v4202 = vpop.f32.mrf.mxu0
        %v4203 = vadd.f32 %v4154, %v4202
        %4204 = vmatmul.bf16.gmra.mxu0 %v1357
        %v4205 = vpop.f32.mrf.mxu0
        %v4206 = vadd.f32 %v4157, %v4205
        %v4207 = vpop.f32.mrf.mxu0
        %v4208 = vadd.f32 %v4159, %v4207
        %4209 = vmatmul.bf16.gmra.mxu0 %v1371
        %v4210 = vpop.f32.mrf.mxu0
        %v4211 = vadd.f32 %v4162, %v4210
        %v4212 = vpop.f32.mrf.mxu0
        %v4213 = vadd.f32 %v4164, %v4212
        %4214 = vmatmul.bf16.gmra.mxu0 %v1385
        %v4215 = vpop.f32.mrf.mxu0
        %v4216 = vadd.f32 %v4167, %v4215
        %v4217 = vpop.f32.mrf.mxu0
        %v4218 = vadd.f32 %v4169, %v4217
        %4219 = vmatmul.bf16.gmra.mxu0 %v1399
        %v4220 = vpop.f32.mrf.mxu0
        %v4221 = vadd.f32 %v4172, %v4220
        %v4222 = vpop.f32.mrf.mxu0
        %v4223 = vadd.f32 %v4174, %v4222
        %4224 = vmatmul.bf16.gmra.mxu0 %v1413
        %v4225 = vpop.f32.mrf.mxu0
        %v4226 = vadd.f32 %v4177, %v4225
        %v4227 = vpop.f32.mrf.mxu0
        %v4228 = vadd.f32 %v4179, %v4227
        %4229 = vmatmul.bf16.gmra.mxu0 %v1427
        %v4230 = vpop.f32.mrf.mxu0
        %v4231 = vadd.f32 %v4182, %v4230
        %v4232 = vpop.f32.mrf.mxu0
        %v4233 = vadd.f32 %v4184, %v4232
        %4234 = vmatmul.bf16.gmra.mxu0 %v1441
        %v4235 = vpop.f32.mrf.mxu0
        %v4236 = vadd.f32 %v4187, %v4235
        %v4237 = vpop.f32.mrf.mxu0
        %v4238 = vadd.f32 %v4189, %v4237
        %4239 = vdwg.mxu0
        %4240 = vmatpush.bf16.msra.mxu0 %v3219
        %4241 = vmatpush.bf16.msra.mxu0 %v3215
        %4242 = vmatpush.bf16.msra.mxu0 %v3211
        %4243 = vmatpush.bf16.msra.mxu0 %v3207
        %4244 = vmatpush.bf16.msra.mxu0 %v3203
        %4245 = vmatpush.bf16.msra.mxu0 %v3199
        %4246 = vmatpush.bf16.msra.mxu0 %v3195
        %4247 = vmatpush.bf16.msra.mxu0 %v3191
        %4248 = vmatmul.bf16.gmra.mxu0 %v1344
        %v4249 = vpop.f32.mrf.mxu0
        %v4250 = vadd.f32 %v4201, %v4249
        %v4251 = vpop.f32.mrf.mxu0
        %v4252 = vadd.f32 %v4203, %v4251
        %4253 = vmatmul.bf16.gmra.mxu0 %v1358
        %v4254 = vpop.f32.mrf.mxu0
        %v4255 = vadd.f32 %v4206, %v4254
        %v4256 = vpop.f32.mrf.mxu0
        %v4257 = vadd.f32 %v4208, %v4256
        %4258 = vmatmul.bf16.gmra.mxu0 %v1372
        %v4259 = vpop.f32.mrf.mxu0
        %v4260 = vadd.f32 %v4211, %v4259
        %v4261 = vpop.f32.mrf.mxu0
        %v4262 = vadd.f32 %v4213, %v4261
        %4263 = vmatmul.bf16.gmra.mxu0 %v1386
        %v4264 = vpop.f32.mrf.mxu0
        %v4265 = vadd.f32 %v4216, %v4264
        %v4266 = vpop.f32.mrf.mxu0
        %v4267 = vadd.f32 %v4218, %v4266
        %4268 = vmatmul.bf16.gmra.mxu0 %v1400
        %v4269 = vpop.f32.mrf.mxu0
        %v4270 = vadd.f32 %v4221, %v4269
        %v4271 = vpop.f32.mrf.mxu0
        %v4272 = vadd.f32 %v4223, %v4271
        %4273 = vmatmul.bf16.gmra.mxu0 %v1414
        %v4274 = vpop.f32.mrf.mxu0
        %v4275 = vadd.f32 %v4226, %v4274
        %v4276 = vpop.f32.mrf.mxu0
        %v4277 = vadd.f32 %v4228, %v4276
        %4278 = vmatmul.bf16.gmra.mxu0 %v1428
        %v4279 = vpop.f32.mrf.mxu0
        %v4280 = vadd.f32 %v4231, %v4279
        %v4281 = vpop.f32.mrf.mxu0
        %v4282 = vadd.f32 %v4233, %v4281
        %4283 = vmatmul.bf16.gmra.mxu0 %v1442
        %v4284 = vpop.f32.mrf.mxu0
        %v4285 = vadd.f32 %v4236, %v4284
        %v4286 = vpop.f32.mrf.mxu0
        %v4287 = vadd.f32 %v4238, %v4286
        %4288 = vdwg.mxu0
        %4289 = vmatpush.bf16.msra.mxu0 %v3251
        %4290 = vmatpush.bf16.msra.mxu0 %v3247
        %4291 = vmatpush.bf16.msra.mxu0 %v3243
        %4292 = vmatpush.bf16.msra.mxu0 %v3239
        %4293 = vmatpush.bf16.msra.mxu0 %v3235
        %4294 = vmatpush.bf16.msra.mxu0 %v3231
        %4295 = vmatpush.bf16.msra.mxu0 %v3227
        %4296 = vmatpush.bf16.msra.mxu0 %v3223
        %4297 = vmatmul.bf16.gmra.mxu0 %v1345
        %v4298 = vpop.f32.mrf.mxu0
        %v4299 = vadd.f32 %v4250, %v4298
        %v4300 = vpop.f32.mrf.mxu0
        %v4301 = vadd.f32 %v4252, %v4300
        %4302 = vmatmul.bf16.gmra.mxu0 %v1359
        %v4303 = vpop.f32.mrf.mxu0
        %v4304 = vadd.f32 %v4255, %v4303
        %v4305 = vpop.f32.mrf.mxu0
        %v4306 = vadd.f32 %v4257, %v4305
        %4307 = vmatmul.bf16.gmra.mxu0 %v1373
        %v4308 = vpop.f32.mrf.mxu0
        %v4309 = vadd.f32 %v4260, %v4308
        %v4310 = vpop.f32.mrf.mxu0
        %v4311 = vadd.f32 %v4262, %v4310
        %4312 = vmatmul.bf16.gmra.mxu0 %v1387
        %v4313 = vpop.f32.mrf.mxu0
        %v4314 = vadd.f32 %v4265, %v4313
        %v4315 = vpop.f32.mrf.mxu0
        %v4316 = vadd.f32 %v4267, %v4315
        %4317 = vmatmul.bf16.gmra.mxu0 %v1401
        %v4318 = vpop.f32.mrf.mxu0
        %v4319 = vadd.f32 %v4270, %v4318
        %v4320 = vpop.f32.mrf.mxu0
        %v4321 = vadd.f32 %v4272, %v4320
        %4322 = vmatmul.bf16.gmra.mxu0 %v1415
        %v4323 = vpop.f32.mrf.mxu0
        %v4324 = vadd.f32 %v4275, %v4323
        %v4325 = vpop.f32.mrf.mxu0
        %v4326 = vadd.f32 %v4277, %v4325
        %4327 = vmatmul.bf16.gmra.mxu0 %v1429
        %v4328 = vpop.f32.mrf.mxu0
        %v4329 = vadd.f32 %v4280, %v4328
        %v4330 = vpop.f32.mrf.mxu0
        %v4331 = vadd.f32 %v4282, %v4330
        %4332 = vmatmul.bf16.gmra.mxu0 %v1443
        %v4333 = vpop.f32.mrf.mxu0
        %v4334 = vadd.f32 %v4285, %v4333
        %v4335 = vpop.f32.mrf.mxu0
        %v4336 = vadd.f32 %v4287, %v4335
        %4337 = vdwg.mxu0
        %4338 = vmatpush.bf16.msra.mxu0 %v3283
        %4339 = vmatpush.bf16.msra.mxu0 %v3279
        %4340 = vmatpush.bf16.msra.mxu0 %v3275
        %4341 = vmatpush.bf16.msra.mxu0 %v3271
        %4342 = vmatpush.bf16.msra.mxu0 %v3267
        %4343 = vmatpush.bf16.msra.mxu0 %v3263
        %4344 = vmatpush.bf16.msra.mxu0 %v3259
        %4345 = vmatpush.bf16.msra.mxu0 %v3255
        %4346 = vmatmul.bf16.gmra.mxu0 %v1346
        %v4347 = vpop.f32.mrf.mxu0
        %v4348 = vadd.f32 %v4299, %v4347
        %v4349 = vpop.f32.mrf.mxu0
        %v4350 = vadd.f32 %v4301, %v4349
        %4351 = vmatmul.bf16.gmra.mxu0 %v1360
        %v4352 = vpop.f32.mrf.mxu0
        %v4353 = vadd.f32 %v4304, %v4352
        %v4354 = vpop.f32.mrf.mxu0
        %v4355 = vadd.f32 %v4306, %v4354
        %4356 = vmatmul.bf16.gmra.mxu0 %v1374
        %v4357 = vpop.f32.mrf.mxu0
        %v4358 = vadd.f32 %v4309, %v4357
        %v4359 = vpop.f32.mrf.mxu0
        %v4360 = vadd.f32 %v4311, %v4359
        %4361 = vmatmul.bf16.gmra.mxu0 %v1388
        %v4362 = vpop.f32.mrf.mxu0
        %v4363 = vadd.f32 %v4314, %v4362
        %v4364 = vpop.f32.mrf.mxu0
        %v4365 = vadd.f32 %v4316, %v4364
        %4366 = vmatmul.bf16.gmra.mxu0 %v1402
        %v4367 = vpop.f32.mrf.mxu0
        %v4368 = vadd.f32 %v4319, %v4367
        %v4369 = vpop.f32.mrf.mxu0
        %v4370 = vadd.f32 %v4321, %v4369
        %4371 = vmatmul.bf16.gmra.mxu0 %v1416
        %v4372 = vpop.f32.mrf.mxu0
        %v4373 = vadd.f32 %v4324, %v4372
        %v4374 = vpop.f32.mrf.mxu0
        %v4375 = vadd.f32 %v4326, %v4374
        %4376 = vmatmul.bf16.gmra.mxu0 %v1430
        %v4377 = vpop.f32.mrf.mxu0
        %v4378 = vadd.f32 %v4329, %v4377
        %v4379 = vpop.f32.mrf.mxu0
        %v4380 = vadd.f32 %v4331, %v4379
        %4381 = vmatmul.bf16.gmra.mxu0 %v1444
        %v4382 = vpop.f32.mrf.mxu0
        %v4383 = vadd.f32 %v4334, %v4382
        %v4384 = vpop.f32.mrf.mxu0
        %v4385 = vadd.f32 %v4336, %v4384
        %4386 = vdwg.mxu0
        %4387 = vmatpush.bf16.msra.mxu0 %v3315
        %4388 = vmatpush.bf16.msra.mxu0 %v3311
        %4389 = vmatpush.bf16.msra.mxu0 %v3307
        %4390 = vmatpush.bf16.msra.mxu0 %v3303
        %4391 = vmatpush.bf16.msra.mxu0 %v3299
        %4392 = vmatpush.bf16.msra.mxu0 %v3295
        %4393 = vmatpush.bf16.msra.mxu0 %v3291
        %4394 = vmatpush.bf16.msra.mxu0 %v3287
        %4395 = vmatmul.bf16.gmra.mxu0 %v1347
        %v4396 = vpop.f32.mrf.mxu0
        %v4397 = vadd.f32 %v4348, %v4396
        %v4398 = vpop.f32.mrf.mxu0
        %v4399 = vadd.f32 %v4350, %v4398
        %4400 = vmatmul.bf16.gmra.mxu0 %v1361
        %v4401 = vpop.f32.mrf.mxu0
        %v4402 = vadd.f32 %v4353, %v4401
        %v4403 = vpop.f32.mrf.mxu0
        %v4404 = vadd.f32 %v4355, %v4403
        %4405 = vmatmul.bf16.gmra.mxu0 %v1375
        %v4406 = vpop.f32.mrf.mxu0
        %v4407 = vadd.f32 %v4358, %v4406
        %v4408 = vpop.f32.mrf.mxu0
        %v4409 = vadd.f32 %v4360, %v4408
        %4410 = vmatmul.bf16.gmra.mxu0 %v1389
        %v4411 = vpop.f32.mrf.mxu0
        %v4412 = vadd.f32 %v4363, %v4411
        %v4413 = vpop.f32.mrf.mxu0
        %v4414 = vadd.f32 %v4365, %v4413
        %4415 = vmatmul.bf16.gmra.mxu0 %v1403
        %v4416 = vpop.f32.mrf.mxu0
        %v4417 = vadd.f32 %v4368, %v4416
        %v4418 = vpop.f32.mrf.mxu0
        %v4419 = vadd.f32 %v4370, %v4418
        %4420 = vmatmul.bf16.gmra.mxu0 %v1417
        %v4421 = vpop.f32.mrf.mxu0
        %v4422 = vadd.f32 %v4373, %v4421
        %v4423 = vpop.f32.mrf.mxu0
        %v4424 = vadd.f32 %v4375, %v4423
        %4425 = vmatmul.bf16.gmra.mxu0 %v1431
        %v4426 = vpop.f32.mrf.mxu0
        %v4427 = vadd.f32 %v4378, %v4426
        %v4428 = vpop.f32.mrf.mxu0
        %v4429 = vadd.f32 %v4380, %v4428
        %4430 = vmatmul.bf16.gmra.mxu0 %v1445
        %v4431 = vpop.f32.mrf.mxu0
        %v4432 = vadd.f32 %v4383, %v4431
        %v4433 = vpop.f32.mrf.mxu0
        %v4434 = vadd.f32 %v4385, %v4433
        %4435 = vdwg.mxu0
        %4436 = vmatpush.bf16.msra.mxu0 %v3347
        %4437 = vmatpush.bf16.msra.mxu0 %v3343
        %4438 = vmatpush.bf16.msra.mxu0 %v3339
        %4439 = vmatpush.bf16.msra.mxu0 %v3335
        %4440 = vmatpush.bf16.msra.mxu0 %v3331
        %4441 = vmatpush.bf16.msra.mxu0 %v3327
        %4442 = vmatpush.bf16.msra.mxu0 %v3323
        %4443 = vmatpush.bf16.msra.mxu0 %v3319
        %4444 = vmatmul.bf16.gmra.mxu0 %v1348
        %v4445 = vpop.f32.mrf.mxu0
        %v4446 = vadd.f32 %v4397, %v4445
        %v4447 = vpop.f32.mrf.mxu0
        %v4448 = vadd.f32 %v4399, %v4447
        %4449 = vmatmul.bf16.gmra.mxu0 %v1362
        %v4450 = vpop.f32.mrf.mxu0
        %v4451 = vadd.f32 %v4402, %v4450
        %v4452 = vpop.f32.mrf.mxu0
        %v4453 = vadd.f32 %v4404, %v4452
        %4454 = vmatmul.bf16.gmra.mxu0 %v1376
        %v4455 = vpop.f32.mrf.mxu0
        %v4456 = vadd.f32 %v4407, %v4455
        %v4457 = vpop.f32.mrf.mxu0
        %v4458 = vadd.f32 %v4409, %v4457
        %4459 = vmatmul.bf16.gmra.mxu0 %v1390
        %v4460 = vpop.f32.mrf.mxu0
        %v4461 = vadd.f32 %v4412, %v4460
        %v4462 = vpop.f32.mrf.mxu0
        %v4463 = vadd.f32 %v4414, %v4462
        %4464 = vmatmul.bf16.gmra.mxu0 %v1404
        %v4465 = vpop.f32.mrf.mxu0
        %v4466 = vadd.f32 %v4417, %v4465
        %v4467 = vpop.f32.mrf.mxu0
        %v4468 = vadd.f32 %v4419, %v4467
        %4469 = vmatmul.bf16.gmra.mxu0 %v1418
        %v4470 = vpop.f32.mrf.mxu0
        %v4471 = vadd.f32 %v4422, %v4470
        %v4472 = vpop.f32.mrf.mxu0
        %v4473 = vadd.f32 %v4424, %v4472
        %4474 = vmatmul.bf16.gmra.mxu0 %v1432
        %v4475 = vpop.f32.mrf.mxu0
        %v4476 = vadd.f32 %v4427, %v4475
        %v4477 = vpop.f32.mrf.mxu0
        %v4478 = vadd.f32 %v4429, %v4477
        %4479 = vmatmul.bf16.gmra.mxu0 %v1446
        %v4480 = vpop.f32.mrf.mxu0
        %v4481 = vadd.f32 %v4432, %v4480
        %v4482 = vpop.f32.mrf.mxu0
        %v4483 = vadd.f32 %v4434, %v4482
        %4484 = vdwg.mxu0
        %4485 = vmatpush.bf16.msra.mxu0 %v2932
        %4486 = vmatpush.bf16.msra.mxu0 %v2928
        %4487 = vmatpush.bf16.msra.mxu0 %v2924
        %4488 = vmatpush.bf16.msra.mxu0 %v2920
        %4489 = vmatpush.bf16.msra.mxu0 %v2916
        %4490 = vmatpush.bf16.msra.mxu0 %v2912
        %4491 = vmatpush.bf16.msra.mxu0 %v2908
        %4492 = vmatpush.bf16.msra.mxu0 %v2904
        %4493 = vmatmul.bf16.gmra.mxu0 %v1335
        %v4494 = vpop.f32.mrf.mxu0
        %v4495 = vadd.f32 0.0, %v4494
        %v4496 = vpop.f32.mrf.mxu0
        %v4497 = vadd.f32 0.0, %v4496
        %4498 = vmatmul.bf16.gmra.mxu0 %v1349
        %v4499 = vpop.f32.mrf.mxu0
        %v4500 = vadd.f32 0.0, %v4499
        %v4501 = vpop.f32.mrf.mxu0
        %v4502 = vadd.f32 0.0, %v4501
        %4503 = vmatmul.bf16.gmra.mxu0 %v1363
        %v4504 = vpop.f32.mrf.mxu0
        %v4505 = vadd.f32 0.0, %v4504
        %v4506 = vpop.f32.mrf.mxu0
        %v4507 = vadd.f32 0.0, %v4506
        %4508 = vmatmul.bf16.gmra.mxu0 %v1377
        %v4509 = vpop.f32.mrf.mxu0
        %v4510 = vadd.f32 0.0, %v4509
        %v4511 = vpop.f32.mrf.mxu0
        %v4512 = vadd.f32 0.0, %v4511
        %4513 = vmatmul.bf16.gmra.mxu0 %v1391
        %v4514 = vpop.f32.mrf.mxu0
        %v4515 = vadd.f32 0.0, %v4514
        %v4516 = vpop.f32.mrf.mxu0
        %v4517 = vadd.f32 0.0, %v4516
        %4518 = vmatmul.bf16.gmra.mxu0 %v1405
        %v4519 = vpop.f32.mrf.mxu0
        %v4520 = vadd.f32 0.0, %v4519
        %v4521 = vpop.f32.mrf.mxu0
        %v4522 = vadd.f32 0.0, %v4521
        %4523 = vmatmul.bf16.gmra.mxu0 %v1419
        %v4524 = vpop.f32.mrf.mxu0
        %v4525 = vadd.f32 0.0, %v4524
        %v4526 = vpop.f32.mrf.mxu0
        %v4527 = vadd.f32 0.0, %v4526
        %4528 = vmatmul.bf16.gmra.mxu0 %v1433
        %v4529 = vpop.f32.mrf.mxu0
        %v4530 = vadd.f32 0.0, %v4529
        %v4531 = vpop.f32.mrf.mxu0
        %v4532 = vadd.f32 0.0, %v4531
        %4533 = vdwg.mxu0
        %4534 = vmatpush.bf16.msra.mxu0 %v2964
        %4535 = vmatpush.bf16.msra.mxu0 %v2960
        %4536 = vmatpush.bf16.msra.mxu0 %v2956
        %4537 = vmatpush.bf16.msra.mxu0 %v2952
        %4538 = vmatpush.bf16.msra.mxu0 %v2948
        %4539 = vmatpush.bf16.msra.mxu0 %v2944
        %4540 = vmatpush.bf16.msra.mxu0 %v2940
        %4541 = vmatpush.bf16.msra.mxu0 %v2936
        %4542 = vmatmul.bf16.gmra.mxu0 %v1336
        %v4543 = vpop.f32.mrf.mxu0
        %v4544 = vadd.f32 %v4495, %v4543
        %v4545 = vpop.f32.mrf.mxu0
        %v4546 = vadd.f32 %v4497, %v4545
        %4547 = vmatmul.bf16.gmra.mxu0 %v1350
        %v4548 = vpop.f32.mrf.mxu0
        %v4549 = vadd.f32 %v4500, %v4548
        %v4550 = vpop.f32.mrf.mxu0
        %v4551 = vadd.f32 %v4502, %v4550
        %4552 = vmatmul.bf16.gmra.mxu0 %v1364
        %v4553 = vpop.f32.mrf.mxu0
        %v4554 = vadd.f32 %v4505, %v4553
        %v4555 = vpop.f32.mrf.mxu0
        %v4556 = vadd.f32 %v4507, %v4555
        %4557 = vmatmul.bf16.gmra.mxu0 %v1378
        %v4558 = vpop.f32.mrf.mxu0
        %v4559 = vadd.f32 %v4510, %v4558
        %v4560 = vpop.f32.mrf.mxu0
        %v4561 = vadd.f32 %v4512, %v4560
        %4562 = vmatmul.bf16.gmra.mxu0 %v1392
        %v4563 = vpop.f32.mrf.mxu0
        %v4564 = vadd.f32 %v4515, %v4563
        %v4565 = vpop.f32.mrf.mxu0
        %v4566 = vadd.f32 %v4517, %v4565
        %4567 = vmatmul.bf16.gmra.mxu0 %v1406
        %v4568 = vpop.f32.mrf.mxu0
        %v4569 = vadd.f32 %v4520, %v4568
        %v4570 = vpop.f32.mrf.mxu0
        %v4571 = vadd.f32 %v4522, %v4570
        %4572 = vmatmul.bf16.gmra.mxu0 %v1420
        %v4573 = vpop.f32.mrf.mxu0
        %v4574 = vadd.f32 %v4525, %v4573
        %v4575 = vpop.f32.mrf.mxu0
        %v4576 = vadd.f32 %v4527, %v4575
        %4577 = vmatmul.bf16.gmra.mxu0 %v1434
        %v4578 = vpop.f32.mrf.mxu0
        %v4579 = vadd.f32 %v4530, %v4578
        %v4580 = vpop.f32.mrf.mxu0
        %v4581 = vadd.f32 %v4532, %v4580
        %4582 = vdwg.mxu0
        %4583 = vmatpush.bf16.msra.mxu0 %v2996
        %4584 = vmatpush.bf16.msra.mxu0 %v2992
        %4585 = vmatpush.bf16.msra.mxu0 %v2988
        %4586 = vmatpush.bf16.msra.mxu0 %v2984
        %4587 = vmatpush.bf16.msra.mxu0 %v2980
        %4588 = vmatpush.bf16.msra.mxu0 %v2976
        %4589 = vmatpush.bf16.msra.mxu0 %v2972
        %4590 = vmatpush.bf16.msra.mxu0 %v2968
        %4591 = vmatmul.bf16.gmra.mxu0 %v1337
        %v4592 = vpop.f32.mrf.mxu0
        %v4593 = vadd.f32 %v4544, %v4592
        %v4594 = vpop.f32.mrf.mxu0
        %v4595 = vadd.f32 %v4546, %v4594
        %4596 = vmatmul.bf16.gmra.mxu0 %v1351
        %v4597 = vpop.f32.mrf.mxu0
        %v4598 = vadd.f32 %v4549, %v4597
        %v4599 = vpop.f32.mrf.mxu0
        %v4600 = vadd.f32 %v4551, %v4599
        %4601 = vmatmul.bf16.gmra.mxu0 %v1365
        %v4602 = vpop.f32.mrf.mxu0
        %v4603 = vadd.f32 %v4554, %v4602
        %v4604 = vpop.f32.mrf.mxu0
        %v4605 = vadd.f32 %v4556, %v4604
        %4606 = vmatmul.bf16.gmra.mxu0 %v1379
        %v4607 = vpop.f32.mrf.mxu0
        %v4608 = vadd.f32 %v4559, %v4607
        %v4609 = vpop.f32.mrf.mxu0
        %v4610 = vadd.f32 %v4561, %v4609
        %4611 = vmatmul.bf16.gmra.mxu0 %v1393
        %v4612 = vpop.f32.mrf.mxu0
        %v4613 = vadd.f32 %v4564, %v4612
        %v4614 = vpop.f32.mrf.mxu0
        %v4615 = vadd.f32 %v4566, %v4614
        %4616 = vmatmul.bf16.gmra.mxu0 %v1407
        %v4617 = vpop.f32.mrf.mxu0
        %v4618 = vadd.f32 %v4569, %v4617
        %v4619 = vpop.f32.mrf.mxu0
        %v4620 = vadd.f32 %v4571, %v4619
        %4621 = vmatmul.bf16.gmra.mxu0 %v1421
        %v4622 = vpop.f32.mrf.mxu0
        %v4623 = vadd.f32 %v4574, %v4622
        %v4624 = vpop.f32.mrf.mxu0
        %v4625 = vadd.f32 %v4576, %v4624
        %4626 = vmatmul.bf16.gmra.mxu0 %v1435
        %v4627 = vpop.f32.mrf.mxu0
        %v4628 = vadd.f32 %v4579, %v4627
        %v4629 = vpop.f32.mrf.mxu0
        %v4630 = vadd.f32 %v4581, %v4629
        %4631 = vdwg.mxu0
        %4632 = vmatpush.bf16.msra.mxu0 %v3028
        %4633 = vmatpush.bf16.msra.mxu0 %v3024
        %4634 = vmatpush.bf16.msra.mxu0 %v3020
        %4635 = vmatpush.bf16.msra.mxu0 %v3016
        %4636 = vmatpush.bf16.msra.mxu0 %v3012
        %4637 = vmatpush.bf16.msra.mxu0 %v3008
        %4638 = vmatpush.bf16.msra.mxu0 %v3004
        %4639 = vmatpush.bf16.msra.mxu0 %v3000
        %4640 = vmatmul.bf16.gmra.mxu0 %v1338
        %v4641 = vpop.f32.mrf.mxu0
        %v4642 = vadd.f32 %v4593, %v4641
        %v4643 = vpop.f32.mrf.mxu0
        %v4644 = vadd.f32 %v4595, %v4643
        %4645 = vmatmul.bf16.gmra.mxu0 %v1352
        %v4646 = vpop.f32.mrf.mxu0
        %v4647 = vadd.f32 %v4598, %v4646
        %v4648 = vpop.f32.mrf.mxu0
        %v4649 = vadd.f32 %v4600, %v4648
        %4650 = vmatmul.bf16.gmra.mxu0 %v1366
        %v4651 = vpop.f32.mrf.mxu0
        %v4652 = vadd.f32 %v4603, %v4651
        %v4653 = vpop.f32.mrf.mxu0
        %v4654 = vadd.f32 %v4605, %v4653
        %4655 = vmatmul.bf16.gmra.mxu0 %v1380
        %v4656 = vpop.f32.mrf.mxu0
        %v4657 = vadd.f32 %v4608, %v4656
        %v4658 = vpop.f32.mrf.mxu0
        %v4659 = vadd.f32 %v4610, %v4658
        %4660 = vmatmul.bf16.gmra.mxu0 %v1394
        %v4661 = vpop.f32.mrf.mxu0
        %v4662 = vadd.f32 %v4613, %v4661
        %v4663 = vpop.f32.mrf.mxu0
        %v4664 = vadd.f32 %v4615, %v4663
        %4665 = vmatmul.bf16.gmra.mxu0 %v1408
        %v4666 = vpop.f32.mrf.mxu0
        %v4667 = vadd.f32 %v4618, %v4666
        %v4668 = vpop.f32.mrf.mxu0
        %v4669 = vadd.f32 %v4620, %v4668
        %4670 = vmatmul.bf16.gmra.mxu0 %v1422
        %v4671 = vpop.f32.mrf.mxu0
        %v4672 = vadd.f32 %v4623, %v4671
        %v4673 = vpop.f32.mrf.mxu0
        %v4674 = vadd.f32 %v4625, %v4673
        %4675 = vmatmul.bf16.gmra.mxu0 %v1436
        %v4676 = vpop.f32.mrf.mxu0
        %v4677 = vadd.f32 %v4628, %v4676
        %v4678 = vpop.f32.mrf.mxu0
        %v4679 = vadd.f32 %v4630, %v4678
        %4680 = vdwg.mxu0
        %4681 = vmatpush.bf16.msra.mxu0 %v3060
        %4682 = vmatpush.bf16.msra.mxu0 %v3056
        %4683 = vmatpush.bf16.msra.mxu0 %v3052
        %4684 = vmatpush.bf16.msra.mxu0 %v3048
        %4685 = vmatpush.bf16.msra.mxu0 %v3044
        %4686 = vmatpush.bf16.msra.mxu0 %v3040
        %4687 = vmatpush.bf16.msra.mxu0 %v3036
        %4688 = vmatpush.bf16.msra.mxu0 %v3032
        %4689 = vmatmul.bf16.gmra.mxu0 %v1339
        %v4690 = vpop.f32.mrf.mxu0
        %v4691 = vadd.f32 %v4642, %v4690
        %v4692 = vpop.f32.mrf.mxu0
        %v4693 = vadd.f32 %v4644, %v4692
        %4694 = vmatmul.bf16.gmra.mxu0 %v1353
        %v4695 = vpop.f32.mrf.mxu0
        %v4696 = vadd.f32 %v4647, %v4695
        %v4697 = vpop.f32.mrf.mxu0
        %v4698 = vadd.f32 %v4649, %v4697
        %4699 = vmatmul.bf16.gmra.mxu0 %v1367
        %v4700 = vpop.f32.mrf.mxu0
        %v4701 = vadd.f32 %v4652, %v4700
        %v4702 = vpop.f32.mrf.mxu0
        %v4703 = vadd.f32 %v4654, %v4702
        %4704 = vmatmul.bf16.gmra.mxu0 %v1381
        %v4705 = vpop.f32.mrf.mxu0
        %v4706 = vadd.f32 %v4657, %v4705
        %v4707 = vpop.f32.mrf.mxu0
        %v4708 = vadd.f32 %v4659, %v4707
        %4709 = vmatmul.bf16.gmra.mxu0 %v1395
        %v4710 = vpop.f32.mrf.mxu0
        %v4711 = vadd.f32 %v4662, %v4710
        %v4712 = vpop.f32.mrf.mxu0
        %v4713 = vadd.f32 %v4664, %v4712
        %4714 = vmatmul.bf16.gmra.mxu0 %v1409
        %v4715 = vpop.f32.mrf.mxu0
        %v4716 = vadd.f32 %v4667, %v4715
        %v4717 = vpop.f32.mrf.mxu0
        %v4718 = vadd.f32 %v4669, %v4717
        %4719 = vmatmul.bf16.gmra.mxu0 %v1423
        %v4720 = vpop.f32.mrf.mxu0
        %v4721 = vadd.f32 %v4672, %v4720
        %v4722 = vpop.f32.mrf.mxu0
        %v4723 = vadd.f32 %v4674, %v4722
        %4724 = vmatmul.bf16.gmra.mxu0 %v1437
        %v4725 = vpop.f32.mrf.mxu0
        %v4726 = vadd.f32 %v4677, %v4725
        %v4727 = vpop.f32.mrf.mxu0
        %v4728 = vadd.f32 %v4679, %v4727
        %4729 = vdwg.mxu0
        %4730 = vmatpush.bf16.msra.mxu0 %v3092
        %4731 = vmatpush.bf16.msra.mxu0 %v3088
        %4732 = vmatpush.bf16.msra.mxu0 %v3084
        %4733 = vmatpush.bf16.msra.mxu0 %v3080
        %4734 = vmatpush.bf16.msra.mxu0 %v3076
        %4735 = vmatpush.bf16.msra.mxu0 %v3072
        %4736 = vmatpush.bf16.msra.mxu0 %v3068
        %4737 = vmatpush.bf16.msra.mxu0 %v3064
        %4738 = vmatmul.bf16.gmra.mxu0 %v1340
        %v4739 = vpop.f32.mrf.mxu0
        %v4740 = vadd.f32 %v4691, %v4739
        %v4741 = vpop.f32.mrf.mxu0
        %v4742 = vadd.f32 %v4693, %v4741
        %4743 = vmatmul.bf16.gmra.mxu0 %v1354
        %v4744 = vpop.f32.mrf.mxu0
        %v4745 = vadd.f32 %v4696, %v4744
        %v4746 = vpop.f32.mrf.mxu0
        %v4747 = vadd.f32 %v4698, %v4746
        %4748 = vmatmul.bf16.gmra.mxu0 %v1368
        %v4749 = vpop.f32.mrf.mxu0
        %v4750 = vadd.f32 %v4701, %v4749
        %v4751 = vpop.f32.mrf.mxu0
        %v4752 = vadd.f32 %v4703, %v4751
        %4753 = vmatmul.bf16.gmra.mxu0 %v1382
        %v4754 = vpop.f32.mrf.mxu0
        %v4755 = vadd.f32 %v4706, %v4754
        %v4756 = vpop.f32.mrf.mxu0
        %v4757 = vadd.f32 %v4708, %v4756
        %4758 = vmatmul.bf16.gmra.mxu0 %v1396
        %v4759 = vpop.f32.mrf.mxu0
        %v4760 = vadd.f32 %v4711, %v4759
        %v4761 = vpop.f32.mrf.mxu0
        %v4762 = vadd.f32 %v4713, %v4761
        %4763 = vmatmul.bf16.gmra.mxu0 %v1410
        %v4764 = vpop.f32.mrf.mxu0
        %v4765 = vadd.f32 %v4716, %v4764
        %v4766 = vpop.f32.mrf.mxu0
        %v4767 = vadd.f32 %v4718, %v4766
        %4768 = vmatmul.bf16.gmra.mxu0 %v1424
        %v4769 = vpop.f32.mrf.mxu0
        %v4770 = vadd.f32 %v4721, %v4769
        %v4771 = vpop.f32.mrf.mxu0
        %v4772 = vadd.f32 %v4723, %v4771
        %4773 = vmatmul.bf16.gmra.mxu0 %v1438
        %v4774 = vpop.f32.mrf.mxu0
        %v4775 = vadd.f32 %v4726, %v4774
        %v4776 = vpop.f32.mrf.mxu0
        %v4777 = vadd.f32 %v4728, %v4776
        %4778 = vdwg.mxu0
        %4779 = vmatpush.bf16.msra.mxu0 %v3124
        %4780 = vmatpush.bf16.msra.mxu0 %v3120
        %4781 = vmatpush.bf16.msra.mxu0 %v3116
        %4782 = vmatpush.bf16.msra.mxu0 %v3112
        %4783 = vmatpush.bf16.msra.mxu0 %v3108
        %4784 = vmatpush.bf16.msra.mxu0 %v3104
        %4785 = vmatpush.bf16.msra.mxu0 %v3100
        %4786 = vmatpush.bf16.msra.mxu0 %v3096
        %4787 = vmatmul.bf16.gmra.mxu0 %v1341
        %v4788 = vpop.f32.mrf.mxu0
        %v4789 = vadd.f32 %v4740, %v4788
        %v4790 = vpop.f32.mrf.mxu0
        %v4791 = vadd.f32 %v4742, %v4790
        %4792 = vmatmul.bf16.gmra.mxu0 %v1355
        %v4793 = vpop.f32.mrf.mxu0
        %v4794 = vadd.f32 %v4745, %v4793
        %v4795 = vpop.f32.mrf.mxu0
        %v4796 = vadd.f32 %v4747, %v4795
        %4797 = vmatmul.bf16.gmra.mxu0 %v1369
        %v4798 = vpop.f32.mrf.mxu0
        %v4799 = vadd.f32 %v4750, %v4798
        %v4800 = vpop.f32.mrf.mxu0
        %v4801 = vadd.f32 %v4752, %v4800
        %4802 = vmatmul.bf16.gmra.mxu0 %v1383
        %v4803 = vpop.f32.mrf.mxu0
        %v4804 = vadd.f32 %v4755, %v4803
        %v4805 = vpop.f32.mrf.mxu0
        %v4806 = vadd.f32 %v4757, %v4805
        %4807 = vmatmul.bf16.gmra.mxu0 %v1397
        %v4808 = vpop.f32.mrf.mxu0
        %v4809 = vadd.f32 %v4760, %v4808
        %v4810 = vpop.f32.mrf.mxu0
        %v4811 = vadd.f32 %v4762, %v4810
        %4812 = vmatmul.bf16.gmra.mxu0 %v1411
        %v4813 = vpop.f32.mrf.mxu0
        %v4814 = vadd.f32 %v4765, %v4813
        %v4815 = vpop.f32.mrf.mxu0
        %v4816 = vadd.f32 %v4767, %v4815
        %4817 = vmatmul.bf16.gmra.mxu0 %v1425
        %v4818 = vpop.f32.mrf.mxu0
        %v4819 = vadd.f32 %v4770, %v4818
        %v4820 = vpop.f32.mrf.mxu0
        %v4821 = vadd.f32 %v4772, %v4820
        %4822 = vmatmul.bf16.gmra.mxu0 %v1439
        %v4823 = vpop.f32.mrf.mxu0
        %v4824 = vadd.f32 %v4775, %v4823
        %v4825 = vpop.f32.mrf.mxu0
        %v4826 = vadd.f32 %v4777, %v4825
        %4827 = vdwg.mxu0
        %4828 = vmatpush.bf16.msra.mxu0 %v3156
        %4829 = vmatpush.bf16.msra.mxu0 %v3152
        %4830 = vmatpush.bf16.msra.mxu0 %v3148
        %4831 = vmatpush.bf16.msra.mxu0 %v3144
        %4832 = vmatpush.bf16.msra.mxu0 %v3140
        %4833 = vmatpush.bf16.msra.mxu0 %v3136
        %4834 = vmatpush.bf16.msra.mxu0 %v3132
        %4835 = vmatpush.bf16.msra.mxu0 %v3128
        %4836 = vmatmul.bf16.gmra.mxu0 %v1342
        %v4837 = vpop.f32.mrf.mxu0
        %v4838 = vadd.f32 %v4789, %v4837
        %v4839 = vpop.f32.mrf.mxu0
        %v4840 = vadd.f32 %v4791, %v4839
        %4841 = vmatmul.bf16.gmra.mxu0 %v1356
        %v4842 = vpop.f32.mrf.mxu0
        %v4843 = vadd.f32 %v4794, %v4842
        %v4844 = vpop.f32.mrf.mxu0
        %v4845 = vadd.f32 %v4796, %v4844
        %4846 = vmatmul.bf16.gmra.mxu0 %v1370
        %v4847 = vpop.f32.mrf.mxu0
        %v4848 = vadd.f32 %v4799, %v4847
        %v4849 = vpop.f32.mrf.mxu0
        %v4850 = vadd.f32 %v4801, %v4849
        %4851 = vmatmul.bf16.gmra.mxu0 %v1384
        %v4852 = vpop.f32.mrf.mxu0
        %v4853 = vadd.f32 %v4804, %v4852
        %v4854 = vpop.f32.mrf.mxu0
        %v4855 = vadd.f32 %v4806, %v4854
        %4856 = vmatmul.bf16.gmra.mxu0 %v1398
        %v4857 = vpop.f32.mrf.mxu0
        %v4858 = vadd.f32 %v4809, %v4857
        %v4859 = vpop.f32.mrf.mxu0
        %v4860 = vadd.f32 %v4811, %v4859
        %4861 = vmatmul.bf16.gmra.mxu0 %v1412
        %v4862 = vpop.f32.mrf.mxu0
        %v4863 = vadd.f32 %v4814, %v4862
        %v4864 = vpop.f32.mrf.mxu0
        %v4865 = vadd.f32 %v4816, %v4864
        %4866 = vmatmul.bf16.gmra.mxu0 %v1426
        %v4867 = vpop.f32.mrf.mxu0
        %v4868 = vadd.f32 %v4819, %v4867
        %v4869 = vpop.f32.mrf.mxu0
        %v4870 = vadd.f32 %v4821, %v4869
        %4871 = vmatmul.bf16.gmra.mxu0 %v1440
        %v4872 = vpop.f32.mrf.mxu0
        %v4873 = vadd.f32 %v4824, %v4872
        %v4874 = vpop.f32.mrf.mxu0
        %v4875 = vadd.f32 %v4826, %v4874
        %4876 = vdwg.mxu0
        %4877 = vmatpush.bf16.msra.mxu0 %v3188
        %4878 = vmatpush.bf16.msra.mxu0 %v3184
        %4879 = vmatpush.bf16.msra.mxu0 %v3180
        %4880 = vmatpush.bf16.msra.mxu0 %v3176
        %4881 = vmatpush.bf16.msra.mxu0 %v3172
        %4882 = vmatpush.bf16.msra.mxu0 %v3168
        %4883 = vmatpush.bf16.msra.mxu0 %v3164
        %4884 = vmatpush.bf16.msra.mxu0 %v3160
        %4885 = vmatmul.bf16.gmra.mxu0 %v1343
        %v4886 = vpop.f32.mrf.mxu0
        %v4887 = vadd.f32 %v4838, %v4886
        %v4888 = vpop.f32.mrf.mxu0
        %v4889 = vadd.f32 %v4840, %v4888
        %4890 = vmatmul.bf16.gmra.mxu0 %v1357
        %v4891 = vpop.f32.mrf.mxu0
        %v4892 = vadd.f32 %v4843, %v4891
        %v4893 = vpop.f32.mrf.mxu0
        %v4894 = vadd.f32 %v4845, %v4893
        %4895 = vmatmul.bf16.gmra.mxu0 %v1371
        %v4896 = vpop.f32.mrf.mxu0
        %v4897 = vadd.f32 %v4848, %v4896
        %v4898 = vpop.f32.mrf.mxu0
        %v4899 = vadd.f32 %v4850, %v4898
        %4900 = vmatmul.bf16.gmra.mxu0 %v1385
        %v4901 = vpop.f32.mrf.mxu0
        %v4902 = vadd.f32 %v4853, %v4901
        %v4903 = vpop.f32.mrf.mxu0
        %v4904 = vadd.f32 %v4855, %v4903
        %4905 = vmatmul.bf16.gmra.mxu0 %v1399
        %v4906 = vpop.f32.mrf.mxu0
        %v4907 = vadd.f32 %v4858, %v4906
        %v4908 = vpop.f32.mrf.mxu0
        %v4909 = vadd.f32 %v4860, %v4908
        %4910 = vmatmul.bf16.gmra.mxu0 %v1413
        %v4911 = vpop.f32.mrf.mxu0
        %v4912 = vadd.f32 %v4863, %v4911
        %v4913 = vpop.f32.mrf.mxu0
        %v4914 = vadd.f32 %v4865, %v4913
        %4915 = vmatmul.bf16.gmra.mxu0 %v1427
        %v4916 = vpop.f32.mrf.mxu0
        %v4917 = vadd.f32 %v4868, %v4916
        %v4918 = vpop.f32.mrf.mxu0
        %v4919 = vadd.f32 %v4870, %v4918
        %4920 = vmatmul.bf16.gmra.mxu0 %v1441
        %v4921 = vpop.f32.mrf.mxu0
        %v4922 = vadd.f32 %v4873, %v4921
        %v4923 = vpop.f32.mrf.mxu0
        %v4924 = vadd.f32 %v4875, %v4923
        %4925 = vdwg.mxu0
        %4926 = vmatpush.bf16.msra.mxu0 %v3220
        %4927 = vmatpush.bf16.msra.mxu0 %v3216
        %4928 = vmatpush.bf16.msra.mxu0 %v3212
        %4929 = vmatpush.bf16.msra.mxu0 %v3208
        %4930 = vmatpush.bf16.msra.mxu0 %v3204
        %4931 = vmatpush.bf16.msra.mxu0 %v3200
        %4932 = vmatpush.bf16.msra.mxu0 %v3196
        %4933 = vmatpush.bf16.msra.mxu0 %v3192
        %4934 = vmatmul.bf16.gmra.mxu0 %v1344
        %v4935 = vpop.f32.mrf.mxu0
        %v4936 = vadd.f32 %v4887, %v4935
        %v4937 = vpop.f32.mrf.mxu0
        %v4938 = vadd.f32 %v4889, %v4937
        %4939 = vmatmul.bf16.gmra.mxu0 %v1358
        %v4940 = vpop.f32.mrf.mxu0
        %v4941 = vadd.f32 %v4892, %v4940
        %v4942 = vpop.f32.mrf.mxu0
        %v4943 = vadd.f32 %v4894, %v4942
        %4944 = vmatmul.bf16.gmra.mxu0 %v1372
        %v4945 = vpop.f32.mrf.mxu0
        %v4946 = vadd.f32 %v4897, %v4945
        %v4947 = vpop.f32.mrf.mxu0
        %v4948 = vadd.f32 %v4899, %v4947
        %4949 = vmatmul.bf16.gmra.mxu0 %v1386
        %v4950 = vpop.f32.mrf.mxu0
        %v4951 = vadd.f32 %v4902, %v4950
        %v4952 = vpop.f32.mrf.mxu0
        %v4953 = vadd.f32 %v4904, %v4952
        %4954 = vmatmul.bf16.gmra.mxu0 %v1400
        %v4955 = vpop.f32.mrf.mxu0
        %v4956 = vadd.f32 %v4907, %v4955
        %v4957 = vpop.f32.mrf.mxu0
        %v4958 = vadd.f32 %v4909, %v4957
        %4959 = vmatmul.bf16.gmra.mxu0 %v1414
        %v4960 = vpop.f32.mrf.mxu0
        %v4961 = vadd.f32 %v4912, %v4960
        %v4962 = vpop.f32.mrf.mxu0
        %v4963 = vadd.f32 %v4914, %v4962
        %4964 = vmatmul.bf16.gmra.mxu0 %v1428
        %v4965 = vpop.f32.mrf.mxu0
        %v4966 = vadd.f32 %v4917, %v4965
        %v4967 = vpop.f32.mrf.mxu0
        %v4968 = vadd.f32 %v4919, %v4967
        %4969 = vmatmul.bf16.gmra.mxu0 %v1442
        %v4970 = vpop.f32.mrf.mxu0
        %v4971 = vadd.f32 %v4922, %v4970
        %v4972 = vpop.f32.mrf.mxu0
        %v4973 = vadd.f32 %v4924, %v4972
        %4974 = vdwg.mxu0
        %4975 = vmatpush.bf16.msra.mxu0 %v3252
        %4976 = vmatpush.bf16.msra.mxu0 %v3248
        %4977 = vmatpush.bf16.msra.mxu0 %v3244
        %4978 = vmatpush.bf16.msra.mxu0 %v3240
        %4979 = vmatpush.bf16.msra.mxu0 %v3236
        %4980 = vmatpush.bf16.msra.mxu0 %v3232
        %4981 = vmatpush.bf16.msra.mxu0 %v3228
        %4982 = vmatpush.bf16.msra.mxu0 %v3224
        %4983 = vmatmul.bf16.gmra.mxu0 %v1345
        %v4984 = vpop.f32.mrf.mxu0
        %v4985 = vadd.f32 %v4936, %v4984
        %v4986 = vpop.f32.mrf.mxu0
        %v4987 = vadd.f32 %v4938, %v4986
        %4988 = vmatmul.bf16.gmra.mxu0 %v1359
        %v4989 = vpop.f32.mrf.mxu0
        %v4990 = vadd.f32 %v4941, %v4989
        %v4991 = vpop.f32.mrf.mxu0
        %v4992 = vadd.f32 %v4943, %v4991
        %4993 = vmatmul.bf16.gmra.mxu0 %v1373
        %v4994 = vpop.f32.mrf.mxu0
        %v4995 = vadd.f32 %v4946, %v4994
        %v4996 = vpop.f32.mrf.mxu0
        %v4997 = vadd.f32 %v4948, %v4996
        %4998 = vmatmul.bf16.gmra.mxu0 %v1387
        %v4999 = vpop.f32.mrf.mxu0
        %v5000 = vadd.f32 %v4951, %v4999
        %v5001 = vpop.f32.mrf.mxu0
        %v5002 = vadd.f32 %v4953, %v5001
        %5003 = vmatmul.bf16.gmra.mxu0 %v1401
        %v5004 = vpop.f32.mrf.mxu0
        %v5005 = vadd.f32 %v4956, %v5004
        %v5006 = vpop.f32.mrf.mxu0
        %v5007 = vadd.f32 %v4958, %v5006
        %5008 = vmatmul.bf16.gmra.mxu0 %v1415
        %v5009 = vpop.f32.mrf.mxu0
        %v5010 = vadd.f32 %v4961, %v5009
        %v5011 = vpop.f32.mrf.mxu0
        %v5012 = vadd.f32 %v4963, %v5011
        %5013 = vmatmul.bf16.gmra.mxu0 %v1429
        %v5014 = vpop.f32.mrf.mxu0
        %v5015 = vadd.f32 %v4966, %v5014
        %v5016 = vpop.f32.mrf.mxu0
        %v5017 = vadd.f32 %v4968, %v5016
        %5018 = vmatmul.bf16.gmra.mxu0 %v1443
        %v5019 = vpop.f32.mrf.mxu0
        %v5020 = vadd.f32 %v4971, %v5019
        %v5021 = vpop.f32.mrf.mxu0
        %v5022 = vadd.f32 %v4973, %v5021
        %5023 = vdwg.mxu0
        %5024 = vmatpush.bf16.msra.mxu0 %v3284
        %5025 = vmatpush.bf16.msra.mxu0 %v3280
        %5026 = vmatpush.bf16.msra.mxu0 %v3276
        %5027 = vmatpush.bf16.msra.mxu0 %v3272
        %5028 = vmatpush.bf16.msra.mxu0 %v3268
        %5029 = vmatpush.bf16.msra.mxu0 %v3264
        %5030 = vmatpush.bf16.msra.mxu0 %v3260
        %5031 = vmatpush.bf16.msra.mxu0 %v3256
        %5032 = vmatmul.bf16.gmra.mxu0 %v1346
        %v5033 = vpop.f32.mrf.mxu0
        %v5034 = vadd.f32 %v4985, %v5033
        %v5035 = vpop.f32.mrf.mxu0
        %v5036 = vadd.f32 %v4987, %v5035
        %5037 = vmatmul.bf16.gmra.mxu0 %v1360
        %v5038 = vpop.f32.mrf.mxu0
        %v5039 = vadd.f32 %v4990, %v5038
        %v5040 = vpop.f32.mrf.mxu0
        %v5041 = vadd.f32 %v4992, %v5040
        %5042 = vmatmul.bf16.gmra.mxu0 %v1374
        %v5043 = vpop.f32.mrf.mxu0
        %v5044 = vadd.f32 %v4995, %v5043
        %v5045 = vpop.f32.mrf.mxu0
        %v5046 = vadd.f32 %v4997, %v5045
        %5047 = vmatmul.bf16.gmra.mxu0 %v1388
        %v5048 = vpop.f32.mrf.mxu0
        %v5049 = vadd.f32 %v5000, %v5048
        %v5050 = vpop.f32.mrf.mxu0
        %v5051 = vadd.f32 %v5002, %v5050
        %5052 = vmatmul.bf16.gmra.mxu0 %v1402
        %v5053 = vpop.f32.mrf.mxu0
        %v5054 = vadd.f32 %v5005, %v5053
        %v5055 = vpop.f32.mrf.mxu0
        %v5056 = vadd.f32 %v5007, %v5055
        %5057 = vmatmul.bf16.gmra.mxu0 %v1416
        %v5058 = vpop.f32.mrf.mxu0
        %v5059 = vadd.f32 %v5010, %v5058
        %v5060 = vpop.f32.mrf.mxu0
        %v5061 = vadd.f32 %v5012, %v5060
        %5062 = vmatmul.bf16.gmra.mxu0 %v1430
        %v5063 = vpop.f32.mrf.mxu0
        %v5064 = vadd.f32 %v5015, %v5063
        %v5065 = vpop.f32.mrf.mxu0
        %v5066 = vadd.f32 %v5017, %v5065
        %5067 = vmatmul.bf16.gmra.mxu0 %v1444
        %v5068 = vpop.f32.mrf.mxu0
        %v5069 = vadd.f32 %v5020, %v5068
        %v5070 = vpop.f32.mrf.mxu0
        %v5071 = vadd.f32 %v5022, %v5070
        %5072 = vdwg.mxu0
        %5073 = vmatpush.bf16.msra.mxu0 %v3316
        %5074 = vmatpush.bf16.msra.mxu0 %v3312
        %5075 = vmatpush.bf16.msra.mxu0 %v3308
        %5076 = vmatpush.bf16.msra.mxu0 %v3304
        %5077 = vmatpush.bf16.msra.mxu0 %v3300
        %5078 = vmatpush.bf16.msra.mxu0 %v3296
        %5079 = vmatpush.bf16.msra.mxu0 %v3292
        %5080 = vmatpush.bf16.msra.mxu0 %v3288
        %5081 = vmatmul.bf16.gmra.mxu0 %v1347
        %v5082 = vpop.f32.mrf.mxu0
        %v5083 = vadd.f32 %v5034, %v5082
        %v5084 = vpop.f32.mrf.mxu0
        %v5085 = vadd.f32 %v5036, %v5084
        %5086 = vmatmul.bf16.gmra.mxu0 %v1361
        %v5087 = vpop.f32.mrf.mxu0
        %v5088 = vadd.f32 %v5039, %v5087
        %v5089 = vpop.f32.mrf.mxu0
        %v5090 = vadd.f32 %v5041, %v5089
        %5091 = vmatmul.bf16.gmra.mxu0 %v1375
        %v5092 = vpop.f32.mrf.mxu0
        %v5093 = vadd.f32 %v5044, %v5092
        %v5094 = vpop.f32.mrf.mxu0
        %v5095 = vadd.f32 %v5046, %v5094
        %5096 = vmatmul.bf16.gmra.mxu0 %v1389
        %v5097 = vpop.f32.mrf.mxu0
        %v5098 = vadd.f32 %v5049, %v5097
        %v5099 = vpop.f32.mrf.mxu0
        %v5100 = vadd.f32 %v5051, %v5099
        %5101 = vmatmul.bf16.gmra.mxu0 %v1403
        %v5102 = vpop.f32.mrf.mxu0
        %v5103 = vadd.f32 %v5054, %v5102
        %v5104 = vpop.f32.mrf.mxu0
        %v5105 = vadd.f32 %v5056, %v5104
        %5106 = vmatmul.bf16.gmra.mxu0 %v1417
        %v5107 = vpop.f32.mrf.mxu0
        %v5108 = vadd.f32 %v5059, %v5107
        %v5109 = vpop.f32.mrf.mxu0
        %v5110 = vadd.f32 %v5061, %v5109
        %5111 = vmatmul.bf16.gmra.mxu0 %v1431
        %v5112 = vpop.f32.mrf.mxu0
        %v5113 = vadd.f32 %v5064, %v5112
        %v5114 = vpop.f32.mrf.mxu0
        %v5115 = vadd.f32 %v5066, %v5114
        %5116 = vmatmul.bf16.gmra.mxu0 %v1445
        %v5117 = vpop.f32.mrf.mxu0
        %v5118 = vadd.f32 %v5069, %v5117
        %v5119 = vpop.f32.mrf.mxu0
        %v5120 = vadd.f32 %v5071, %v5119
        %5121 = vdwg.mxu0
        %5122 = vmatpush.bf16.msra.mxu0 %v3348
        %5123 = vmatpush.bf16.msra.mxu0 %v3344
        %5124 = vmatpush.bf16.msra.mxu0 %v3340
        %5125 = vmatpush.bf16.msra.mxu0 %v3336
        %5126 = vmatpush.bf16.msra.mxu0 %v3332
        %5127 = vmatpush.bf16.msra.mxu0 %v3328
        %5128 = vmatpush.bf16.msra.mxu0 %v3324
        %5129 = vmatpush.bf16.msra.mxu0 %v3320
        %5130 = vmatmul.bf16.gmra.mxu0 %v1348
        %v5131 = vpop.f32.mrf.mxu0
        %v5132 = vadd.f32 %v5083, %v5131
        %v5133 = vpop.f32.mrf.mxu0
        %v5134 = vadd.f32 %v5085, %v5133
        %5135 = vmatmul.bf16.gmra.mxu0 %v1362
        %v5136 = vpop.f32.mrf.mxu0
        %v5137 = vadd.f32 %v5088, %v5136
        %v5138 = vpop.f32.mrf.mxu0
        %v5139 = vadd.f32 %v5090, %v5138
        %5140 = vmatmul.bf16.gmra.mxu0 %v1376
        %v5141 = vpop.f32.mrf.mxu0
        %v5142 = vadd.f32 %v5093, %v5141
        %v5143 = vpop.f32.mrf.mxu0
        %v5144 = vadd.f32 %v5095, %v5143
        %5145 = vmatmul.bf16.gmra.mxu0 %v1390
        %v5146 = vpop.f32.mrf.mxu0
        %v5147 = vadd.f32 %v5098, %v5146
        %v5148 = vpop.f32.mrf.mxu0
        %v5149 = vadd.f32 %v5100, %v5148
        %5150 = vmatmul.bf16.gmra.mxu0 %v1404
        %v5151 = vpop.f32.mrf.mxu0
        %v5152 = vadd.f32 %v5103, %v5151
        %v5153 = vpop.f32.mrf.mxu0
        %v5154 = vadd.f32 %v5105, %v5153
        %5155 = vmatmul.bf16.gmra.mxu0 %v1418
        %v5156 = vpop.f32.mrf.mxu0
        %v5157 = vadd.f32 %v5108, %v5156
        %v5158 = vpop.f32.mrf.mxu0
        %v5159 = vadd.f32 %v5110, %v5158
        %5160 = vmatmul.bf16.gmra.mxu0 %v1432
        %v5161 = vpop.f32.mrf.mxu0
        %v5162 = vadd.f32 %v5113, %v5161
        %v5163 = vpop.f32.mrf.mxu0
        %v5164 = vadd.f32 %v5115, %v5163
        %5165 = vmatmul.bf16.gmra.mxu0 %v1446
        %v5166 = vpop.f32.mrf.mxu0
        %v5167 = vadd.f32 %v5118, %v5166
        %v5168 = vpop.f32.mrf.mxu0
        %v5169 = vadd.f32 %v5120, %v5168
        %5170 = vdwg.mxu0
        %5171 = vmatpush.bf16.msra.mxu0 %v2933
        %5172 = vmatpush.bf16.msra.mxu0 %v2929
        %5173 = vmatpush.bf16.msra.mxu0 %v2925
        %5174 = vmatpush.bf16.msra.mxu0 %v2921
        %5175 = vmatpush.bf16.msra.mxu0 %v2917
        %5176 = vmatpush.bf16.msra.mxu0 %v2913
        %5177 = vmatpush.bf16.msra.mxu0 %v2909
        %5178 = vmatpush.bf16.msra.mxu0 %v2905
        %5179 = vmatmul.bf16.gmra.mxu0 %v1335
        %v5180 = vpop.f32.mrf.mxu0
        %v5181 = vadd.f32 0.0, %v5180
        %v5182 = vpop.f32.mrf.mxu0
        %v5183 = vadd.f32 0.0, %v5182
        %5184 = vmatmul.bf16.gmra.mxu0 %v1349
        %v5185 = vpop.f32.mrf.mxu0
        %v5186 = vadd.f32 0.0, %v5185
        %v5187 = vpop.f32.mrf.mxu0
        %v5188 = vadd.f32 0.0, %v5187
        %5189 = vmatmul.bf16.gmra.mxu0 %v1363
        %v5190 = vpop.f32.mrf.mxu0
        %v5191 = vadd.f32 0.0, %v5190
        %v5192 = vpop.f32.mrf.mxu0
        %v5193 = vadd.f32 0.0, %v5192
        %5194 = vmatmul.bf16.gmra.mxu0 %v1377
        %v5195 = vpop.f32.mrf.mxu0
        %v5196 = vadd.f32 0.0, %v5195
        %v5197 = vpop.f32.mrf.mxu0
        %v5198 = vadd.f32 0.0, %v5197
        %5199 = vmatmul.bf16.gmra.mxu0 %v1391
        %v5200 = vpop.f32.mrf.mxu0
        %v5201 = vadd.f32 0.0, %v5200
        %v5202 = vpop.f32.mrf.mxu0
        %v5203 = vadd.f32 0.0, %v5202
        %5204 = vmatmul.bf16.gmra.mxu0 %v1405
        %v5205 = vpop.f32.mrf.mxu0
        %v5206 = vadd.f32 0.0, %v5205
        %v5207 = vpop.f32.mrf.mxu0
        %v5208 = vadd.f32 0.0, %v5207
        %5209 = vmatmul.bf16.gmra.mxu0 %v1419
        %v5210 = vpop.f32.mrf.mxu0
        %v5211 = vadd.f32 0.0, %v5210
        %v5212 = vpop.f32.mrf.mxu0
        %v5213 = vadd.f32 0.0, %v5212
        %5214 = vmatmul.bf16.gmra.mxu0 %v1433
        %v5215 = vpop.f32.mrf.mxu0
        %v5216 = vadd.f32 0.0, %v5215
        %v5217 = vpop.f32.mrf.mxu0
        %v5218 = vadd.f32 0.0, %v5217
        %5219 = vdwg.mxu0
        %5220 = vmatpush.bf16.msra.mxu0 %v2965
        %5221 = vmatpush.bf16.msra.mxu0 %v2961
        %5222 = vmatpush.bf16.msra.mxu0 %v2957
        %5223 = vmatpush.bf16.msra.mxu0 %v2953
        %5224 = vmatpush.bf16.msra.mxu0 %v2949
        %5225 = vmatpush.bf16.msra.mxu0 %v2945
        %5226 = vmatpush.bf16.msra.mxu0 %v2941
        %5227 = vmatpush.bf16.msra.mxu0 %v2937
        %5228 = vmatmul.bf16.gmra.mxu0 %v1336
        %v5229 = vpop.f32.mrf.mxu0
        %v5230 = vadd.f32 %v5181, %v5229
        %v5231 = vpop.f32.mrf.mxu0
        %v5232 = vadd.f32 %v5183, %v5231
        %5233 = vmatmul.bf16.gmra.mxu0 %v1350
        %v5234 = vpop.f32.mrf.mxu0
        %v5235 = vadd.f32 %v5186, %v5234
        %v5236 = vpop.f32.mrf.mxu0
        %v5237 = vadd.f32 %v5188, %v5236
        %5238 = vmatmul.bf16.gmra.mxu0 %v1364
        %v5239 = vpop.f32.mrf.mxu0
        %v5240 = vadd.f32 %v5191, %v5239
        %v5241 = vpop.f32.mrf.mxu0
        %v5242 = vadd.f32 %v5193, %v5241
        %5243 = vmatmul.bf16.gmra.mxu0 %v1378
        %v5244 = vpop.f32.mrf.mxu0
        %v5245 = vadd.f32 %v5196, %v5244
        %v5246 = vpop.f32.mrf.mxu0
        %v5247 = vadd.f32 %v5198, %v5246
        %5248 = vmatmul.bf16.gmra.mxu0 %v1392
        %v5249 = vpop.f32.mrf.mxu0
        %v5250 = vadd.f32 %v5201, %v5249
        %v5251 = vpop.f32.mrf.mxu0
        %v5252 = vadd.f32 %v5203, %v5251
        %5253 = vmatmul.bf16.gmra.mxu0 %v1406
        %v5254 = vpop.f32.mrf.mxu0
        %v5255 = vadd.f32 %v5206, %v5254
        %v5256 = vpop.f32.mrf.mxu0
        %v5257 = vadd.f32 %v5208, %v5256
        %5258 = vmatmul.bf16.gmra.mxu0 %v1420
        %v5259 = vpop.f32.mrf.mxu0
        %v5260 = vadd.f32 %v5211, %v5259
        %v5261 = vpop.f32.mrf.mxu0
        %v5262 = vadd.f32 %v5213, %v5261
        %5263 = vmatmul.bf16.gmra.mxu0 %v1434
        %v5264 = vpop.f32.mrf.mxu0
        %v5265 = vadd.f32 %v5216, %v5264
        %v5266 = vpop.f32.mrf.mxu0
        %v5267 = vadd.f32 %v5218, %v5266
        %5268 = vdwg.mxu0
        %5269 = vmatpush.bf16.msra.mxu0 %v2997
        %5270 = vmatpush.bf16.msra.mxu0 %v2993
        %5271 = vmatpush.bf16.msra.mxu0 %v2989
        %5272 = vmatpush.bf16.msra.mxu0 %v2985
        %5273 = vmatpush.bf16.msra.mxu0 %v2981
        %5274 = vmatpush.bf16.msra.mxu0 %v2977
        %5275 = vmatpush.bf16.msra.mxu0 %v2973
        %5276 = vmatpush.bf16.msra.mxu0 %v2969
        %5277 = vmatmul.bf16.gmra.mxu0 %v1337
        %v5278 = vpop.f32.mrf.mxu0
        %v5279 = vadd.f32 %v5230, %v5278
        %v5280 = vpop.f32.mrf.mxu0
        %v5281 = vadd.f32 %v5232, %v5280
        %5282 = vmatmul.bf16.gmra.mxu0 %v1351
        %v5283 = vpop.f32.mrf.mxu0
        %v5284 = vadd.f32 %v5235, %v5283
        %v5285 = vpop.f32.mrf.mxu0
        %v5286 = vadd.f32 %v5237, %v5285
        %5287 = vmatmul.bf16.gmra.mxu0 %v1365
        %v5288 = vpop.f32.mrf.mxu0
        %v5289 = vadd.f32 %v5240, %v5288
        %v5290 = vpop.f32.mrf.mxu0
        %v5291 = vadd.f32 %v5242, %v5290
        %5292 = vmatmul.bf16.gmra.mxu0 %v1379
        %v5293 = vpop.f32.mrf.mxu0
        %v5294 = vadd.f32 %v5245, %v5293
        %v5295 = vpop.f32.mrf.mxu0
        %v5296 = vadd.f32 %v5247, %v5295
        %5297 = vmatmul.bf16.gmra.mxu0 %v1393
        %v5298 = vpop.f32.mrf.mxu0
        %v5299 = vadd.f32 %v5250, %v5298
        %v5300 = vpop.f32.mrf.mxu0
        %v5301 = vadd.f32 %v5252, %v5300
        %5302 = vmatmul.bf16.gmra.mxu0 %v1407
        %v5303 = vpop.f32.mrf.mxu0
        %v5304 = vadd.f32 %v5255, %v5303
        %v5305 = vpop.f32.mrf.mxu0
        %v5306 = vadd.f32 %v5257, %v5305
        %5307 = vmatmul.bf16.gmra.mxu0 %v1421
        %v5308 = vpop.f32.mrf.mxu0
        %v5309 = vadd.f32 %v5260, %v5308
        %v5310 = vpop.f32.mrf.mxu0
        %v5311 = vadd.f32 %v5262, %v5310
        %5312 = vmatmul.bf16.gmra.mxu0 %v1435
        %v5313 = vpop.f32.mrf.mxu0
        %v5314 = vadd.f32 %v5265, %v5313
        %v5315 = vpop.f32.mrf.mxu0
        %v5316 = vadd.f32 %v5267, %v5315
        %5317 = vdwg.mxu0
        %5318 = vmatpush.bf16.msra.mxu0 %v3029
        %5319 = vmatpush.bf16.msra.mxu0 %v3025
        %5320 = vmatpush.bf16.msra.mxu0 %v3021
        %5321 = vmatpush.bf16.msra.mxu0 %v3017
        %5322 = vmatpush.bf16.msra.mxu0 %v3013
        %5323 = vmatpush.bf16.msra.mxu0 %v3009
        %5324 = vmatpush.bf16.msra.mxu0 %v3005
        %5325 = vmatpush.bf16.msra.mxu0 %v3001
        %5326 = vmatmul.bf16.gmra.mxu0 %v1338
        %v5327 = vpop.f32.mrf.mxu0
        %v5328 = vadd.f32 %v5279, %v5327
        %v5329 = vpop.f32.mrf.mxu0
        %v5330 = vadd.f32 %v5281, %v5329
        %5331 = vmatmul.bf16.gmra.mxu0 %v1352
        %v5332 = vpop.f32.mrf.mxu0
        %v5333 = vadd.f32 %v5284, %v5332
        %v5334 = vpop.f32.mrf.mxu0
        %v5335 = vadd.f32 %v5286, %v5334
        %5336 = vmatmul.bf16.gmra.mxu0 %v1366
        %v5337 = vpop.f32.mrf.mxu0
        %v5338 = vadd.f32 %v5289, %v5337
        %v5339 = vpop.f32.mrf.mxu0
        %v5340 = vadd.f32 %v5291, %v5339
        %5341 = vmatmul.bf16.gmra.mxu0 %v1380
        %v5342 = vpop.f32.mrf.mxu0
        %v5343 = vadd.f32 %v5294, %v5342
        %v5344 = vpop.f32.mrf.mxu0
        %v5345 = vadd.f32 %v5296, %v5344
        %5346 = vmatmul.bf16.gmra.mxu0 %v1394
        %v5347 = vpop.f32.mrf.mxu0
        %v5348 = vadd.f32 %v5299, %v5347
        %v5349 = vpop.f32.mrf.mxu0
        %v5350 = vadd.f32 %v5301, %v5349
        %5351 = vmatmul.bf16.gmra.mxu0 %v1408
        %v5352 = vpop.f32.mrf.mxu0
        %v5353 = vadd.f32 %v5304, %v5352
        %v5354 = vpop.f32.mrf.mxu0
        %v5355 = vadd.f32 %v5306, %v5354
        %5356 = vmatmul.bf16.gmra.mxu0 %v1422
        %v5357 = vpop.f32.mrf.mxu0
        %v5358 = vadd.f32 %v5309, %v5357
        %v5359 = vpop.f32.mrf.mxu0
        %v5360 = vadd.f32 %v5311, %v5359
        %5361 = vmatmul.bf16.gmra.mxu0 %v1436
        %v5362 = vpop.f32.mrf.mxu0
        %v5363 = vadd.f32 %v5314, %v5362
        %v5364 = vpop.f32.mrf.mxu0
        %v5365 = vadd.f32 %v5316, %v5364
        %5366 = vdwg.mxu0
        %5367 = vmatpush.bf16.msra.mxu0 %v3061
        %5368 = vmatpush.bf16.msra.mxu0 %v3057
        %5369 = vmatpush.bf16.msra.mxu0 %v3053
        %5370 = vmatpush.bf16.msra.mxu0 %v3049
        %5371 = vmatpush.bf16.msra.mxu0 %v3045
        %5372 = vmatpush.bf16.msra.mxu0 %v3041
        %5373 = vmatpush.bf16.msra.mxu0 %v3037
        %5374 = vmatpush.bf16.msra.mxu0 %v3033
        %5375 = vmatmul.bf16.gmra.mxu0 %v1339
        %v5376 = vpop.f32.mrf.mxu0
        %v5377 = vadd.f32 %v5328, %v5376
        %v5378 = vpop.f32.mrf.mxu0
        %v5379 = vadd.f32 %v5330, %v5378
        %5380 = vmatmul.bf16.gmra.mxu0 %v1353
        %v5381 = vpop.f32.mrf.mxu0
        %v5382 = vadd.f32 %v5333, %v5381
        %v5383 = vpop.f32.mrf.mxu0
        %v5384 = vadd.f32 %v5335, %v5383
        %5385 = vmatmul.bf16.gmra.mxu0 %v1367
        %v5386 = vpop.f32.mrf.mxu0
        %v5387 = vadd.f32 %v5338, %v5386
        %v5388 = vpop.f32.mrf.mxu0
        %v5389 = vadd.f32 %v5340, %v5388
        %5390 = vmatmul.bf16.gmra.mxu0 %v1381
        %v5391 = vpop.f32.mrf.mxu0
        %v5392 = vadd.f32 %v5343, %v5391
        %v5393 = vpop.f32.mrf.mxu0
        %v5394 = vadd.f32 %v5345, %v5393
        %5395 = vmatmul.bf16.gmra.mxu0 %v1395
        %v5396 = vpop.f32.mrf.mxu0
        %v5397 = vadd.f32 %v5348, %v5396
        %v5398 = vpop.f32.mrf.mxu0
        %v5399 = vadd.f32 %v5350, %v5398
        %5400 = vmatmul.bf16.gmra.mxu0 %v1409
        %v5401 = vpop.f32.mrf.mxu0
        %v5402 = vadd.f32 %v5353, %v5401
        %v5403 = vpop.f32.mrf.mxu0
        %v5404 = vadd.f32 %v5355, %v5403
        %5405 = vmatmul.bf16.gmra.mxu0 %v1423
        %v5406 = vpop.f32.mrf.mxu0
        %v5407 = vadd.f32 %v5358, %v5406
        %v5408 = vpop.f32.mrf.mxu0
        %v5409 = vadd.f32 %v5360, %v5408
        %5410 = vmatmul.bf16.gmra.mxu0 %v1437
        %v5411 = vpop.f32.mrf.mxu0
        %v5412 = vadd.f32 %v5363, %v5411
        %v5413 = vpop.f32.mrf.mxu0
        %v5414 = vadd.f32 %v5365, %v5413
        %5415 = vdwg.mxu0
        %5416 = vmatpush.bf16.msra.mxu0 %v3093
        %5417 = vmatpush.bf16.msra.mxu0 %v3089
        %5418 = vmatpush.bf16.msra.mxu0 %v3085
        %5419 = vmatpush.bf16.msra.mxu0 %v3081
        %5420 = vmatpush.bf16.msra.mxu0 %v3077
        %5421 = vmatpush.bf16.msra.mxu0 %v3073
        %5422 = vmatpush.bf16.msra.mxu0 %v3069
        %5423 = vmatpush.bf16.msra.mxu0 %v3065
        %5424 = vmatmul.bf16.gmra.mxu0 %v1340
        %v5425 = vpop.f32.mrf.mxu0
        %v5426 = vadd.f32 %v5377, %v5425
        %v5427 = vpop.f32.mrf.mxu0
        %v5428 = vadd.f32 %v5379, %v5427
        %5429 = vmatmul.bf16.gmra.mxu0 %v1354
        %v5430 = vpop.f32.mrf.mxu0
        %v5431 = vadd.f32 %v5382, %v5430
        %v5432 = vpop.f32.mrf.mxu0
        %v5433 = vadd.f32 %v5384, %v5432
        %5434 = vmatmul.bf16.gmra.mxu0 %v1368
        %v5435 = vpop.f32.mrf.mxu0
        %v5436 = vadd.f32 %v5387, %v5435
        %v5437 = vpop.f32.mrf.mxu0
        %v5438 = vadd.f32 %v5389, %v5437
        %5439 = vmatmul.bf16.gmra.mxu0 %v1382
        %v5440 = vpop.f32.mrf.mxu0
        %v5441 = vadd.f32 %v5392, %v5440
        %v5442 = vpop.f32.mrf.mxu0
        %v5443 = vadd.f32 %v5394, %v5442
        %5444 = vmatmul.bf16.gmra.mxu0 %v1396
        %v5445 = vpop.f32.mrf.mxu0
        %v5446 = vadd.f32 %v5397, %v5445
        %v5447 = vpop.f32.mrf.mxu0
        %v5448 = vadd.f32 %v5399, %v5447
        %5449 = vmatmul.bf16.gmra.mxu0 %v1410
        %v5450 = vpop.f32.mrf.mxu0
        %v5451 = vadd.f32 %v5402, %v5450
        %v5452 = vpop.f32.mrf.mxu0
        %v5453 = vadd.f32 %v5404, %v5452
        %5454 = vmatmul.bf16.gmra.mxu0 %v1424
        %v5455 = vpop.f32.mrf.mxu0
        %v5456 = vadd.f32 %v5407, %v5455
        %v5457 = vpop.f32.mrf.mxu0
        %v5458 = vadd.f32 %v5409, %v5457
        %5459 = vmatmul.bf16.gmra.mxu0 %v1438
        %v5460 = vpop.f32.mrf.mxu0
        %v5461 = vadd.f32 %v5412, %v5460
        %v5462 = vpop.f32.mrf.mxu0
        %v5463 = vadd.f32 %v5414, %v5462
        %5464 = vdwg.mxu0
        %5465 = vmatpush.bf16.msra.mxu0 %v3125
        %5466 = vmatpush.bf16.msra.mxu0 %v3121
        %5467 = vmatpush.bf16.msra.mxu0 %v3117
        %5468 = vmatpush.bf16.msra.mxu0 %v3113
        %5469 = vmatpush.bf16.msra.mxu0 %v3109
        %5470 = vmatpush.bf16.msra.mxu0 %v3105
        %5471 = vmatpush.bf16.msra.mxu0 %v3101
        %5472 = vmatpush.bf16.msra.mxu0 %v3097
        %5473 = vmatmul.bf16.gmra.mxu0 %v1341
        %v5474 = vpop.f32.mrf.mxu0
        %v5475 = vadd.f32 %v5426, %v5474
        %v5476 = vpop.f32.mrf.mxu0
        %v5477 = vadd.f32 %v5428, %v5476
        %5478 = vmatmul.bf16.gmra.mxu0 %v1355
        %v5479 = vpop.f32.mrf.mxu0
        %v5480 = vadd.f32 %v5431, %v5479
        %v5481 = vpop.f32.mrf.mxu0
        %v5482 = vadd.f32 %v5433, %v5481
        %5483 = vmatmul.bf16.gmra.mxu0 %v1369
        %v5484 = vpop.f32.mrf.mxu0
        %v5485 = vadd.f32 %v5436, %v5484
        %v5486 = vpop.f32.mrf.mxu0
        %v5487 = vadd.f32 %v5438, %v5486
        %5488 = vmatmul.bf16.gmra.mxu0 %v1383
        %v5489 = vpop.f32.mrf.mxu0
        %v5490 = vadd.f32 %v5441, %v5489
        %v5491 = vpop.f32.mrf.mxu0
        %v5492 = vadd.f32 %v5443, %v5491
        %5493 = vmatmul.bf16.gmra.mxu0 %v1397
        %v5494 = vpop.f32.mrf.mxu0
        %v5495 = vadd.f32 %v5446, %v5494
        %v5496 = vpop.f32.mrf.mxu0
        %v5497 = vadd.f32 %v5448, %v5496
        %5498 = vmatmul.bf16.gmra.mxu0 %v1411
        %v5499 = vpop.f32.mrf.mxu0
        %v5500 = vadd.f32 %v5451, %v5499
        %v5501 = vpop.f32.mrf.mxu0
        %v5502 = vadd.f32 %v5453, %v5501
        %5503 = vmatmul.bf16.gmra.mxu0 %v1425
        %v5504 = vpop.f32.mrf.mxu0
        %v5505 = vadd.f32 %v5456, %v5504
        %v5506 = vpop.f32.mrf.mxu0
        %v5507 = vadd.f32 %v5458, %v5506
        %5508 = vmatmul.bf16.gmra.mxu0 %v1439
        %v5509 = vpop.f32.mrf.mxu0
        %v5510 = vadd.f32 %v5461, %v5509
        %v5511 = vpop.f32.mrf.mxu0
        %v5512 = vadd.f32 %v5463, %v5511
        %5513 = vdwg.mxu0
        %5514 = vmatpush.bf16.msra.mxu0 %v3157
        %5515 = vmatpush.bf16.msra.mxu0 %v3153
        %5516 = vmatpush.bf16.msra.mxu0 %v3149
        %5517 = vmatpush.bf16.msra.mxu0 %v3145
        %5518 = vmatpush.bf16.msra.mxu0 %v3141
        %5519 = vmatpush.bf16.msra.mxu0 %v3137
        %5520 = vmatpush.bf16.msra.mxu0 %v3133
        %5521 = vmatpush.bf16.msra.mxu0 %v3129
        %5522 = vmatmul.bf16.gmra.mxu0 %v1342
        %v5523 = vpop.f32.mrf.mxu0
        %v5524 = vadd.f32 %v5475, %v5523
        %v5525 = vpop.f32.mrf.mxu0
        %v5526 = vadd.f32 %v5477, %v5525
        %5527 = vmatmul.bf16.gmra.mxu0 %v1356
        %v5528 = vpop.f32.mrf.mxu0
        %v5529 = vadd.f32 %v5480, %v5528
        %v5530 = vpop.f32.mrf.mxu0
        %v5531 = vadd.f32 %v5482, %v5530
        %5532 = vmatmul.bf16.gmra.mxu0 %v1370
        %v5533 = vpop.f32.mrf.mxu0
        %v5534 = vadd.f32 %v5485, %v5533
        %v5535 = vpop.f32.mrf.mxu0
        %v5536 = vadd.f32 %v5487, %v5535
        %5537 = vmatmul.bf16.gmra.mxu0 %v1384
        %v5538 = vpop.f32.mrf.mxu0
        %v5539 = vadd.f32 %v5490, %v5538
        %v5540 = vpop.f32.mrf.mxu0
        %v5541 = vadd.f32 %v5492, %v5540
        %5542 = vmatmul.bf16.gmra.mxu0 %v1398
        %v5543 = vpop.f32.mrf.mxu0
        %v5544 = vadd.f32 %v5495, %v5543
        %v5545 = vpop.f32.mrf.mxu0
        %v5546 = vadd.f32 %v5497, %v5545
        %5547 = vmatmul.bf16.gmra.mxu0 %v1412
        %v5548 = vpop.f32.mrf.mxu0
        %v5549 = vadd.f32 %v5500, %v5548
        %v5550 = vpop.f32.mrf.mxu0
        %v5551 = vadd.f32 %v5502, %v5550
        %5552 = vmatmul.bf16.gmra.mxu0 %v1426
        %v5553 = vpop.f32.mrf.mxu0
        %v5554 = vadd.f32 %v5505, %v5553
        %v5555 = vpop.f32.mrf.mxu0
        %v5556 = vadd.f32 %v5507, %v5555
        %5557 = vmatmul.bf16.gmra.mxu0 %v1440
        %v5558 = vpop.f32.mrf.mxu0
        %v5559 = vadd.f32 %v5510, %v5558
        %v5560 = vpop.f32.mrf.mxu0
        %v5561 = vadd.f32 %v5512, %v5560
        %5562 = vdwg.mxu0
        %5563 = vmatpush.bf16.msra.mxu0 %v3189
        %5564 = vmatpush.bf16.msra.mxu0 %v3185
        %5565 = vmatpush.bf16.msra.mxu0 %v3181
        %5566 = vmatpush.bf16.msra.mxu0 %v3177
        %5567 = vmatpush.bf16.msra.mxu0 %v3173
        %5568 = vmatpush.bf16.msra.mxu0 %v3169
        %5569 = vmatpush.bf16.msra.mxu0 %v3165
        %5570 = vmatpush.bf16.msra.mxu0 %v3161
        %5571 = vmatmul.bf16.gmra.mxu0 %v1343
        %v5572 = vpop.f32.mrf.mxu0
        %v5573 = vadd.f32 %v5524, %v5572
        %v5574 = vpop.f32.mrf.mxu0
        %v5575 = vadd.f32 %v5526, %v5574
        %5576 = vmatmul.bf16.gmra.mxu0 %v1357
        %v5577 = vpop.f32.mrf.mxu0
        %v5578 = vadd.f32 %v5529, %v5577
        %v5579 = vpop.f32.mrf.mxu0
        %v5580 = vadd.f32 %v5531, %v5579
        %5581 = vmatmul.bf16.gmra.mxu0 %v1371
        %v5582 = vpop.f32.mrf.mxu0
        %v5583 = vadd.f32 %v5534, %v5582
        %v5584 = vpop.f32.mrf.mxu0
        %v5585 = vadd.f32 %v5536, %v5584
        %5586 = vmatmul.bf16.gmra.mxu0 %v1385
        %v5587 = vpop.f32.mrf.mxu0
        %v5588 = vadd.f32 %v5539, %v5587
        %v5589 = vpop.f32.mrf.mxu0
        %v5590 = vadd.f32 %v5541, %v5589
        %5591 = vmatmul.bf16.gmra.mxu0 %v1399
        %v5592 = vpop.f32.mrf.mxu0
        %v5593 = vadd.f32 %v5544, %v5592
        %v5594 = vpop.f32.mrf.mxu0
        %v5595 = vadd.f32 %v5546, %v5594
        %5596 = vmatmul.bf16.gmra.mxu0 %v1413
        %v5597 = vpop.f32.mrf.mxu0
        %v5598 = vadd.f32 %v5549, %v5597
        %v5599 = vpop.f32.mrf.mxu0
        %v5600 = vadd.f32 %v5551, %v5599
        %5601 = vmatmul.bf16.gmra.mxu0 %v1427
        %v5602 = vpop.f32.mrf.mxu0
        %v5603 = vadd.f32 %v5554, %v5602
        %v5604 = vpop.f32.mrf.mxu0
        %v5605 = vadd.f32 %v5556, %v5604
        %5606 = vmatmul.bf16.gmra.mxu0 %v1441
        %v5607 = vpop.f32.mrf.mxu0
        %v5608 = vadd.f32 %v5559, %v5607
        %v5609 = vpop.f32.mrf.mxu0
        %v5610 = vadd.f32 %v5561, %v5609
        %5611 = vdwg.mxu0
        %5612 = vmatpush.bf16.msra.mxu0 %v3221
        %5613 = vmatpush.bf16.msra.mxu0 %v3217
        %5614 = vmatpush.bf16.msra.mxu0 %v3213
        %5615 = vmatpush.bf16.msra.mxu0 %v3209
        %5616 = vmatpush.bf16.msra.mxu0 %v3205
        %5617 = vmatpush.bf16.msra.mxu0 %v3201
        %5618 = vmatpush.bf16.msra.mxu0 %v3197
        %5619 = vmatpush.bf16.msra.mxu0 %v3193
        %5620 = vmatmul.bf16.gmra.mxu0 %v1344
        %v5621 = vpop.f32.mrf.mxu0
        %v5622 = vadd.f32 %v5573, %v5621
        %v5623 = vpop.f32.mrf.mxu0
        %v5624 = vadd.f32 %v5575, %v5623
        %5625 = vmatmul.bf16.gmra.mxu0 %v1358
        %v5626 = vpop.f32.mrf.mxu0
        %v5627 = vadd.f32 %v5578, %v5626
        %v5628 = vpop.f32.mrf.mxu0
        %v5629 = vadd.f32 %v5580, %v5628
        %5630 = vmatmul.bf16.gmra.mxu0 %v1372
        %v5631 = vpop.f32.mrf.mxu0
        %v5632 = vadd.f32 %v5583, %v5631
        %v5633 = vpop.f32.mrf.mxu0
        %v5634 = vadd.f32 %v5585, %v5633
        %5635 = vmatmul.bf16.gmra.mxu0 %v1386
        %v5636 = vpop.f32.mrf.mxu0
        %v5637 = vadd.f32 %v5588, %v5636
        %v5638 = vpop.f32.mrf.mxu0
        %v5639 = vadd.f32 %v5590, %v5638
        %5640 = vmatmul.bf16.gmra.mxu0 %v1400
        %v5641 = vpop.f32.mrf.mxu0
        %v5642 = vadd.f32 %v5593, %v5641
        %v5643 = vpop.f32.mrf.mxu0
        %v5644 = vadd.f32 %v5595, %v5643
        %5645 = vmatmul.bf16.gmra.mxu0 %v1414
        %v5646 = vpop.f32.mrf.mxu0
        %v5647 = vadd.f32 %v5598, %v5646
        %v5648 = vpop.f32.mrf.mxu0
        %v5649 = vadd.f32 %v5600, %v5648
        %5650 = vmatmul.bf16.gmra.mxu0 %v1428
        %v5651 = vpop.f32.mrf.mxu0
        %v5652 = vadd.f32 %v5603, %v5651
        %v5653 = vpop.f32.mrf.mxu0
        %v5654 = vadd.f32 %v5605, %v5653
        %5655 = vmatmul.bf16.gmra.mxu0 %v1442
        %v5656 = vpop.f32.mrf.mxu0
        %v5657 = vadd.f32 %v5608, %v5656
        %v5658 = vpop.f32.mrf.mxu0
        %v5659 = vadd.f32 %v5610, %v5658
        %5660 = vdwg.mxu0
        %5661 = vmatpush.bf16.msra.mxu0 %v3253
        %5662 = vmatpush.bf16.msra.mxu0 %v3249
        %5663 = vmatpush.bf16.msra.mxu0 %v3245
        %5664 = vmatpush.bf16.msra.mxu0 %v3241
        %5665 = vmatpush.bf16.msra.mxu0 %v3237
        %5666 = vmatpush.bf16.msra.mxu0 %v3233
        %5667 = vmatpush.bf16.msra.mxu0 %v3229
        %5668 = vmatpush.bf16.msra.mxu0 %v3225
        %5669 = vmatmul.bf16.gmra.mxu0 %v1345
        %v5670 = vpop.f32.mrf.mxu0
        %v5671 = vadd.f32 %v5622, %v5670
        %v5672 = vpop.f32.mrf.mxu0
        %v5673 = vadd.f32 %v5624, %v5672
        %5674 = vmatmul.bf16.gmra.mxu0 %v1359
        %v5675 = vpop.f32.mrf.mxu0
        %v5676 = vadd.f32 %v5627, %v5675
        %v5677 = vpop.f32.mrf.mxu0
        %v5678 = vadd.f32 %v5629, %v5677
        %5679 = vmatmul.bf16.gmra.mxu0 %v1373
        %v5680 = vpop.f32.mrf.mxu0
        %v5681 = vadd.f32 %v5632, %v5680
        %v5682 = vpop.f32.mrf.mxu0
        %v5683 = vadd.f32 %v5634, %v5682
        %5684 = vmatmul.bf16.gmra.mxu0 %v1387
        %v5685 = vpop.f32.mrf.mxu0
        %v5686 = vadd.f32 %v5637, %v5685
        %v5687 = vpop.f32.mrf.mxu0
        %v5688 = vadd.f32 %v5639, %v5687
        %5689 = vmatmul.bf16.gmra.mxu0 %v1401
        %v5690 = vpop.f32.mrf.mxu0
        %v5691 = vadd.f32 %v5642, %v5690
        %v5692 = vpop.f32.mrf.mxu0
        %v5693 = vadd.f32 %v5644, %v5692
        %5694 = vmatmul.bf16.gmra.mxu0 %v1415
        %v5695 = vpop.f32.mrf.mxu0
        %v5696 = vadd.f32 %v5647, %v5695
        %v5697 = vpop.f32.mrf.mxu0
        %v5698 = vadd.f32 %v5649, %v5697
        %5699 = vmatmul.bf16.gmra.mxu0 %v1429
        %v5700 = vpop.f32.mrf.mxu0
        %v5701 = vadd.f32 %v5652, %v5700
        %v5702 = vpop.f32.mrf.mxu0
        %v5703 = vadd.f32 %v5654, %v5702
        %5704 = vmatmul.bf16.gmra.mxu0 %v1443
        %v5705 = vpop.f32.mrf.mxu0
        %v5706 = vadd.f32 %v5657, %v5705
        %v5707 = vpop.f32.mrf.mxu0
        %v5708 = vadd.f32 %v5659, %v5707
        %5709 = vdwg.mxu0
        %5710 = vmatpush.bf16.msra.mxu0 %v3285
        %5711 = vmatpush.bf16.msra.mxu0 %v3281
        %5712 = vmatpush.bf16.msra.mxu0 %v3277
        %5713 = vmatpush.bf16.msra.mxu0 %v3273
        %5714 = vmatpush.bf16.msra.mxu0 %v3269
        %5715 = vmatpush.bf16.msra.mxu0 %v3265
        %5716 = vmatpush.bf16.msra.mxu0 %v3261
        %5717 = vmatpush.bf16.msra.mxu0 %v3257
        %5718 = vmatmul.bf16.gmra.mxu0 %v1346
        %v5719 = vpop.f32.mrf.mxu0
        %v5720 = vadd.f32 %v5671, %v5719
        %v5721 = vpop.f32.mrf.mxu0
        %v5722 = vadd.f32 %v5673, %v5721
        %5723 = vmatmul.bf16.gmra.mxu0 %v1360
        %v5724 = vpop.f32.mrf.mxu0
        %v5725 = vadd.f32 %v5676, %v5724
        %v5726 = vpop.f32.mrf.mxu0
        %v5727 = vadd.f32 %v5678, %v5726
        %5728 = vmatmul.bf16.gmra.mxu0 %v1374
        %v5729 = vpop.f32.mrf.mxu0
        %v5730 = vadd.f32 %v5681, %v5729
        %v5731 = vpop.f32.mrf.mxu0
        %v5732 = vadd.f32 %v5683, %v5731
        %5733 = vmatmul.bf16.gmra.mxu0 %v1388
        %v5734 = vpop.f32.mrf.mxu0
        %v5735 = vadd.f32 %v5686, %v5734
        %v5736 = vpop.f32.mrf.mxu0
        %v5737 = vadd.f32 %v5688, %v5736
        %5738 = vmatmul.bf16.gmra.mxu0 %v1402
        %v5739 = vpop.f32.mrf.mxu0
        %v5740 = vadd.f32 %v5691, %v5739
        %v5741 = vpop.f32.mrf.mxu0
        %v5742 = vadd.f32 %v5693, %v5741
        %5743 = vmatmul.bf16.gmra.mxu0 %v1416
        %v5744 = vpop.f32.mrf.mxu0
        %v5745 = vadd.f32 %v5696, %v5744
        %v5746 = vpop.f32.mrf.mxu0
        %v5747 = vadd.f32 %v5698, %v5746
        %5748 = vmatmul.bf16.gmra.mxu0 %v1430
        %v5749 = vpop.f32.mrf.mxu0
        %v5750 = vadd.f32 %v5701, %v5749
        %v5751 = vpop.f32.mrf.mxu0
        %v5752 = vadd.f32 %v5703, %v5751
        %5753 = vmatmul.bf16.gmra.mxu0 %v1444
        %v5754 = vpop.f32.mrf.mxu0
        %v5755 = vadd.f32 %v5706, %v5754
        %v5756 = vpop.f32.mrf.mxu0
        %v5757 = vadd.f32 %v5708, %v5756
        %5758 = vdwg.mxu0
        %5759 = vmatpush.bf16.msra.mxu0 %v3317
        %5760 = vmatpush.bf16.msra.mxu0 %v3313
        %5761 = vmatpush.bf16.msra.mxu0 %v3309
        %5762 = vmatpush.bf16.msra.mxu0 %v3305
        %5763 = vmatpush.bf16.msra.mxu0 %v3301
        %5764 = vmatpush.bf16.msra.mxu0 %v3297
        %5765 = vmatpush.bf16.msra.mxu0 %v3293
        %5766 = vmatpush.bf16.msra.mxu0 %v3289
        %5767 = vmatmul.bf16.gmra.mxu0 %v1347
        %v5768 = vpop.f32.mrf.mxu0
        %v5769 = vadd.f32 %v5720, %v5768
        %v5770 = vpop.f32.mrf.mxu0
        %v5771 = vadd.f32 %v5722, %v5770
        %5772 = vmatmul.bf16.gmra.mxu0 %v1361
        %v5773 = vpop.f32.mrf.mxu0
        %v5774 = vadd.f32 %v5725, %v5773
        %v5775 = vpop.f32.mrf.mxu0
        %v5776 = vadd.f32 %v5727, %v5775
        %5777 = vmatmul.bf16.gmra.mxu0 %v1375
        %v5778 = vpop.f32.mrf.mxu0
        %v5779 = vadd.f32 %v5730, %v5778
        %v5780 = vpop.f32.mrf.mxu0
        %v5781 = vadd.f32 %v5732, %v5780
        %5782 = vmatmul.bf16.gmra.mxu0 %v1389
        %v5783 = vpop.f32.mrf.mxu0
        %v5784 = vadd.f32 %v5735, %v5783
        %v5785 = vpop.f32.mrf.mxu0
        %v5786 = vadd.f32 %v5737, %v5785
        %5787 = vmatmul.bf16.gmra.mxu0 %v1403
        %v5788 = vpop.f32.mrf.mxu0
        %v5789 = vadd.f32 %v5740, %v5788
        %v5790 = vpop.f32.mrf.mxu0
        %v5791 = vadd.f32 %v5742, %v5790
        %5792 = vmatmul.bf16.gmra.mxu0 %v1417
        %v5793 = vpop.f32.mrf.mxu0
        %v5794 = vadd.f32 %v5745, %v5793
        %v5795 = vpop.f32.mrf.mxu0
        %v5796 = vadd.f32 %v5747, %v5795
        %5797 = vmatmul.bf16.gmra.mxu0 %v1431
        %v5798 = vpop.f32.mrf.mxu0
        %v5799 = vadd.f32 %v5750, %v5798
        %v5800 = vpop.f32.mrf.mxu0
        %v5801 = vadd.f32 %v5752, %v5800
        %5802 = vmatmul.bf16.gmra.mxu0 %v1445
        %v5803 = vpop.f32.mrf.mxu0
        %v5804 = vadd.f32 %v5755, %v5803
        %v5805 = vpop.f32.mrf.mxu0
        %v5806 = vadd.f32 %v5757, %v5805
        %5807 = vdwg.mxu0
        %5808 = vmatpush.bf16.msra.mxu0 %v3349
        %5809 = vmatpush.bf16.msra.mxu0 %v3345
        %5810 = vmatpush.bf16.msra.mxu0 %v3341
        %5811 = vmatpush.bf16.msra.mxu0 %v3337
        %5812 = vmatpush.bf16.msra.mxu0 %v3333
        %5813 = vmatpush.bf16.msra.mxu0 %v3329
        %5814 = vmatpush.bf16.msra.mxu0 %v3325
        %5815 = vmatpush.bf16.msra.mxu0 %v3321
        %5816 = vmatmul.bf16.gmra.mxu0 %v1348
        %v5817 = vpop.f32.mrf.mxu0
        %v5818 = vadd.f32 %v5769, %v5817
        %v5819 = vpop.f32.mrf.mxu0
        %v5820 = vadd.f32 %v5771, %v5819
        %5821 = vmatmul.bf16.gmra.mxu0 %v1362
        %v5822 = vpop.f32.mrf.mxu0
        %v5823 = vadd.f32 %v5774, %v5822
        %v5824 = vpop.f32.mrf.mxu0
        %v5825 = vadd.f32 %v5776, %v5824
        %5826 = vmatmul.bf16.gmra.mxu0 %v1376
        %v5827 = vpop.f32.mrf.mxu0
        %v5828 = vadd.f32 %v5779, %v5827
        %v5829 = vpop.f32.mrf.mxu0
        %v5830 = vadd.f32 %v5781, %v5829
        %5831 = vmatmul.bf16.gmra.mxu0 %v1390
        %v5832 = vpop.f32.mrf.mxu0
        %v5833 = vadd.f32 %v5784, %v5832
        %v5834 = vpop.f32.mrf.mxu0
        %v5835 = vadd.f32 %v5786, %v5834
        %5836 = vmatmul.bf16.gmra.mxu0 %v1404
        %v5837 = vpop.f32.mrf.mxu0
        %v5838 = vadd.f32 %v5789, %v5837
        %v5839 = vpop.f32.mrf.mxu0
        %v5840 = vadd.f32 %v5791, %v5839
        %5841 = vmatmul.bf16.gmra.mxu0 %v1418
        %v5842 = vpop.f32.mrf.mxu0
        %v5843 = vadd.f32 %v5794, %v5842
        %v5844 = vpop.f32.mrf.mxu0
        %v5845 = vadd.f32 %v5796, %v5844
        %5846 = vmatmul.bf16.gmra.mxu0 %v1432
        %v5847 = vpop.f32.mrf.mxu0
        %v5848 = vadd.f32 %v5799, %v5847
        %v5849 = vpop.f32.mrf.mxu0
        %v5850 = vadd.f32 %v5801, %v5849
        %5851 = vmatmul.bf16.gmra.mxu0 %v1446
        %v5852 = vpop.f32.mrf.mxu0
        %v5853 = vadd.f32 %v5804, %v5852
        %v5854 = vpop.f32.mrf.mxu0
        %v5855 = vadd.f32 %v5806, %v5854
        %5856 = vdwg.mxu0
        %5857 = vmatpush.bf16.msra.mxu0 %v2934
        %5858 = vmatpush.bf16.msra.mxu0 %v2930
        %5859 = vmatpush.bf16.msra.mxu0 %v2926
        %5860 = vmatpush.bf16.msra.mxu0 %v2922
        %5861 = vmatpush.bf16.msra.mxu0 %v2918
        %5862 = vmatpush.bf16.msra.mxu0 %v2914
        %5863 = vmatpush.bf16.msra.mxu0 %v2910
        %5864 = vmatpush.bf16.msra.mxu0 %v2906
        %5865 = vmatmul.bf16.gmra.mxu0 %v1335
        %v5866 = vpop.f32.mrf.mxu0
        %v5867 = vadd.f32 0.0, %v5866
        %v5868 = vpop.f32.mrf.mxu0
        %v5869 = vadd.f32 0.0, %v5868
        %5870 = vmatmul.bf16.gmra.mxu0 %v1349
        %v5871 = vpop.f32.mrf.mxu0
        %v5872 = vadd.f32 0.0, %v5871
        %v5873 = vpop.f32.mrf.mxu0
        %v5874 = vadd.f32 0.0, %v5873
        %5875 = vmatmul.bf16.gmra.mxu0 %v1363
        %v5876 = vpop.f32.mrf.mxu0
        %v5877 = vadd.f32 0.0, %v5876
        %v5878 = vpop.f32.mrf.mxu0
        %v5879 = vadd.f32 0.0, %v5878
        %5880 = vmatmul.bf16.gmra.mxu0 %v1377
        %v5881 = vpop.f32.mrf.mxu0
        %v5882 = vadd.f32 0.0, %v5881
        %v5883 = vpop.f32.mrf.mxu0
        %v5884 = vadd.f32 0.0, %v5883
        %5885 = vmatmul.bf16.gmra.mxu0 %v1391
        %v5886 = vpop.f32.mrf.mxu0
        %v5887 = vadd.f32 0.0, %v5886
        %v5888 = vpop.f32.mrf.mxu0
        %v5889 = vadd.f32 0.0, %v5888
        %5890 = vmatmul.bf16.gmra.mxu0 %v1405
        %v5891 = vpop.f32.mrf.mxu0
        %v5892 = vadd.f32 0.0, %v5891
        %v5893 = vpop.f32.mrf.mxu0
        %v5894 = vadd.f32 0.0, %v5893
        %5895 = vmatmul.bf16.gmra.mxu0 %v1419
        %v5896 = vpop.f32.mrf.mxu0
        %v5897 = vadd.f32 0.0, %v5896
        %v5898 = vpop.f32.mrf.mxu0
        %v5899 = vadd.f32 0.0, %v5898
        %5900 = vmatmul.bf16.gmra.mxu0 %v1433
        %v5901 = vpop.f32.mrf.mxu0
        %v5902 = vadd.f32 0.0, %v5901
        %v5903 = vpop.f32.mrf.mxu0
        %v5904 = vadd.f32 0.0, %v5903
        %5905 = vdwg.mxu0
        %5906 = vmatpush.bf16.msra.mxu0 %v2966
        %5907 = vmatpush.bf16.msra.mxu0 %v2962
        %5908 = vmatpush.bf16.msra.mxu0 %v2958
        %5909 = vmatpush.bf16.msra.mxu0 %v2954
        %5910 = vmatpush.bf16.msra.mxu0 %v2950
        %5911 = vmatpush.bf16.msra.mxu0 %v2946
        %5912 = vmatpush.bf16.msra.mxu0 %v2942
        %5913 = vmatpush.bf16.msra.mxu0 %v2938
        %5914 = vmatmul.bf16.gmra.mxu0 %v1336
        %v5915 = vpop.f32.mrf.mxu0
        %v5916 = vadd.f32 %v5867, %v5915
        %v5917 = vpop.f32.mrf.mxu0
        %v5918 = vadd.f32 %v5869, %v5917
        %5919 = vmatmul.bf16.gmra.mxu0 %v1350
        %v5920 = vpop.f32.mrf.mxu0
        %v5921 = vadd.f32 %v5872, %v5920
        %v5922 = vpop.f32.mrf.mxu0
        %v5923 = vadd.f32 %v5874, %v5922
        %5924 = vmatmul.bf16.gmra.mxu0 %v1364
        %v5925 = vpop.f32.mrf.mxu0
        %v5926 = vadd.f32 %v5877, %v5925
        %v5927 = vpop.f32.mrf.mxu0
        %v5928 = vadd.f32 %v5879, %v5927
        %5929 = vmatmul.bf16.gmra.mxu0 %v1378
        %v5930 = vpop.f32.mrf.mxu0
        %v5931 = vadd.f32 %v5882, %v5930
        %v5932 = vpop.f32.mrf.mxu0
        %v5933 = vadd.f32 %v5884, %v5932
        %5934 = vmatmul.bf16.gmra.mxu0 %v1392
        %v5935 = vpop.f32.mrf.mxu0
        %v5936 = vadd.f32 %v5887, %v5935
        %v5937 = vpop.f32.mrf.mxu0
        %v5938 = vadd.f32 %v5889, %v5937
        %5939 = vmatmul.bf16.gmra.mxu0 %v1406
        %v5940 = vpop.f32.mrf.mxu0
        %v5941 = vadd.f32 %v5892, %v5940
        %v5942 = vpop.f32.mrf.mxu0
        %v5943 = vadd.f32 %v5894, %v5942
        %5944 = vmatmul.bf16.gmra.mxu0 %v1420
        %v5945 = vpop.f32.mrf.mxu0
        %v5946 = vadd.f32 %v5897, %v5945
        %v5947 = vpop.f32.mrf.mxu0
        %v5948 = vadd.f32 %v5899, %v5947
        %5949 = vmatmul.bf16.gmra.mxu0 %v1434
        %v5950 = vpop.f32.mrf.mxu0
        %v5951 = vadd.f32 %v5902, %v5950
        %v5952 = vpop.f32.mrf.mxu0
        %v5953 = vadd.f32 %v5904, %v5952
        %5954 = vdwg.mxu0
        %5955 = vmatpush.bf16.msra.mxu0 %v2998
        %5956 = vmatpush.bf16.msra.mxu0 %v2994
        %5957 = vmatpush.bf16.msra.mxu0 %v2990
        %5958 = vmatpush.bf16.msra.mxu0 %v2986
        %5959 = vmatpush.bf16.msra.mxu0 %v2982
        %5960 = vmatpush.bf16.msra.mxu0 %v2978
        %5961 = vmatpush.bf16.msra.mxu0 %v2974
        %5962 = vmatpush.bf16.msra.mxu0 %v2970
        %5963 = vmatmul.bf16.gmra.mxu0 %v1337
        %v5964 = vpop.f32.mrf.mxu0
        %v5965 = vadd.f32 %v5916, %v5964
        %v5966 = vpop.f32.mrf.mxu0
        %v5967 = vadd.f32 %v5918, %v5966
        %5968 = vmatmul.bf16.gmra.mxu0 %v1351
        %v5969 = vpop.f32.mrf.mxu0
        %v5970 = vadd.f32 %v5921, %v5969
        %v5971 = vpop.f32.mrf.mxu0
        %v5972 = vadd.f32 %v5923, %v5971
        %5973 = vmatmul.bf16.gmra.mxu0 %v1365
        %v5974 = vpop.f32.mrf.mxu0
        %v5975 = vadd.f32 %v5926, %v5974
        %v5976 = vpop.f32.mrf.mxu0
        %v5977 = vadd.f32 %v5928, %v5976
        %5978 = vmatmul.bf16.gmra.mxu0 %v1379
        %v5979 = vpop.f32.mrf.mxu0
        %v5980 = vadd.f32 %v5931, %v5979
        %v5981 = vpop.f32.mrf.mxu0
        %v5982 = vadd.f32 %v5933, %v5981
        %5983 = vmatmul.bf16.gmra.mxu0 %v1393
        %v5984 = vpop.f32.mrf.mxu0
        %v5985 = vadd.f32 %v5936, %v5984
        %v5986 = vpop.f32.mrf.mxu0
        %v5987 = vadd.f32 %v5938, %v5986
        %5988 = vmatmul.bf16.gmra.mxu0 %v1407
        %v5989 = vpop.f32.mrf.mxu0
        %v5990 = vadd.f32 %v5941, %v5989
        %v5991 = vpop.f32.mrf.mxu0
        %v5992 = vadd.f32 %v5943, %v5991
        %5993 = vmatmul.bf16.gmra.mxu0 %v1421
        %v5994 = vpop.f32.mrf.mxu0
        %v5995 = vadd.f32 %v5946, %v5994
        %v5996 = vpop.f32.mrf.mxu0
        %v5997 = vadd.f32 %v5948, %v5996
        %5998 = vmatmul.bf16.gmra.mxu0 %v1435
        %v5999 = vpop.f32.mrf.mxu0
        %v6000 = vadd.f32 %v5951, %v5999
        %v6001 = vpop.f32.mrf.mxu0
        %v6002 = vadd.f32 %v5953, %v6001
        %6003 = vdwg.mxu0
        %6004 = vmatpush.bf16.msra.mxu0 %v3030
        %6005 = vmatpush.bf16.msra.mxu0 %v3026
        %6006 = vmatpush.bf16.msra.mxu0 %v3022
        %6007 = vmatpush.bf16.msra.mxu0 %v3018
        %6008 = vmatpush.bf16.msra.mxu0 %v3014
        %6009 = vmatpush.bf16.msra.mxu0 %v3010
        %6010 = vmatpush.bf16.msra.mxu0 %v3006
        %6011 = vmatpush.bf16.msra.mxu0 %v3002
        %6012 = vmatmul.bf16.gmra.mxu0 %v1338
        %v6013 = vpop.f32.mrf.mxu0
        %v6014 = vadd.f32 %v5965, %v6013
        %v6015 = vpop.f32.mrf.mxu0
        %v6016 = vadd.f32 %v5967, %v6015
        %6017 = vmatmul.bf16.gmra.mxu0 %v1352
        %v6018 = vpop.f32.mrf.mxu0
        %v6019 = vadd.f32 %v5970, %v6018
        %v6020 = vpop.f32.mrf.mxu0
        %v6021 = vadd.f32 %v5972, %v6020
        %6022 = vmatmul.bf16.gmra.mxu0 %v1366
        %v6023 = vpop.f32.mrf.mxu0
        %v6024 = vadd.f32 %v5975, %v6023
        %v6025 = vpop.f32.mrf.mxu0
        %v6026 = vadd.f32 %v5977, %v6025
        %6027 = vmatmul.bf16.gmra.mxu0 %v1380
        %v6028 = vpop.f32.mrf.mxu0
        %v6029 = vadd.f32 %v5980, %v6028
        %v6030 = vpop.f32.mrf.mxu0
        %v6031 = vadd.f32 %v5982, %v6030
        %6032 = vmatmul.bf16.gmra.mxu0 %v1394
        %v6033 = vpop.f32.mrf.mxu0
        %v6034 = vadd.f32 %v5985, %v6033
        %v6035 = vpop.f32.mrf.mxu0
        %v6036 = vadd.f32 %v5987, %v6035
        %6037 = vmatmul.bf16.gmra.mxu0 %v1408
        %v6038 = vpop.f32.mrf.mxu0
        %v6039 = vadd.f32 %v5990, %v6038
        %v6040 = vpop.f32.mrf.mxu0
        %v6041 = vadd.f32 %v5992, %v6040
        %6042 = vmatmul.bf16.gmra.mxu0 %v1422
        %v6043 = vpop.f32.mrf.mxu0
        %v6044 = vadd.f32 %v5995, %v6043
        %v6045 = vpop.f32.mrf.mxu0
        %v6046 = vadd.f32 %v5997, %v6045
        %6047 = vmatmul.bf16.gmra.mxu0 %v1436
        %v6048 = vpop.f32.mrf.mxu0
        %v6049 = vadd.f32 %v6000, %v6048
        %v6050 = vpop.f32.mrf.mxu0
        %v6051 = vadd.f32 %v6002, %v6050
        %6052 = vdwg.mxu0
        %6053 = vmatpush.bf16.msra.mxu0 %v3062
        %6054 = vmatpush.bf16.msra.mxu0 %v3058
        %6055 = vmatpush.bf16.msra.mxu0 %v3054
        %6056 = vmatpush.bf16.msra.mxu0 %v3050
        %6057 = vmatpush.bf16.msra.mxu0 %v3046
        %6058 = vmatpush.bf16.msra.mxu0 %v3042
        %6059 = vmatpush.bf16.msra.mxu0 %v3038
        %6060 = vmatpush.bf16.msra.mxu0 %v3034
        %6061 = vmatmul.bf16.gmra.mxu0 %v1339
        %v6062 = vpop.f32.mrf.mxu0
        %v6063 = vadd.f32 %v6014, %v6062
        %v6064 = vpop.f32.mrf.mxu0
        %v6065 = vadd.f32 %v6016, %v6064
        %6066 = vmatmul.bf16.gmra.mxu0 %v1353
        %v6067 = vpop.f32.mrf.mxu0
        %v6068 = vadd.f32 %v6019, %v6067
        %v6069 = vpop.f32.mrf.mxu0
        %v6070 = vadd.f32 %v6021, %v6069
        %6071 = vmatmul.bf16.gmra.mxu0 %v1367
        %v6072 = vpop.f32.mrf.mxu0
        %v6073 = vadd.f32 %v6024, %v6072
        %v6074 = vpop.f32.mrf.mxu0
        %v6075 = vadd.f32 %v6026, %v6074
        %6076 = vmatmul.bf16.gmra.mxu0 %v1381
        %v6077 = vpop.f32.mrf.mxu0
        %v6078 = vadd.f32 %v6029, %v6077
        %v6079 = vpop.f32.mrf.mxu0
        %v6080 = vadd.f32 %v6031, %v6079
        %6081 = vmatmul.bf16.gmra.mxu0 %v1395
        %v6082 = vpop.f32.mrf.mxu0
        %v6083 = vadd.f32 %v6034, %v6082
        %v6084 = vpop.f32.mrf.mxu0
        %v6085 = vadd.f32 %v6036, %v6084
        %6086 = vmatmul.bf16.gmra.mxu0 %v1409
        %v6087 = vpop.f32.mrf.mxu0
        %v6088 = vadd.f32 %v6039, %v6087
        %v6089 = vpop.f32.mrf.mxu0
        %v6090 = vadd.f32 %v6041, %v6089
        %6091 = vmatmul.bf16.gmra.mxu0 %v1423
        %v6092 = vpop.f32.mrf.mxu0
        %v6093 = vadd.f32 %v6044, %v6092
        %v6094 = vpop.f32.mrf.mxu0
        %v6095 = vadd.f32 %v6046, %v6094
        %6096 = vmatmul.bf16.gmra.mxu0 %v1437
        %v6097 = vpop.f32.mrf.mxu0
        %v6098 = vadd.f32 %v6049, %v6097
        %v6099 = vpop.f32.mrf.mxu0
        %v6100 = vadd.f32 %v6051, %v6099
        %6101 = vdwg.mxu0
        %6102 = vmatpush.bf16.msra.mxu0 %v3094
        %6103 = vmatpush.bf16.msra.mxu0 %v3090
        %6104 = vmatpush.bf16.msra.mxu0 %v3086
        %6105 = vmatpush.bf16.msra.mxu0 %v3082
        %6106 = vmatpush.bf16.msra.mxu0 %v3078
        %6107 = vmatpush.bf16.msra.mxu0 %v3074
        %6108 = vmatpush.bf16.msra.mxu0 %v3070
        %6109 = vmatpush.bf16.msra.mxu0 %v3066
        %6110 = vmatmul.bf16.gmra.mxu0 %v1340
        %v6111 = vpop.f32.mrf.mxu0
        %v6112 = vadd.f32 %v6063, %v6111
        %v6113 = vpop.f32.mrf.mxu0
        %v6114 = vadd.f32 %v6065, %v6113
        %6115 = vmatmul.bf16.gmra.mxu0 %v1354
        %v6116 = vpop.f32.mrf.mxu0
        %v6117 = vadd.f32 %v6068, %v6116
        %v6118 = vpop.f32.mrf.mxu0
        %v6119 = vadd.f32 %v6070, %v6118
        %6120 = vmatmul.bf16.gmra.mxu0 %v1368
        %v6121 = vpop.f32.mrf.mxu0
        %v6122 = vadd.f32 %v6073, %v6121
        %v6123 = vpop.f32.mrf.mxu0
        %v6124 = vadd.f32 %v6075, %v6123
        %6125 = vmatmul.bf16.gmra.mxu0 %v1382
        %v6126 = vpop.f32.mrf.mxu0
        %v6127 = vadd.f32 %v6078, %v6126
        %v6128 = vpop.f32.mrf.mxu0
        %v6129 = vadd.f32 %v6080, %v6128
        %6130 = vmatmul.bf16.gmra.mxu0 %v1396
        %v6131 = vpop.f32.mrf.mxu0
        %v6132 = vadd.f32 %v6083, %v6131
        %v6133 = vpop.f32.mrf.mxu0
        %v6134 = vadd.f32 %v6085, %v6133
        %6135 = vmatmul.bf16.gmra.mxu0 %v1410
        %v6136 = vpop.f32.mrf.mxu0
        %v6137 = vadd.f32 %v6088, %v6136
        %v6138 = vpop.f32.mrf.mxu0
        %v6139 = vadd.f32 %v6090, %v6138
        %6140 = vmatmul.bf16.gmra.mxu0 %v1424
        %v6141 = vpop.f32.mrf.mxu0
        %v6142 = vadd.f32 %v6093, %v6141
        %v6143 = vpop.f32.mrf.mxu0
        %v6144 = vadd.f32 %v6095, %v6143
        %6145 = vmatmul.bf16.gmra.mxu0 %v1438
        %v6146 = vpop.f32.mrf.mxu0
        %v6147 = vadd.f32 %v6098, %v6146
        %v6148 = vpop.f32.mrf.mxu0
        %v6149 = vadd.f32 %v6100, %v6148
        %6150 = vdwg.mxu0
        %6151 = vmatpush.bf16.msra.mxu0 %v3126
        %6152 = vmatpush.bf16.msra.mxu0 %v3122
        %6153 = vmatpush.bf16.msra.mxu0 %v3118
        %6154 = vmatpush.bf16.msra.mxu0 %v3114
        %6155 = vmatpush.bf16.msra.mxu0 %v3110
        %6156 = vmatpush.bf16.msra.mxu0 %v3106
        %6157 = vmatpush.bf16.msra.mxu0 %v3102
        %6158 = vmatpush.bf16.msra.mxu0 %v3098
        %6159 = vmatmul.bf16.gmra.mxu0 %v1341
        %v6160 = vpop.f32.mrf.mxu0
        %v6161 = vadd.f32 %v6112, %v6160
        %v6162 = vpop.f32.mrf.mxu0
        %v6163 = vadd.f32 %v6114, %v6162
        %6164 = vmatmul.bf16.gmra.mxu0 %v1355
        %v6165 = vpop.f32.mrf.mxu0
        %v6166 = vadd.f32 %v6117, %v6165
        %v6167 = vpop.f32.mrf.mxu0
        %v6168 = vadd.f32 %v6119, %v6167
        %6169 = vmatmul.bf16.gmra.mxu0 %v1369
        %v6170 = vpop.f32.mrf.mxu0
        %v6171 = vadd.f32 %v6122, %v6170
        %v6172 = vpop.f32.mrf.mxu0
        %v6173 = vadd.f32 %v6124, %v6172
        %6174 = vmatmul.bf16.gmra.mxu0 %v1383
        %v6175 = vpop.f32.mrf.mxu0
        %v6176 = vadd.f32 %v6127, %v6175
        %v6177 = vpop.f32.mrf.mxu0
        %v6178 = vadd.f32 %v6129, %v6177
        %6179 = vmatmul.bf16.gmra.mxu0 %v1397
        %v6180 = vpop.f32.mrf.mxu0
        %v6181 = vadd.f32 %v6132, %v6180
        %v6182 = vpop.f32.mrf.mxu0
        %v6183 = vadd.f32 %v6134, %v6182
        %6184 = vmatmul.bf16.gmra.mxu0 %v1411
        %v6185 = vpop.f32.mrf.mxu0
        %v6186 = vadd.f32 %v6137, %v6185
        %v6187 = vpop.f32.mrf.mxu0
        %v6188 = vadd.f32 %v6139, %v6187
        %6189 = vmatmul.bf16.gmra.mxu0 %v1425
        %v6190 = vpop.f32.mrf.mxu0
        %v6191 = vadd.f32 %v6142, %v6190
        %v6192 = vpop.f32.mrf.mxu0
        %v6193 = vadd.f32 %v6144, %v6192
        %6194 = vmatmul.bf16.gmra.mxu0 %v1439
        %v6195 = vpop.f32.mrf.mxu0
        %v6196 = vadd.f32 %v6147, %v6195
        %v6197 = vpop.f32.mrf.mxu0
        %v6198 = vadd.f32 %v6149, %v6197
        %6199 = vdwg.mxu0
        %6200 = vmatpush.bf16.msra.mxu0 %v3158
        %6201 = vmatpush.bf16.msra.mxu0 %v3154
        %6202 = vmatpush.bf16.msra.mxu0 %v3150
        %6203 = vmatpush.bf16.msra.mxu0 %v3146
        %6204 = vmatpush.bf16.msra.mxu0 %v3142
        %6205 = vmatpush.bf16.msra.mxu0 %v3138
        %6206 = vmatpush.bf16.msra.mxu0 %v3134
        %6207 = vmatpush.bf16.msra.mxu0 %v3130
        %6208 = vmatmul.bf16.gmra.mxu0 %v1342
        %v6209 = vpop.f32.mrf.mxu0
        %v6210 = vadd.f32 %v6161, %v6209
        %v6211 = vpop.f32.mrf.mxu0
        %v6212 = vadd.f32 %v6163, %v6211
        %6213 = vmatmul.bf16.gmra.mxu0 %v1356
        %v6214 = vpop.f32.mrf.mxu0
        %v6215 = vadd.f32 %v6166, %v6214
        %v6216 = vpop.f32.mrf.mxu0
        %v6217 = vadd.f32 %v6168, %v6216
        %6218 = vmatmul.bf16.gmra.mxu0 %v1370
        %v6219 = vpop.f32.mrf.mxu0
        %v6220 = vadd.f32 %v6171, %v6219
        %v6221 = vpop.f32.mrf.mxu0
        %v6222 = vadd.f32 %v6173, %v6221
        %6223 = vmatmul.bf16.gmra.mxu0 %v1384
        %v6224 = vpop.f32.mrf.mxu0
        %v6225 = vadd.f32 %v6176, %v6224
        %v6226 = vpop.f32.mrf.mxu0
        %v6227 = vadd.f32 %v6178, %v6226
        %6228 = vmatmul.bf16.gmra.mxu0 %v1398
        %v6229 = vpop.f32.mrf.mxu0
        %v6230 = vadd.f32 %v6181, %v6229
        %v6231 = vpop.f32.mrf.mxu0
        %v6232 = vadd.f32 %v6183, %v6231
        %6233 = vmatmul.bf16.gmra.mxu0 %v1412
        %v6234 = vpop.f32.mrf.mxu0
        %v6235 = vadd.f32 %v6186, %v6234
        %v6236 = vpop.f32.mrf.mxu0
        %v6237 = vadd.f32 %v6188, %v6236
        %6238 = vmatmul.bf16.gmra.mxu0 %v1426
        %v6239 = vpop.f32.mrf.mxu0
        %v6240 = vadd.f32 %v6191, %v6239
        %v6241 = vpop.f32.mrf.mxu0
        %v6242 = vadd.f32 %v6193, %v6241
        %6243 = vmatmul.bf16.gmra.mxu0 %v1440
        %v6244 = vpop.f32.mrf.mxu0
        %v6245 = vadd.f32 %v6196, %v6244
        %v6246 = vpop.f32.mrf.mxu0
        %v6247 = vadd.f32 %v6198, %v6246
        %6248 = vdwg.mxu0
        %6249 = vmatpush.bf16.msra.mxu0 %v3190
        %6250 = vmatpush.bf16.msra.mxu0 %v3186
        %6251 = vmatpush.bf16.msra.mxu0 %v3182
        %6252 = vmatpush.bf16.msra.mxu0 %v3178
        %6253 = vmatpush.bf16.msra.mxu0 %v3174
        %6254 = vmatpush.bf16.msra.mxu0 %v3170
        %6255 = vmatpush.bf16.msra.mxu0 %v3166
        %6256 = vmatpush.bf16.msra.mxu0 %v3162
        %6257 = vmatmul.bf16.gmra.mxu0 %v1343
        %v6258 = vpop.f32.mrf.mxu0
        %v6259 = vadd.f32 %v6210, %v6258
        %v6260 = vpop.f32.mrf.mxu0
        %v6261 = vadd.f32 %v6212, %v6260
        %6262 = vmatmul.bf16.gmra.mxu0 %v1357
        %v6263 = vpop.f32.mrf.mxu0
        %v6264 = vadd.f32 %v6215, %v6263
        %v6265 = vpop.f32.mrf.mxu0
        %v6266 = vadd.f32 %v6217, %v6265
        %6267 = vmatmul.bf16.gmra.mxu0 %v1371
        %v6268 = vpop.f32.mrf.mxu0
        %v6269 = vadd.f32 %v6220, %v6268
        %v6270 = vpop.f32.mrf.mxu0
        %v6271 = vadd.f32 %v6222, %v6270
        %6272 = vmatmul.bf16.gmra.mxu0 %v1385
        %v6273 = vpop.f32.mrf.mxu0
        %v6274 = vadd.f32 %v6225, %v6273
        %v6275 = vpop.f32.mrf.mxu0
        %v6276 = vadd.f32 %v6227, %v6275
        %6277 = vmatmul.bf16.gmra.mxu0 %v1399
        %v6278 = vpop.f32.mrf.mxu0
        %v6279 = vadd.f32 %v6230, %v6278
        %v6280 = vpop.f32.mrf.mxu0
        %v6281 = vadd.f32 %v6232, %v6280
        %6282 = vmatmul.bf16.gmra.mxu0 %v1413
        %v6283 = vpop.f32.mrf.mxu0
        %v6284 = vadd.f32 %v6235, %v6283
        %v6285 = vpop.f32.mrf.mxu0
        %v6286 = vadd.f32 %v6237, %v6285
        %6287 = vmatmul.bf16.gmra.mxu0 %v1427
        %v6288 = vpop.f32.mrf.mxu0
        %v6289 = vadd.f32 %v6240, %v6288
        %v6290 = vpop.f32.mrf.mxu0
        %v6291 = vadd.f32 %v6242, %v6290
        %6292 = vmatmul.bf16.gmra.mxu0 %v1441
        %v6293 = vpop.f32.mrf.mxu0
        %v6294 = vadd.f32 %v6245, %v6293
        %v6295 = vpop.f32.mrf.mxu0
        %v6296 = vadd.f32 %v6247, %v6295
        %6297 = vdwg.mxu0
        %6298 = vmatpush.bf16.msra.mxu0 %v3222
        %6299 = vmatpush.bf16.msra.mxu0 %v3218
        %6300 = vmatpush.bf16.msra.mxu0 %v3214
        %6301 = vmatpush.bf16.msra.mxu0 %v3210
        %6302 = vmatpush.bf16.msra.mxu0 %v3206
        %6303 = vmatpush.bf16.msra.mxu0 %v3202
        %6304 = vmatpush.bf16.msra.mxu0 %v3198
        %6305 = vmatpush.bf16.msra.mxu0 %v3194
        %6306 = vmatmul.bf16.gmra.mxu0 %v1344
        %v6307 = vpop.f32.mrf.mxu0
        %v6308 = vadd.f32 %v6259, %v6307
        %v6309 = vpop.f32.mrf.mxu0
        %v6310 = vadd.f32 %v6261, %v6309
        %6311 = vmatmul.bf16.gmra.mxu0 %v1358
        %v6312 = vpop.f32.mrf.mxu0
        %v6313 = vadd.f32 %v6264, %v6312
        %v6314 = vpop.f32.mrf.mxu0
        %v6315 = vadd.f32 %v6266, %v6314
        %6316 = vmatmul.bf16.gmra.mxu0 %v1372
        %v6317 = vpop.f32.mrf.mxu0
        %v6318 = vadd.f32 %v6269, %v6317
        %v6319 = vpop.f32.mrf.mxu0
        %v6320 = vadd.f32 %v6271, %v6319
        %6321 = vmatmul.bf16.gmra.mxu0 %v1386
        %v6322 = vpop.f32.mrf.mxu0
        %v6323 = vadd.f32 %v6274, %v6322
        %v6324 = vpop.f32.mrf.mxu0
        %v6325 = vadd.f32 %v6276, %v6324
        %6326 = vmatmul.bf16.gmra.mxu0 %v1400
        %v6327 = vpop.f32.mrf.mxu0
        %v6328 = vadd.f32 %v6279, %v6327
        %v6329 = vpop.f32.mrf.mxu0
        %v6330 = vadd.f32 %v6281, %v6329
        %6331 = vmatmul.bf16.gmra.mxu0 %v1414
        %v6332 = vpop.f32.mrf.mxu0
        %v6333 = vadd.f32 %v6284, %v6332
        %v6334 = vpop.f32.mrf.mxu0
        %v6335 = vadd.f32 %v6286, %v6334
        %6336 = vmatmul.bf16.gmra.mxu0 %v1428
        %v6337 = vpop.f32.mrf.mxu0
        %v6338 = vadd.f32 %v6289, %v6337
        %v6339 = vpop.f32.mrf.mxu0
        %v6340 = vadd.f32 %v6291, %v6339
        %6341 = vmatmul.bf16.gmra.mxu0 %v1442
        %v6342 = vpop.f32.mrf.mxu0
        %v6343 = vadd.f32 %v6294, %v6342
        %v6344 = vpop.f32.mrf.mxu0
        %v6345 = vadd.f32 %v6296, %v6344
        %6346 = vdwg.mxu0
        %6347 = vmatpush.bf16.msra.mxu0 %v3254
        %6348 = vmatpush.bf16.msra.mxu0 %v3250
        %6349 = vmatpush.bf16.msra.mxu0 %v3246
        %6350 = vmatpush.bf16.msra.mxu0 %v3242
        %6351 = vmatpush.bf16.msra.mxu0 %v3238
        %6352 = vmatpush.bf16.msra.mxu0 %v3234
        %6353 = vmatpush.bf16.msra.mxu0 %v3230
        %6354 = vmatpush.bf16.msra.mxu0 %v3226
        %6355 = vmatmul.bf16.gmra.mxu0 %v1345
        %v6356 = vpop.f32.mrf.mxu0
        %v6357 = vadd.f32 %v6308, %v6356
        %v6358 = vpop.f32.mrf.mxu0
        %v6359 = vadd.f32 %v6310, %v6358
        %6360 = vmatmul.bf16.gmra.mxu0 %v1359
        %v6361 = vpop.f32.mrf.mxu0
        %v6362 = vadd.f32 %v6313, %v6361
        %v6363 = vpop.f32.mrf.mxu0
        %v6364 = vadd.f32 %v6315, %v6363
        %6365 = vmatmul.bf16.gmra.mxu0 %v1373
        %v6366 = vpop.f32.mrf.mxu0
        %v6367 = vadd.f32 %v6318, %v6366
        %v6368 = vpop.f32.mrf.mxu0
        %v6369 = vadd.f32 %v6320, %v6368
        %6370 = vmatmul.bf16.gmra.mxu0 %v1387
        %v6371 = vpop.f32.mrf.mxu0
        %v6372 = vadd.f32 %v6323, %v6371
        %v6373 = vpop.f32.mrf.mxu0
        %v6374 = vadd.f32 %v6325, %v6373
        %6375 = vmatmul.bf16.gmra.mxu0 %v1401
        %v6376 = vpop.f32.mrf.mxu0
        %v6377 = vadd.f32 %v6328, %v6376
        %v6378 = vpop.f32.mrf.mxu0
        %v6379 = vadd.f32 %v6330, %v6378
        %6380 = vmatmul.bf16.gmra.mxu0 %v1415
        %v6381 = vpop.f32.mrf.mxu0
        %v6382 = vadd.f32 %v6333, %v6381
        %v6383 = vpop.f32.mrf.mxu0
        %v6384 = vadd.f32 %v6335, %v6383
        %6385 = vmatmul.bf16.gmra.mxu0 %v1429
        %v6386 = vpop.f32.mrf.mxu0
        %v6387 = vadd.f32 %v6338, %v6386
        %v6388 = vpop.f32.mrf.mxu0
        %v6389 = vadd.f32 %v6340, %v6388
        %6390 = vmatmul.bf16.gmra.mxu0 %v1443
        %v6391 = vpop.f32.mrf.mxu0
        %v6392 = vadd.f32 %v6343, %v6391
        %v6393 = vpop.f32.mrf.mxu0
        %v6394 = vadd.f32 %v6345, %v6393
        %6395 = vdwg.mxu0
        %6396 = vmatpush.bf16.msra.mxu0 %v3286
        %6397 = vmatpush.bf16.msra.mxu0 %v3282
        %6398 = vmatpush.bf16.msra.mxu0 %v3278
        %6399 = vmatpush.bf16.msra.mxu0 %v3274
        %6400 = vmatpush.bf16.msra.mxu0 %v3270
        %6401 = vmatpush.bf16.msra.mxu0 %v3266
        %6402 = vmatpush.bf16.msra.mxu0 %v3262
        %6403 = vmatpush.bf16.msra.mxu0 %v3258
        %6404 = vmatmul.bf16.gmra.mxu0 %v1346
        %v6405 = vpop.f32.mrf.mxu0
        %v6406 = vadd.f32 %v6357, %v6405
        %v6407 = vpop.f32.mrf.mxu0
        %v6408 = vadd.f32 %v6359, %v6407
        %6409 = vmatmul.bf16.gmra.mxu0 %v1360
        %v6410 = vpop.f32.mrf.mxu0
        %v6411 = vadd.f32 %v6362, %v6410
        %v6412 = vpop.f32.mrf.mxu0
        %v6413 = vadd.f32 %v6364, %v6412
        %6414 = vmatmul.bf16.gmra.mxu0 %v1374
        %v6415 = vpop.f32.mrf.mxu0
        %v6416 = vadd.f32 %v6367, %v6415
        %v6417 = vpop.f32.mrf.mxu0
        %v6418 = vadd.f32 %v6369, %v6417
        %6419 = vmatmul.bf16.gmra.mxu0 %v1388
        %v6420 = vpop.f32.mrf.mxu0
        %v6421 = vadd.f32 %v6372, %v6420
        %v6422 = vpop.f32.mrf.mxu0
        %v6423 = vadd.f32 %v6374, %v6422
        %6424 = vmatmul.bf16.gmra.mxu0 %v1402
        %v6425 = vpop.f32.mrf.mxu0
        %v6426 = vadd.f32 %v6377, %v6425
        %v6427 = vpop.f32.mrf.mxu0
        %v6428 = vadd.f32 %v6379, %v6427
        %6429 = vmatmul.bf16.gmra.mxu0 %v1416
        %v6430 = vpop.f32.mrf.mxu0
        %v6431 = vadd.f32 %v6382, %v6430
        %v6432 = vpop.f32.mrf.mxu0
        %v6433 = vadd.f32 %v6384, %v6432
        %6434 = vmatmul.bf16.gmra.mxu0 %v1430
        %v6435 = vpop.f32.mrf.mxu0
        %v6436 = vadd.f32 %v6387, %v6435
        %v6437 = vpop.f32.mrf.mxu0
        %v6438 = vadd.f32 %v6389, %v6437
        %6439 = vmatmul.bf16.gmra.mxu0 %v1444
        %v6440 = vpop.f32.mrf.mxu0
        %v6441 = vadd.f32 %v6392, %v6440
        %v6442 = vpop.f32.mrf.mxu0
        %v6443 = vadd.f32 %v6394, %v6442
        %6444 = vdwg.mxu0
        %6445 = vmatpush.bf16.msra.mxu0 %v3318
        %6446 = vmatpush.bf16.msra.mxu0 %v3314
        %6447 = vmatpush.bf16.msra.mxu0 %v3310
        %6448 = vmatpush.bf16.msra.mxu0 %v3306
        %6449 = vmatpush.bf16.msra.mxu0 %v3302
        %6450 = vmatpush.bf16.msra.mxu0 %v3298
        %6451 = vmatpush.bf16.msra.mxu0 %v3294
        %6452 = vmatpush.bf16.msra.mxu0 %v3290
        %6453 = vmatmul.bf16.gmra.mxu0 %v1347
        %v6454 = vpop.f32.mrf.mxu0
        %v6455 = vadd.f32 %v6406, %v6454
        %v6456 = vpop.f32.mrf.mxu0
        %v6457 = vadd.f32 %v6408, %v6456
        %6458 = vmatmul.bf16.gmra.mxu0 %v1361
        %v6459 = vpop.f32.mrf.mxu0
        %v6460 = vadd.f32 %v6411, %v6459
        %v6461 = vpop.f32.mrf.mxu0
        %v6462 = vadd.f32 %v6413, %v6461
        %6463 = vmatmul.bf16.gmra.mxu0 %v1375
        %v6464 = vpop.f32.mrf.mxu0
        %v6465 = vadd.f32 %v6416, %v6464
        %v6466 = vpop.f32.mrf.mxu0
        %v6467 = vadd.f32 %v6418, %v6466
        %6468 = vmatmul.bf16.gmra.mxu0 %v1389
        %v6469 = vpop.f32.mrf.mxu0
        %v6470 = vadd.f32 %v6421, %v6469
        %v6471 = vpop.f32.mrf.mxu0
        %v6472 = vadd.f32 %v6423, %v6471
        %6473 = vmatmul.bf16.gmra.mxu0 %v1403
        %v6474 = vpop.f32.mrf.mxu0
        %v6475 = vadd.f32 %v6426, %v6474
        %v6476 = vpop.f32.mrf.mxu0
        %v6477 = vadd.f32 %v6428, %v6476
        %6478 = vmatmul.bf16.gmra.mxu0 %v1417
        %v6479 = vpop.f32.mrf.mxu0
        %v6480 = vadd.f32 %v6431, %v6479
        %v6481 = vpop.f32.mrf.mxu0
        %v6482 = vadd.f32 %v6433, %v6481
        %6483 = vmatmul.bf16.gmra.mxu0 %v1431
        %v6484 = vpop.f32.mrf.mxu0
        %v6485 = vadd.f32 %v6436, %v6484
        %v6486 = vpop.f32.mrf.mxu0
        %v6487 = vadd.f32 %v6438, %v6486
        %6488 = vmatmul.bf16.gmra.mxu0 %v1445
        %v6489 = vpop.f32.mrf.mxu0
        %v6490 = vadd.f32 %v6441, %v6489
        %v6491 = vpop.f32.mrf.mxu0
        %v6492 = vadd.f32 %v6443, %v6491
        %6493 = vdwg.mxu0
        %6494 = vmatpush.bf16.msra.mxu0 %v3350
        %6495 = vmatpush.bf16.msra.mxu0 %v3346
        %6496 = vmatpush.bf16.msra.mxu0 %v3342
        %6497 = vmatpush.bf16.msra.mxu0 %v3338
        %6498 = vmatpush.bf16.msra.mxu0 %v3334
        %6499 = vmatpush.bf16.msra.mxu0 %v3330
        %6500 = vmatpush.bf16.msra.mxu0 %v3326
        %6501 = vmatpush.bf16.msra.mxu0 %v3322
        %6502 = vmatmul.bf16.gmra.mxu0 %v1348
        %v6503 = vpop.f32.mrf.mxu0
        %v6504 = vadd.f32 %v6455, %v6503
        %v6505 = vpop.f32.mrf.mxu0
        %v6506 = vadd.f32 %v6457, %v6505
        %6507 = vmatmul.bf16.gmra.mxu0 %v1362
        %v6508 = vpop.f32.mrf.mxu0
        %v6509 = vadd.f32 %v6460, %v6508
        %v6510 = vpop.f32.mrf.mxu0
        %v6511 = vadd.f32 %v6462, %v6510
        %6512 = vmatmul.bf16.gmra.mxu0 %v1376
        %v6513 = vpop.f32.mrf.mxu0
        %v6514 = vadd.f32 %v6465, %v6513
        %v6515 = vpop.f32.mrf.mxu0
        %v6516 = vadd.f32 %v6467, %v6515
        %6517 = vmatmul.bf16.gmra.mxu0 %v1390
        %v6518 = vpop.f32.mrf.mxu0
        %v6519 = vadd.f32 %v6470, %v6518
        %v6520 = vpop.f32.mrf.mxu0
        %v6521 = vadd.f32 %v6472, %v6520
        %6522 = vmatmul.bf16.gmra.mxu0 %v1404
        %v6523 = vpop.f32.mrf.mxu0
        %v6524 = vadd.f32 %v6475, %v6523
        %v6525 = vpop.f32.mrf.mxu0
        %v6526 = vadd.f32 %v6477, %v6525
        %6527 = vmatmul.bf16.gmra.mxu0 %v1418
        %v6528 = vpop.f32.mrf.mxu0
        %v6529 = vadd.f32 %v6480, %v6528
        %v6530 = vpop.f32.mrf.mxu0
        %v6531 = vadd.f32 %v6482, %v6530
        %6532 = vmatmul.bf16.gmra.mxu0 %v1432
        %v6533 = vpop.f32.mrf.mxu0
        %v6534 = vadd.f32 %v6485, %v6533
        %v6535 = vpop.f32.mrf.mxu0
        %v6536 = vadd.f32 %v6487, %v6535
        %6537 = vmatmul.bf16.gmra.mxu0 %v1446
        %v6538 = vpop.f32.mrf.mxu0
        %v6539 = vadd.f32 %v6490, %v6538
        %v6540 = vpop.f32.mrf.mxu0
        %v6541 = vadd.f32 %v6492, %v6540
        %6542 = vdwg.mxu0
        %v6543 = vadd.f32 %v375, %v4446
        %v6544 = vadd.f32 %v376, %v5132
        %v6545 = vadd.f32 %v377, %v5818
        %v6546 = vadd.f32 %v378, %v6504
        %v6547 = vadd.f32 %v379, %v4448
        %v6548 = vadd.f32 %v380, %v5134
        %v6549 = vadd.f32 %v381, %v5820
        %v6550 = vadd.f32 %v382, %v6506
        %v6551 = vadd.f32 %v383, %v4451
        %v6552 = vadd.f32 %v384, %v5137
        %v6553 = vadd.f32 %v385, %v5823
        %v6554 = vadd.f32 %v386, %v6509
        %v6555 = vadd.f32 %v387, %v4453
        %v6556 = vadd.f32 %v388, %v5139
        %v6557 = vadd.f32 %v389, %v5825
        %v6558 = vadd.f32 %v390, %v6511
        %v6559 = vadd.f32 %v391, %v4456
        %v6560 = vadd.f32 %v392, %v5142
        %v6561 = vadd.f32 %v393, %v5828
        %v6562 = vadd.f32 %v394, %v6514
        %v6563 = vadd.f32 %v395, %v4458
        %v6564 = vadd.f32 %v396, %v5144
        %v6565 = vadd.f32 %v397, %v5830
        %v6566 = vadd.f32 %v398, %v6516
        %v6567 = vadd.f32 %v399, %v4461
        %v6568 = vadd.f32 %v400, %v5147
        %v6569 = vadd.f32 %v401, %v5833
        %v6570 = vadd.f32 %v402, %v6519
        %v6571 = vadd.f32 %v403, %v4463
        %v6572 = vadd.f32 %v404, %v5149
        %v6573 = vadd.f32 %v405, %v5835
        %v6574 = vadd.f32 %v406, %v6521
        %v6575 = vadd.f32 %v407, %v4466
        %v6576 = vadd.f32 %v408, %v5152
        %v6577 = vadd.f32 %v409, %v5838
        %v6578 = vadd.f32 %v410, %v6524
        %v6579 = vadd.f32 %v411, %v4468
        %v6580 = vadd.f32 %v412, %v5154
        %v6581 = vadd.f32 %v413, %v5840
        %v6582 = vadd.f32 %v414, %v6526
        %v6583 = vadd.f32 %v415, %v4471
        %v6584 = vadd.f32 %v416, %v5157
        %v6585 = vadd.f32 %v417, %v5843
        %v6586 = vadd.f32 %v418, %v6529
        %v6587 = vadd.f32 %v419, %v4473
        %v6588 = vadd.f32 %v420, %v5159
        %v6589 = vadd.f32 %v421, %v5845
        %v6590 = vadd.f32 %v422, %v6531
        %v6591 = vadd.f32 %v423, %v4476
        %v6592 = vadd.f32 %v424, %v5162
        %v6593 = vadd.f32 %v425, %v5848
        %v6594 = vadd.f32 %v426, %v6534
        %v6595 = vadd.f32 %v427, %v4478
        %v6596 = vadd.f32 %v428, %v5164
        %v6597 = vadd.f32 %v429, %v5850
        %v6598 = vadd.f32 %v430, %v6536
        %v6599 = vadd.f32 %v431, %v4481
        %v6600 = vadd.f32 %v432, %v5167
        %v6601 = vadd.f32 %v433, %v5853
        %v6602 = vadd.f32 %v434, %v6539
        %v6603 = vadd.f32 %v435, %v4483
        %v6604 = vadd.f32 %v436, %v5169
        %v6605 = vadd.f32 %v437, %v5855
        %v6606 = vadd.f32 %v438, %v6541
        %6607 = vst [vmem:[#allocation2] sm:$0xff] %v6543
        %6608 = vst [vmem:[#allocation2 + $0x8] sm:$0xff] %v6544
        %6609 = vst [vmem:[#allocation2 + $0x10] sm:$0xff] %v6545
        %6610 = vst [vmem:[#allocation2 + $0x18] sm:$0xff] %v6546
        %6611 = vst [vmem:[#allocation2 + $0x20] sm:$0xff] %v6547
        %6612 = vst [vmem:[#allocation2 + $0x28] sm:$0xff] %v6548
        %6613 = vst [vmem:[#allocation2 + $0x30] sm:$0xff] %v6549
        %6614 = vst [vmem:[#allocation2 + $0x38] sm:$0xff] %v6550
        %6615 = vst [vmem:[#allocation2 + $0x40] sm:$0xff] %v6551
        %6616 = vst [vmem:[#allocation2 + $0x48] sm:$0xff] %v6552
        %6617 = vst [vmem:[#allocation2 + $0x50] sm:$0xff] %v6553
        %6618 = vst [vmem:[#allocation2 + $0x58] sm:$0xff] %v6554
        %6619 = vst [vmem:[#allocation2 + $0x60] sm:$0xff] %v6555
        %6620 = vst [vmem:[#allocation2 + $0x68] sm:$0xff] %v6556
        %6621 = vst [vmem:[#allocation2 + $0x70] sm:$0xff] %v6557
        %6622 = vst [vmem:[#allocation2 + $0x78] sm:$0xff] %v6558
        %6623 = vst [vmem:[#allocation2 + $0x80] sm:$0xff] %v6559
        %6624 = vst [vmem:[#allocation2 + $0x88] sm:$0xff] %v6560
        %6625 = vst [vmem:[#allocation2 + $0x90] sm:$0xff] %v6561
        %6626 = vst [vmem:[#allocation2 + $0x98] sm:$0xff] %v6562
        %6627 = vst [vmem:[#allocation2 + $0xa0] sm:$0xff] %v6563
        %6628 = vst [vmem:[#allocation2 + $0xa8] sm:$0xff] %v6564
        %6629 = vst [vmem:[#allocation2 + $0xb0] sm:$0xff] %v6565
        %6630 = vst [vmem:[#allocation2 + $0xb8] sm:$0xff] %v6566
        %6631 = vst [vmem:[#allocation2 + $0xc0] sm:$0xff] %v6567
        %6632 = vst [vmem:[#allocation2 + $0xc8] sm:$0xff] %v6568
        %6633 = vst [vmem:[#allocation2 + $0xd0] sm:$0xff] %v6569
        %6634 = vst [vmem:[#allocation2 + $0xd8] sm:$0xff] %v6570
        %6635 = vst [vmem:[#allocation2 + $0xe0] sm:$0xff] %v6571
        %6636 = vst [vmem:[#allocation2 + $0xe8] sm:$0xff] %v6572
        %6637 = vst [vmem:[#allocation2 + $0xf0] sm:$0xff] %v6573
        %6638 = vst [vmem:[#allocation2 + $0xf8] sm:$0xff] %v6574
        %6639 = vst [vmem:[#allocation2 + $0x100] sm:$0xff] %v6575
        %6640 = vst [vmem:[#allocation2 + $0x108] sm:$0xff] %v6576
        %6641 = vst [vmem:[#allocation2 + $0x110] sm:$0xff] %v6577
        %6642 = vst [vmem:[#allocation2 + $0x118] sm:$0xff] %v6578
        %6643 = vst [vmem:[#allocation2 + $0x120] sm:$0xff] %v6579
        %6644 = vst [vmem:[#allocation2 + $0x128] sm:$0xff] %v6580
        %6645 = vst [vmem:[#allocation2 + $0x130] sm:$0xff] %v6581
        %6646 = vst [vmem:[#allocation2 + $0x138] sm:$0xff] %v6582
        %6647 = vst [vmem:[#allocation2 + $0x140] sm:$0xff] %v6583
        %6648 = vst [vmem:[#allocation2 + $0x148] sm:$0xff] %v6584
        %6649 = vst [vmem:[#allocation2 + $0x150] sm:$0xff] %v6585
        %6650 = vst [vmem:[#allocation2 + $0x158] sm:$0xff] %v6586
        %6651 = vst [vmem:[#allocation2 + $0x160] sm:$0xff] %v6587
        %6652 = vst [vmem:[#allocation2 + $0x168] sm:$0xff] %v6588
        %6653 = vst [vmem:[#allocation2 + $0x170] sm:$0xff] %v6589
        %6654 = vst [vmem:[#allocation2 + $0x178] sm:$0xff] %v6590
        %6655 = vst [vmem:[#allocation2 + $0x180] sm:$0xff] %v6591
        %6656 = vst [vmem:[#allocation2 + $0x188] sm:$0xff] %v6592
        %6657 = vst [vmem:[#allocation2 + $0x190] sm:$0xff] %v6593
        %6658 = vst [vmem:[#allocation2 + $0x198] sm:$0xff] %v6594
        %6659 = vst [vmem:[#allocation2 + $0x1a0] sm:$0xff] %v6595
        %6660 = vst [vmem:[#allocation2 + $0x1a8] sm:$0xff] %v6596
        %6661 = vst [vmem:[#allocation2 + $0x1b0] sm:$0xff] %v6597
        %6662 = vst [vmem:[#allocation2 + $0x1b8] sm:$0xff] %v6598
        %6663 = vst [vmem:[#allocation2 + $0x1c0] sm:$0xff] %v6599
        %6664 = vst [vmem:[#allocation2 + $0x1c8] sm:$0xff] %v6600
        %6665 = vst [vmem:[#allocation2 + $0x1d0] sm:$0xff] %v6601
        %6666 = vst [vmem:[#allocation2 + $0x1d8] sm:$0xff] %v6602
        %6667 = vst [vmem:[#allocation2 + $0x1e0] sm:$0xff] %v6603
        %6668 = vst [vmem:[#allocation2 + $0x1e8] sm:$0xff] %v6604
        %6669 = vst [vmem:[#allocation2 + $0x1f0] sm:$0xff] %v6605
        %6670 = vst [vmem:[#allocation2 + $0x1f8] sm:$0xff] %v6606
        %p6671 = scmp.eq.s32.totalorder %s30, 6
        // Predicated region
        $region49: #{tpu_custom_call.1} parent=31 // pred_check
          %p6672 = pneg %p6671
        $region50: #{tpu_custom_call.1} parent=31 // pred_check_branch
          %6674 = sbr.rel (%p6672) target = $region52
        $region51: #{tpu_custom_call.1} parent=31 // pred_region
          %v6675 = vld [vmem:[#allocation2] sm:$0xff]
          %v6676 = vld [vmem:[#allocation2 + $0x8] sm:$0xff]
          %v6677 = vld [vmem:[#allocation2 + $0x10] sm:$0xff]
          %v6678 = vld [vmem:[#allocation2 + $0x18] sm:$0xff]
          %v6679 = vld [vmem:[#allocation2 + $0x20] sm:$0xff]
          %v6680 = vld [vmem:[#allocation2 + $0x28] sm:$0xff]
          %v6681 = vld [vmem:[#allocation2 + $0x30] sm:$0xff]
          %v6682 = vld [vmem:[#allocation2 + $0x38] sm:$0xff]
          %v6683 = vld [vmem:[#allocation2 + $0x40] sm:$0xff]
          %v6684 = vld [vmem:[#allocation2 + $0x48] sm:$0xff]
          %v6685 = vld [vmem:[#allocation2 + $0x50] sm:$0xff]
          %v6686 = vld [vmem:[#allocation2 + $0x58] sm:$0xff]
          %v6687 = vld [vmem:[#allocation2 + $0x60] sm:$0xff]
          %v6688 = vld [vmem:[#allocation2 + $0x68] sm:$0xff]
          %v6689 = vld [vmem:[#allocation2 + $0x70] sm:$0xff]
          %v6690 = vld [vmem:[#allocation2 + $0x78] sm:$0xff]
          %v6691 = vld [vmem:[#allocation2 + $0x80] sm:$0xff]
          %v6692 = vld [vmem:[#allocation2 + $0x88] sm:$0xff]
          %v6693 = vld [vmem:[#allocation2 + $0x90] sm:$0xff]
          %v6694 = vld [vmem:[#allocation2 + $0x98] sm:$0xff]
          %v6695 = vld [vmem:[#allocation2 + $0xa0] sm:$0xff]
          %v6696 = vld [vmem:[#allocation2 + $0xa8] sm:$0xff]
          %v6697 = vld [vmem:[#allocation2 + $0xb0] sm:$0xff]
          %v6698 = vld [vmem:[#allocation2 + $0xb8] sm:$0xff]
          %v6699 = vld [vmem:[#allocation2 + $0xc0] sm:$0xff]
          %v6700 = vld [vmem:[#allocation2 + $0xc8] sm:$0xff]
          %v6701 = vld [vmem:[#allocation2 + $0xd0] sm:$0xff]
          %v6702 = vld [vmem:[#allocation2 + $0xd8] sm:$0xff]
          %v6703 = vld [vmem:[#allocation2 + $0xe0] sm:$0xff]
          %v6704 = vld [vmem:[#allocation2 + $0xe8] sm:$0xff]
          %v6705 = vld [vmem:[#allocation2 + $0xf0] sm:$0xff]
          %v6706 = vld [vmem:[#allocation2 + $0xf8] sm:$0xff]
          %v6707 = vld [vmem:[#allocation2 + $0x100] sm:$0xff]
          %v6708 = vld [vmem:[#allocation2 + $0x108] sm:$0xff]
          %v6709 = vld [vmem:[#allocation2 + $0x110] sm:$0xff]
          %v6710 = vld [vmem:[#allocation2 + $0x118] sm:$0xff]
          %v6711 = vld [vmem:[#allocation2 + $0x120] sm:$0xff]
          %v6712 = vld [vmem:[#allocation2 + $0x128] sm:$0xff]
          %v6713 = vld [vmem:[#allocation2 + $0x130] sm:$0xff]
          %v6714 = vld [vmem:[#allocation2 + $0x138] sm:$0xff]
          %v6715 = vld [vmem:[#allocation2 + $0x140] sm:$0xff]
          %v6716 = vld [vmem:[#allocation2 + $0x148] sm:$0xff]
          %v6717 = vld [vmem:[#allocation2 + $0x150] sm:$0xff]
          %v6718 = vld [vmem:[#allocation2 + $0x158] sm:$0xff]
          %v6719 = vld [vmem:[#allocation2 + $0x160] sm:$0xff]
          %v6720 = vld [vmem:[#allocation2 + $0x168] sm:$0xff]
          %v6721 = vld [vmem:[#allocation2 + $0x170] sm:$0xff]
          %v6722 = vld [vmem:[#allocation2 + $0x178] sm:$0xff]
          %v6723 = vld [vmem:[#allocation2 + $0x180] sm:$0xff]
          %v6724 = vld [vmem:[#allocation2 + $0x188] sm:$0xff]
          %v6725 = vld [vmem:[#allocation2 + $0x190] sm:$0xff]
          %v6726 = vld [vmem:[#allocation2 + $0x198] sm:$0xff]
          %v6727 = vld [vmem:[#allocation2 + $0x1a0] sm:$0xff]
          %v6728 = vld [vmem:[#allocation2 + $0x1a8] sm:$0xff]
          %v6729 = vld [vmem:[#allocation2 + $0x1b0] sm:$0xff]
          %v6730 = vld [vmem:[#allocation2 + $0x1b8] sm:$0xff]
          %v6731 = vld [vmem:[#allocation2 + $0x1c0] sm:$0xff]
          %v6732 = vld [vmem:[#allocation2 + $0x1c8] sm:$0xff]
          %v6733 = vld [vmem:[#allocation2 + $0x1d0] sm:$0xff]
          %v6734 = vld [vmem:[#allocation2 + $0x1d8] sm:$0xff]
          %v6735 = vld [vmem:[#allocation2 + $0x1e0] sm:$0xff]
          %v6736 = vld [vmem:[#allocation2 + $0x1e8] sm:$0xff]
          %v6737 = vld [vmem:[#allocation2 + $0x1f0] sm:$0xff]
          %v6738 = vld [vmem:[#allocation2 + $0x1f8] sm:$0xff]
          %v6739 = vld [vmem:[%s266] sm:$0xf]
          %v6741 = vperm.slane %v6739, 0
          %v6742 = vperm.slane %v6739, 1
          %v6743 = vperm.slane %v6739, 2
          %v6744 = vperm.slane %v6739, 3
          %v6749 = vadd.f32 %v6675, %v6741
          %v6750 = vadd.f32 %v6676, %v6742
          %v6751 = vadd.f32 %v6677, %v6743
          %v6752 = vadd.f32 %v6678, %v6744
          %v6753 = vadd.f32 %v6679, %v6741
          %v6754 = vadd.f32 %v6680, %v6742
          %v6755 = vadd.f32 %v6681, %v6743
          %v6756 = vadd.f32 %v6682, %v6744
          %v6757 = vadd.f32 %v6683, %v6741
          %v6758 = vadd.f32 %v6684, %v6742
          %v6759 = vadd.f32 %v6685, %v6743
          %v6760 = vadd.f32 %v6686, %v6744
          %v6761 = vadd.f32 %v6687, %v6741
          %v6762 = vadd.f32 %v6688, %v6742
          %v6763 = vadd.f32 %v6689, %v6743
          %v6764 = vadd.f32 %v6690, %v6744
          %v6765 = vadd.f32 %v6691, %v6741
          %v6766 = vadd.f32 %v6692, %v6742
          %v6767 = vadd.f32 %v6693, %v6743
          %v6768 = vadd.f32 %v6694, %v6744
          %v6769 = vadd.f32 %v6695, %v6741
          %v6770 = vadd.f32 %v6696, %v6742
          %v6771 = vadd.f32 %v6697, %v6743
          %v6772 = vadd.f32 %v6698, %v6744
          %v6773 = vadd.f32 %v6699, %v6741
          %v6774 = vadd.f32 %v6700, %v6742
          %v6775 = vadd.f32 %v6701, %v6743
          %v6776 = vadd.f32 %v6702, %v6744
          %v6777 = vadd.f32 %v6703, %v6741
          %v6778 = vadd.f32 %v6704, %v6742
          %v6779 = vadd.f32 %v6705, %v6743
          %v6780 = vadd.f32 %v6706, %v6744
          %v6781 = vadd.f32 %v6707, %v6741
          %v6782 = vadd.f32 %v6708, %v6742
          %v6783 = vadd.f32 %v6709, %v6743
          %v6784 = vadd.f32 %v6710, %v6744
          %v6785 = vadd.f32 %v6711, %v6741
          %v6786 = vadd.f32 %v6712, %v6742
          %v6787 = vadd.f32 %v6713, %v6743
          %v6788 = vadd.f32 %v6714, %v6744
          %v6789 = vadd.f32 %v6715, %v6741
          %v6790 = vadd.f32 %v6716, %v6742
          %v6791 = vadd.f32 %v6717, %v6743
          %v6792 = vadd.f32 %v6718, %v6744
          %v6793 = vadd.f32 %v6719, %v6741
          %v6794 = vadd.f32 %v6720, %v6742
          %v6795 = vadd.f32 %v6721, %v6743
          %v6796 = vadd.f32 %v6722, %v6744
          %v6797 = vadd.f32 %v6723, %v6741
          %v6798 = vadd.f32 %v6724, %v6742
          %v6799 = vadd.f32 %v6725, %v6743
          %v6800 = vadd.f32 %v6726, %v6744
          %v6801 = vadd.f32 %v6727, %v6741
          %v6802 = vadd.f32 %v6728, %v6742
          %v6803 = vadd.f32 %v6729, %v6743
          %v6804 = vadd.f32 %v6730, %v6744
          %v6805 = vadd.f32 %v6731, %v6741
          %v6806 = vadd.f32 %v6732, %v6742
          %v6807 = vadd.f32 %v6733, %v6743
          %v6808 = vadd.f32 %v6734, %v6744
          %v6809 = vadd.f32 %v6735, %v6741
          %v6810 = vadd.f32 %v6736, %v6742
          %v6811 = vadd.f32 %v6737, %v6743
          %v6812 = vadd.f32 %v6738, %v6744
          %v6813 = vmax.f32 %v6749, 0.0
          %v6814 = vmax.f32 %v6750, 0.0
          %v6815 = vmax.f32 %v6751, 0.0
          %v6816 = vmax.f32 %v6752, 0.0
          %v6817 = vmax.f32 %v6753, 0.0
          %v6818 = vmax.f32 %v6754, 0.0
          %v6819 = vmax.f32 %v6755, 0.0
          %v6820 = vmax.f32 %v6756, 0.0
          %v6821 = vmax.f32 %v6757, 0.0
          %v6822 = vmax.f32 %v6758, 0.0
          %v6823 = vmax.f32 %v6759, 0.0
          %v6824 = vmax.f32 %v6760, 0.0
          %v6825 = vmax.f32 %v6761, 0.0
          %v6826 = vmax.f32 %v6762, 0.0
          %v6827 = vmax.f32 %v6763, 0.0
          %v6828 = vmax.f32 %v6764, 0.0
          %v6829 = vmax.f32 %v6765, 0.0
          %v6830 = vmax.f32 %v6766, 0.0
          %v6831 = vmax.f32 %v6767, 0.0
          %v6832 = vmax.f32 %v6768, 0.0
          %v6833 = vmax.f32 %v6769, 0.0
          %v6834 = vmax.f32 %v6770, 0.0
          %v6835 = vmax.f32 %v6771, 0.0
          %v6836 = vmax.f32 %v6772, 0.0
          %v6837 = vmax.f32 %v6773, 0.0
          %v6838 = vmax.f32 %v6774, 0.0
          %v6839 = vmax.f32 %v6775, 0.0
          %v6840 = vmax.f32 %v6776, 0.0
          %v6841 = vmax.f32 %v6777, 0.0
          %v6842 = vmax.f32 %v6778, 0.0
          %v6843 = vmax.f32 %v6779, 0.0
          %v6844 = vmax.f32 %v6780, 0.0
          %v6845 = vmax.f32 %v6781, 0.0
          %v6846 = vmax.f32 %v6782, 0.0
          %v6847 = vmax.f32 %v6783, 0.0
          %v6848 = vmax.f32 %v6784, 0.0
          %v6849 = vmax.f32 %v6785, 0.0
          %v6850 = vmax.f32 %v6786, 0.0
          %v6851 = vmax.f32 %v6787, 0.0
          %v6852 = vmax.f32 %v6788, 0.0
          %v6853 = vmax.f32 %v6789, 0.0
          %v6854 = vmax.f32 %v6790, 0.0
          %v6855 = vmax.f32 %v6791, 0.0
          %v6856 = vmax.f32 %v6792, 0.0
          %v6857 = vmax.f32 %v6793, 0.0
          %v6858 = vmax.f32 %v6794, 0.0
          %v6859 = vmax.f32 %v6795, 0.0
          %v6860 = vmax.f32 %v6796, 0.0
          %v6861 = vmax.f32 %v6797, 0.0
          %v6862 = vmax.f32 %v6798, 0.0
          %v6863 = vmax.f32 %v6799, 0.0
          %v6864 = vmax.f32 %v6800, 0.0
          %v6865 = vmax.f32 %v6801, 0.0
          %v6866 = vmax.f32 %v6802, 0.0
          %v6867 = vmax.f32 %v6803, 0.0
          %v6868 = vmax.f32 %v6804, 0.0
          %v6869 = vmax.f32 %v6805, 0.0
          %v6870 = vmax.f32 %v6806, 0.0
          %v6871 = vmax.f32 %v6807, 0.0
          %v6872 = vmax.f32 %v6808, 0.0
          %v6873 = vmax.f32 %v6809, 0.0
          %v6874 = vmax.f32 %v6810, 0.0
          %v6875 = vmax.f32 %v6811, 0.0
          %v6876 = vmax.f32 %v6812, 0.0
          %v6877 = vpack.c.bf16 %v6814, %v6813
          %v6878 = vpack.c.bf16 %v6816, %v6815
          %v6879 = vpack.c.bf16 %v6818, %v6817
          %v6880 = vpack.c.bf16 %v6820, %v6819
          %v6881 = vpack.c.bf16 %v6822, %v6821
          %v6882 = vpack.c.bf16 %v6824, %v6823
          %v6883 = vpack.c.bf16 %v6826, %v6825
          %v6884 = vpack.c.bf16 %v6828, %v6827
          %v6885 = vpack.c.bf16 %v6830, %v6829
          %v6886 = vpack.c.bf16 %v6832, %v6831
          %v6887 = vpack.c.bf16 %v6834, %v6833
          %v6888 = vpack.c.bf16 %v6836, %v6835
          %v6889 = vpack.c.bf16 %v6838, %v6837
          %v6890 = vpack.c.bf16 %v6840, %v6839
          %v6891 = vpack.c.bf16 %v6842, %v6841
          %v6892 = vpack.c.bf16 %v6844, %v6843
          %v6893 = vpack.c.bf16 %v6846, %v6845
          %v6894 = vpack.c.bf16 %v6848, %v6847
          %v6895 = vpack.c.bf16 %v6850, %v6849
          %v6896 = vpack.c.bf16 %v6852, %v6851
          %v6897 = vpack.c.bf16 %v6854, %v6853
          %v6898 = vpack.c.bf16 %v6856, %v6855
          %v6899 = vpack.c.bf16 %v6858, %v6857
          %v6900 = vpack.c.bf16 %v6860, %v6859
          %v6901 = vpack.c.bf16 %v6862, %v6861
          %v6902 = vpack.c.bf16 %v6864, %v6863
          %v6903 = vpack.c.bf16 %v6866, %v6865
          %v6904 = vpack.c.bf16 %v6868, %v6867
          %v6905 = vpack.c.bf16 %v6870, %v6869
          %v6906 = vpack.c.bf16 %v6872, %v6871
          %v6907 = vpack.c.bf16 %v6874, %v6873
          %v6908 = vpack.c.bf16 %v6876, %v6875
          %6909 = vst [vmem:[%s299] sm:$0xff] %v6877
          %6910 = vst [vmem:[%s299 + $0x8] sm:$0xff] %v6878
          %6911 = vst [vmem:[%s299 + $0x10] sm:$0xff] %v6879
          %6912 = vst [vmem:[%s299 + $0x18] sm:$0xff] %v6880
          %6913 = vst [vmem:[%s299 + $0x20] sm:$0xff] %v6881
          %6914 = vst [vmem:[%s299 + $0x28] sm:$0xff] %v6882
          %6915 = vst [vmem:[%s299 + $0x30] sm:$0xff] %v6883
          %6916 = vst [vmem:[%s299 + $0x38] sm:$0xff] %v6884
          %6917 = vst [vmem:[%s299 + $0x40] sm:$0xff] %v6885
          %6918 = vst [vmem:[%s299 + $0x48] sm:$0xff] %v6886
          %6919 = vst [vmem:[%s299 + $0x50] sm:$0xff] %v6887
          %6920 = vst [vmem:[%s299 + $0x58] sm:$0xff] %v6888
          %6921 = vst [vmem:[%s299 + $0x60] sm:$0xff] %v6889
          %6922 = vst [vmem:[%s299 + $0x68] sm:$0xff] %v6890
          %6923 = vst [vmem:[%s299 + $0x70] sm:$0xff] %v6891
          %6924 = vst [vmem:[%s299 + $0x78] sm:$0xff] %v6892
          %6925 = vst [vmem:[%s299 + $0x80] sm:$0xff] %v6893
          %6926 = vst [vmem:[%s299 + $0x88] sm:$0xff] %v6894
          %6927 = vst [vmem:[%s299 + $0x90] sm:$0xff] %v6895
          %6928 = vst [vmem:[%s299 + $0x98] sm:$0xff] %v6896
          %6929 = vst [vmem:[%s299 + $0xa0] sm:$0xff] %v6897
          %6930 = vst [vmem:[%s299 + $0xa8] sm:$0xff] %v6898
          %6931 = vst [vmem:[%s299 + $0xb0] sm:$0xff] %v6899
          %6932 = vst [vmem:[%s299 + $0xb8] sm:$0xff] %v6900
          %6933 = vst [vmem:[%s299 + $0xc0] sm:$0xff] %v6901
          %6934 = vst [vmem:[%s299 + $0xc8] sm:$0xff] %v6902
          %6935 = vst [vmem:[%s299 + $0xd0] sm:$0xff] %v6903
          %6936 = vst [vmem:[%s299 + $0xd8] sm:$0xff] %v6904
          %6937 = vst [vmem:[%s299 + $0xe0] sm:$0xff] %v6905
          %6938 = vst [vmem:[%s299 + $0xe8] sm:$0xff] %v6906
          %6939 = vst [vmem:[%s299 + $0xf0] sm:$0xff] %v6907
          %6940 = vst [vmem:[%s299 + $0xf8] sm:$0xff] %v6908
        $region52: #{tpu_custom_call.1} parent=31 // pred_fallthru
          _
        %s6941 = sand.u32 %s134, 1
        %s6942 = scalar_lea.sflag [#allocation5], %s6941
        %s6943 = sand.u32 %s134, 1
        %s6944 = smul.addr %s6943, 256
        %s6945 = scalar_lea.vmem [#allocation9], %s6944
        // Predicated region
        $region53: #{tpu_custom_call.1} parent=31 // pred_check
          %p6946 = pneg %p144
        $region54: #{tpu_custom_call.1} parent=31 // pred_check_branch
          %6948 = sbr.rel (%p6946) target = $region56
        $region55: #{tpu_custom_call.1} parent=31 // pred_region
          %s6949 = smul.u32 16, %s28
          %s6950 = smul.u32 4, %s29
          %6952 = vsyncadd %s6942, 0
          %s6953 = smul.addr %s6949, 8
          %s6954 = sadd.s32 %s6950, %s6953
          %s6955 = smul.addr %s6954, 4
          %s6956 = scalar_lea.hbm %s3, %s6955
          %s6957 = sshll.u32 %s6945, 4
          %s6958 = int_to_ptr.vmem [resolvable:$true] %s6957
          %s6959 = sshll.u32 %s6956, 4
          %s6960 = int_to_ptr.hbm [resolvable:$true] %s6959
          %6965 = dma.vmem_to_hbm [thread:$0]  %s6958, 4096, %s6960, %s6942, 256, 512, 16
        $region56: #{tpu_custom_call.1} parent=31 // pred_fallthru
          _
      $region32: #{tpu_custom_call.1} parent=5 // pred_fallthru
        _
      %p6966 = scmp.le.s32.totalorder 2, %s18
      // Predicated region
      $region57: #{tpu_custom_call.1} parent=5 // pred_check
        %p6967 = pneg %p6966
      $region58: #{tpu_custom_call.1} parent=5 // pred_check_branch
        %6969 = sbr.rel (%p6967) target = $region60
      $region59: #{tpu_custom_call.1} parent=5 // pred_region
        %s6970 = ssub.s32 %s18, 2
        // Predicated region
        $region61: #{tpu_custom_call.1} parent=59 // pred_check
          %p6971 = pneg %p150
        $region62: #{tpu_custom_call.1} parent=59 // pred_check_branch
          %6973 = sbr.rel (%p6971) target = $region64
        $region63: #{tpu_custom_call.1} parent=59 // pred_region
          %s6974 = sand.u32 %s135, 1
          %s6975 = scalar_lea.sflag [#allocation5], %s6974
          %s6976 = sand.u32 %s135, 1
          %s6977 = smul.addr %s6976, 256
          %s6978 = scalar_lea.vmem [#allocation9], %s6977
          %6980 = dma.done %s6975, 4096
        $region64: #{tpu_custom_call.1} parent=59 // pred_fallthru
          _
      $region60: #{tpu_custom_call.1} parent=5 // pred_fallthru
        _
    $region6: #{tpu_custom_call.1} parent=1 // loop_footer
      %s22 = sadd.s32 1, %s18
    $region7: #{tpu_custom_call.1} parent=1 // loop_footer_branch
      %17 = sbr.rel target = $region3
    $region8: #{tpu_custom_call.1} parent=1 // loop_exit
      _
    %6981 = vsyncpa [#allocation4], 1
    %s6982 = scalar_lea.sflag [#allocation4], 1
    %6983 = vsyncpa %s6982, 1
    %6984 = vsyncpa [#allocation7], 1
    %s6985 = scalar_lea.sflag [#allocation7], 1
    %6986 = vsyncpa %s6985, 1
    %6987 = vsyncpa [#allocation5], 1
    %s6988 = scalar_lea.sflag [#allocation5], 1
    %6989 = vsyncpa %s6988, 1

</llo_original>
